<compile_context>
chip_gen: v7x
topology: tpu7x:2x2x1
jax: 0.10.0
libtpu: 0.0.40
codegen_flags: <defaults>
</compile_context>

<pallas_src>
import functools
import math

import jax
import jax.numpy as jnp
from jax.experimental import pallas as pl
from jax.experimental.pallas import tpu as pltpu


def _upsample_conv_kernel(w_ref, b_ref, x_ref, o_ref, lhs_ref, *,
                          rows, width, cin, tco, fuse_store):
    """One (batch, row-band, cout-tile) step of the fused upsample+conv.

    w_ref:   VMEM (4, 4*cin, tco)               folded per-parity weights
    b_ref:   VMEM (1, tco)                      bias (f32)
    x_ref:   VMEM (1, 1, rows+2, width+2, cin)  padded input band
    o_ref:   VMEM (1, 1, rows*width, 4*tco)     output, parity-major on lanes
    lhs_ref: VMEM (2, rows, width, 4*cin)       ping-pong im2col staging
    """
    bias = b_ref[...].astype(jnp.float32)                     # (1, tco)
    fused = []
    for p, (pi, pj) in enumerate(((0, 0), (0, 1), (1, 0), (1, 1))):
        slot = p & 1
        # Stage the 4 shifted 2x2-tap patches side by side on the channel axis:
        # exactly one store per tap, so the whole parity becomes ONE MXU
        # contraction of depth 4*cin (no per-tap accumulator RMW).
        for t, (dv, dh) in enumerate(((0, 0), (0, 1), (1, 0), (1, 1))):
            patch = x_ref[0, 0,
                          pi + dv:pi + dv + rows,
                          pj + dh:pj + dh + width, :]
            lhs_ref[slot, :, :, t * cin:(t + 1) * cin] = patch.astype(lhs_ref.dtype)
        lhs = lhs_ref[slot].reshape(rows * width, 4 * cin)
        res = jnp.dot(lhs, w_ref[p], preferred_element_type=jnp.float32) + bias
        res = res.astype(o_ref.dtype)
        if fuse_store:
            fused.append(res)                 # small tco: one lane-dense store
        else:
            o_ref[0, 0, :, p * tco:(p + 1) * tco] = res
    if fuse_store:
        o_ref[0, 0] = jnp.concatenate(fused, axis=-1)


def _subpixel_weights(weight):
    """Fold the 3x3 OIHW kernel into per-parity 2x2 kernels, shape (4, 4*Ci, Co).

    First dim = pi*2+pj; contraction dim ordered as (tv, th, ci) to match the
    staging order used in the kernel.
    """
    co, ci = weight.shape[0], weight.shape[1]
    wk = jnp.transpose(weight, (2, 3, 1, 0))                         # (kh, kw, Ci, Co)
    v0 = jnp.stack([wk[0], wk[1] + wk[2]], axis=0)                   # pi=0: (tv, kw, Ci, Co)
    v1 = jnp.stack([wk[0] + wk[1], wk[2]], axis=0)                   # pi=1
    v = jnp.stack([v0, v1], axis=0)                                  # (pi, tv, kw, Ci, Co)
    h0 = jnp.stack([v[:, :, 0], v[:, :, 1] + v[:, :, 2]], axis=2)    # pj=0: (pi, tv, th, Ci, Co)
    h1 = jnp.stack([v[:, :, 0] + v[:, :, 1], v[:, :, 2]], axis=2)    # pj=1
    w_eff = jnp.stack([h0, h1], axis=1)                              # (pi, pj, tv, th, Ci, Co)
    return w_eff.reshape(4, 4 * ci, co)


def _largest_divisor_leq(n, cap):
    cap = max(1, min(n, int(cap)))
    for d in range(cap, 0, -1):
        if n % d == 0:
            return d
    return 1


def upsample_forward(x, weight=None, bias=None, *, with_conv=True,
                     compute_dtype=None, band_rows=None):
    """Equivalent of Upsample.forward: nearest 2x upsample (+ optional conv).

    x:      (N, C, H, W); weight: (C, C, 3, 3) OIHW; bias: (C,)
    Returns (N, C, 2H, 2W) NCHW, matching the PyTorch module.
    """
    N, C, H, W = x.shape
    if not with_conv:
        # Pure data duplication: broadcast + reshape fuses to one pass.
        # TODO(synk): a stride-2 lane-interleaving Pallas store has no clean
        # Mosaic lowering, so the conv-free path stays as XLA glue.
        y = jnp.broadcast_to(x[:, :, :, None, :, None], (N, C, H, 2, W, 2))
        return y.reshape(N, C, 2 * H, 2 * W)

    assert weight is not None and bias is not None
    cout = weight.shape[0]
    assert weight.shape == (cout, C, 3, 3)

    if compute_dtype is None:
        compute_dtype = x.dtype
    compute_dtype = jnp.dtype(compute_dtype)
    in_size = compute_dtype.itemsize
    out_size = jnp.dtype(x.dtype).itemsize

    # ---- output-channel tiling: fill the MXU output dim ----------------------
    # 256 matches v6e/v7x (2x256^2); 128 otherwise (v5e sweet spot); single
    # block for small channel counts.
    if cout % 256 == 0:
        tco = 256
    elif cout % 128 == 0:
        tco = 128
    else:
        tco = cout
    n_co = cout // tco

    # ---- spatial row-band tiling: bound per-step VMEM -------------------------
    # Budget is conservative enough for v5e's 16 MiB scoped default and leaves
    # ample headroom under v7x's 64 MiB physical VMEM.
    budget = 14 * 2 ** 20
    fixed = (2 * 4 * 4 * C * tco * in_size          # weights, double-buffered
             + 2 * C * 4                            # bias
             + 2 * 2 * (W + 2) * C * in_size)       # band halo rows
    per_row = (2 * (W + 2) * C * in_size            # input band, double-buffered
               + 2 * 4 * W * C * in_size            # im2col staging (2 slots)
               + 2 * 4 * W * tco * out_size)        # output block, double-buffered
    cap = max(1, (budget - fixed) // per_row)
    rows = _largest_divisor_leq(H, cap if band_rows is None else min(band_rows, H))
    nb = H // rows

    # ---- host-side prep: channels-last, 1-px halo, overlapping row bands ------
    # The upsample is never materialized; only the original-resolution image is
    # padded.  TODO(synk): an Element-indexed (or manual-DMA) halo would avoid
    # duplicating the 2 halo rows per band in HBM; kept as XLA slicing for
    # robustness.
    x_nhwc = jnp.transpose(x, (0, 2, 3, 1)).astype(compute_dtype)
    xp = jnp.pad(x_nhwc, ((0, 0), (1, 1), (1, 1), (0, 0)))      # (N, H+2, W+2, C)
    if nb == 1:
        x_bands = xp[:, None]
    else:
        x_bands = jnp.stack(
            [xp[:, b * rows:b * rows + rows + 2] for b in range(nb)], axis=1)

    w_eff = _subpixel_weights(weight).astype(compute_dtype)     # (4, 4*C, Cout)
    b2d = bias.reshape(1, cout).astype(jnp.float32)

    # ---- grid ordering: keep the bigger of {weights, image band} resident -----
    img_block_bytes = (rows + 2) * (W + 2) * C * in_size
    wgt_block_bytes = 4 * 4 * C * tco * in_size
    weights_outer = n_co > 1 and wgt_block_bytes >= img_block_bytes
    if weights_outer:
        grid = (n_co, N, nb)
        wmap = lambda c, n, b: (0, 0, c)
        bmap = lambda c, n, b: (0, c)
        xmap = lambda c, n, b: (n, b, 0, 0, 0)
        omap = lambda c, n, b: (n, b, 0, c)
    else:
        grid = (N, nb, n_co)
        wmap = lambda n, b, c: (0, 0, c)
        bmap = lambda n, b, c: (0, c)
        xmap = lambda n, b, c: (n, b, 0, 0, 0)
        omap = lambda n, b, c: (n, b, 0, c)

    est = (2 * img_block_bytes + 2 * wgt_block_bytes + 2 * C * 4
           + 2 * rows * W * 4 * C * in_size
           + 2 * rows * W * 4 * tco * out_size)
    vmem_limit = int(min(max(2 * est, 32 * 2 ** 20), 64 * 2 ** 20))

    flops = 2 * N * H * W * 16 * C * cout
    bytes_accessed = (x_bands.size * in_size
                      + 4 * N * H * W * cout * out_size
                      + w_eff.size * in_size)

    kernel = functools.partial(
        _upsample_conv_kernel, rows=rows, width=W, cin=C, tco=tco,
        fuse_store=tco < 128)

    out = pl.pallas_call(
        kernel,
        out_shape=jax.ShapeDtypeStruct((N, nb, rows * W, 4 * cout), x.dtype),
        grid=grid,
        in_specs=[
            pl.BlockSpec((4, 4 * C, tco), wmap),                     # weights
            pl.BlockSpec((1, tco), bmap),                            # bias
            pl.BlockSpec((1, 1, rows + 2, W + 2, C), xmap),          # image band
        ],
        out_specs=pl.BlockSpec((1, 1, rows * W, 4 * tco), omap),
        scratch_shapes=[pltpu.VMEM((2, rows, W, 4 * C), compute_dtype)],
        compiler_params=pltpu.CompilerParams(
            dimension_semantics=("parallel", "parallel", "parallel"),
            vmem_limit_bytes=vmem_limit),
        cost_estimate=pl.CostEstimate(flops=flops, transcendentals=0,
                                      bytes_accessed=bytes_accessed),
    )(w_eff, b2d, x_bands)

    # Assemble (band, parity, channel-tile) planes -> NCHW (layout plumbing only).
    y = out.reshape(N, nb, rows, W, n_co, 2, 2, tco)
    y = jnp.transpose(y, (0, 4, 7, 1, 2, 5, 3, 6))   # (N, cb, t, b, r, pi, c, pj)
    return y.reshape(N, cout, 2 * H, 2 * W)


def _reference(x, weight, bias):
    x_up = jnp.repeat(jnp.repeat(x, 2, axis=2), 2, axis=3)
    ref = jax.lax.conv_general_dilated(
        x_up, weight, window_strides=(1, 1), padding="SAME",
        dimension_numbers=("NCHW", "OIHW", "NCHW"))
    return ref + bias[None, :, None, None]


if __name__ == "__main__":
    key = jax.random.PRNGKey(0)
    kx, kw, kb, kx2, kw2, kb2 = jax.random.split(key, 6)

    # Small demo shapes consistent with the module.
    N, C, H, W = 2, 4, 16, 16
    x = jax.random.normal(kx, (N, C, H, W), dtype=jnp.float32)
    bound = 1.0 / math.sqrt(C * 3 * 3)
    weight = jax.random.uniform(kw, (C, C, 3, 3), jnp.float32, -bound, bound)
    bias = jax.random.uniform(kb, (C,), jnp.float32, -bound, bound)
    ref = _reference(x, weight, bias)

    # 1) Default path (single band, fused parity store for small C).
    out = jax.block_until_ready(upsample_forward(x, weight, bias, with_conv=True))
    assert out.shape == (N, C, 2 * H, 2 * W) and out.dtype == x.dtype
    assert jnp.allclose(out, ref, atol=1e-4, rtol=1e-4), float(jnp.max(jnp.abs(out - ref)))

    # 2) Multi-band path (exercises the spatial row-band grid axis + halo).
    out_b = jax.block_until_ready(
        upsample_forward(x, weight, bias, with_conv=True, band_rows=8))
    assert jnp.allclose(out_b, ref, atol=1e-4, rtol=1e-4)

    # 3) bf16 compute path (f32 MXU accumulation; looser tolerance).
    out_bf = jax.block_until_ready(
        upsample_forward(x, weight, bias, with_conv=True,
                         compute_dtype=jnp.bfloat16))
    assert jnp.allclose(out_bf, ref, atol=5e-2, rtol=5e-2)

    # 4) Channel-tiled / unfused-store path (tco = 128), still small.
    N2, C2, H2, W2 = 1, 128, 8, 8
    x2 = jax.random.normal(kx2, (N2, C2, H2, W2), dtype=jnp.float32)
    bound2 = 1.0 / math.sqrt(C2 * 3 * 3)
    weight2 = jax.random.uniform(kw2, (C2, C2, 3, 3), jnp.float32, -bound2, bound2)
    bias2 = jax.random.uniform(kb2, (C2,), jnp.float32, -bound2, bound2)
    ref2 = _reference(x2, weight2, bias2)
    out2 = jax.block_until_ready(upsample_forward(x2, weight2, bias2, with_conv=True))
    assert out2.shape == (N2, C2, 2 * H2, 2 * W2)
    assert jnp.allclose(out2, ref2, atol=2e-3, rtol=2e-3)

    # 5) Conv-free path (pure nearest upsample).
    out_nc = jax.block_until_ready(upsample_forward(x, with_conv=False))
    assert out_nc.shape == (N, C, 2 * H, 2 * W)
    assert jnp.allclose(out_nc, jnp.repeat(jnp.repeat(x, 2, axis=2), 2, axis=3))

    print("KERNEL_OK")
</pallas_src>

<mosaic_0001>
module attributes {stable_mosaic.version = 11 : i64} {
  func.func @_upsample_conv_kernel(%arg0: i32, %arg1: i32, %arg2: i32, %arg3: memref<4x16x4xf32, #tpu.memory_space<vmem>>, %arg4: memref<1x4xf32, #tpu.memory_space<vmem>>, %arg5: memref<1x1x18x18x4xf32, #tpu.memory_space<vmem>>, %arg6: memref<1x1x256x16xf32, #tpu.memory_space<vmem>>, %arg7: memref<2x16x16x16xf32, #tpu.memory_space<vmem>>) attributes {dimension_semantics = [#tpu.dimension_semantics<parallel>, #tpu.dimension_semantics<parallel>, #tpu.dimension_semantics<parallel>], iteration_bounds = array<i64: 2, 1, 1>, scalar_prefetch = 0 : i64, scratch_operands = 1 : i64, tpu.core_type = #tpu.core_type<tc>, window_params = [{transform_indices = @transform_0, window_bounds = array<i64: 4, 16, 4>}, {transform_indices = @transform_1, window_bounds = array<i64: 1, 4>}, {transform_indices = @transform_2, window_bounds = array<i64: 1, 1, 18, 18, 4>}, {transform_indices = @transform_3, window_bounds = array<i64: 1, 1, 256, 16>}]} {
    %c0 = arith.constant 0 : index
    %c0_0 = arith.constant 0 : index
    %0 = vector.load %arg4[%c0, %c0_0] : memref<1x4xf32, #tpu.memory_space<vmem>>, vector<1x4xf32>
    %c0_1 = arith.constant 0 : index
    %c0_2 = arith.constant 0 : index
    %c0_3 = arith.constant 0 : index
    %c0_4 = arith.constant 0 : index
    %c0_5 = arith.constant 0 : index
    %1 = vector.load %arg5[%c0_1, %c0_2, %c0_3, %c0_4, %c0_5] : memref<1x1x18x18x4xf32, #tpu.memory_space<vmem>>, vector<1x1x16x16x4xf32>
    %2 = vector.shape_cast %1 : vector<1x1x16x16x4xf32> to vector<16x16x4xf32>
    %c0_6 = arith.constant 0 : index
    %c0_7 = arith.constant 0 : index
    %c0_8 = arith.constant 0 : index
    %c0_9 = arith.constant 0 : index
    %3 = vector.load %arg7[%c0_6, %c0_7, %c0_8, %c0_9] : memref<2x16x16x16xf32, #tpu.memory_space<vmem>>, vector<1x16x16x4xf32>
    %4 = vector.shape_cast %3 : vector<1x16x16x4xf32> to vector<16x16x4xf32>
    %5 = vector.shape_cast %2 : vector<16x16x4xf32> to vector<1x16x16x4xf32>
    tpu.vector_store %arg7[%c0_6, %c0_7, %c0_8, %c0_9], %5 {strides = array<i32>} : memref<2x16x16x16xf32, #tpu.memory_space<vmem>>, vector<1x16x16x4xf32>,
    %c0_10 = arith.constant 0 : index
    %c0_11 = arith.constant 0 : index
    %c0_12 = arith.constant 0 : index
    %c1 = arith.constant 1 : index
    %c0_13 = arith.constant 0 : index
    %6 = vector.load %arg5[%c0_10, %c0_11, %c0_12, %c1, %c0_13] : memref<1x1x18x18x4xf32, #tpu.memory_space<vmem>>, vector<1x1x16x16x4xf32>
    %7 = vector.shape_cast %6 : vector<1x1x16x16x4xf32> to vector<16x16x4xf32>
    %c0_14 = arith.constant 0 : index
    %c0_15 = arith.constant 0 : index
    %c0_16 = arith.constant 0 : index
    %c4 = arith.constant 4 : index
    %8 = vector.load %arg7[%c0_14, %c0_15, %c0_16, %c4] : memref<2x16x16x16xf32, #tpu.memory_space<vmem>>, vector<1x16x16x4xf32>
    %9 = vector.shape_cast %8 : vector<1x16x16x4xf32> to vector<16x16x4xf32>
    %10 = vector.shape_cast %7 : vector<16x16x4xf32> to vector<1x16x16x4xf32>
    tpu.vector_store %arg7[%c0_14, %c0_15, %c0_16, %c4], %10 {strides = array<i32>} : memref<2x16x16x16xf32, #tpu.memory_space<vmem>>, vector<1x16x16x4xf32>,
    %c0_17 = arith.constant 0 : index
    %c0_18 = arith.constant 0 : index
    %c1_19 = arith.constant 1 : index
    %c0_20 = arith.constant 0 : index
    %c0_21 = arith.constant 0 : index
    %11 = vector.load %arg5[%c0_17, %c0_18, %c1_19, %c0_20, %c0_21] : memref<1x1x18x18x4xf32, #tpu.memory_space<vmem>>, vector<1x1x16x16x4xf32>
    %12 = vector.shape_cast %11 : vector<1x1x16x16x4xf32> to vector<16x16x4xf32>
    %c0_22 = arith.constant 0 : index
    %c0_23 = arith.constant 0 : index
    %c0_24 = arith.constant 0 : index
    %c8 = arith.constant 8 : index
    %13 = vector.load %arg7[%c0_22, %c0_23, %c0_24, %c8] : memref<2x16x16x16xf32, #tpu.memory_space<vmem>>, vector<1x16x16x4xf32>
    %14 = vector.shape_cast %13 : vector<1x16x16x4xf32> to vector<16x16x4xf32>
    %15 = vector.shape_cast %12 : vector<16x16x4xf32> to vector<1x16x16x4xf32>
    tpu.vector_store %arg7[%c0_22, %c0_23, %c0_24, %c8], %15 {strides = array<i32>} : memref<2x16x16x16xf32, #tpu.memory_space<vmem>>, vector<1x16x16x4xf32>,
    %c0_25 = arith.constant 0 : index
    %c0_26 = arith.constant 0 : index
    %c1_27 = arith.constant 1 : index
    %c1_28 = arith.constant 1 : index
    %c0_29 = arith.constant 0 : index
    %16 = vector.load %arg5[%c0_25, %c0_26, %c1_27, %c1_28, %c0_29] : memref<1x1x18x18x4xf32, #tpu.memory_space<vmem>>, vector<1x1x16x16x4xf32>
    %17 = vector.shape_cast %16 : vector<1x1x16x16x4xf32> to vector<16x16x4xf32>
    %c0_30 = arith.constant 0 : index
    %c0_31 = arith.constant 0 : index
    %c0_32 = arith.constant 0 : index
    %c12 = arith.constant 12 : index
    %18 = vector.load %arg7[%c0_30, %c0_31, %c0_32, %c12] : memref<2x16x16x16xf32, #tpu.memory_space<vmem>>, vector<1x16x16x4xf32>
    %19 = vector.shape_cast %18 : vector<1x16x16x4xf32> to vector<16x16x4xf32>
    %20 = vector.shape_cast %17 : vector<16x16x4xf32> to vector<1x16x16x4xf32>
    tpu.vector_store %arg7[%c0_30, %c0_31, %c0_32, %c12], %20 {strides = array<i32>} : memref<2x16x16x16xf32, #tpu.memory_space<vmem>>, vector<1x16x16x4xf32>,
    %c0_33 = arith.constant 0 : index
    %c0_34 = arith.constant 0 : index
    %c0_35 = arith.constant 0 : index
    %c0_36 = arith.constant 0 : index
    %21 = vector.load %arg7[%c0_33, %c0_34, %c0_35, %c0_36] : memref<2x16x16x16xf32, #tpu.memory_space<vmem>>, vector<1x16x16x16xf32>
    %22 = vector.shape_cast %21 : vector<1x16x16x16xf32> to vector<16x16x16xf32>
    %23 = vector.shape_cast %22 : vector<16x16x16xf32> to vector<256x16xf32>
    %c0_37 = arith.constant 0 : index
    %c0_38 = arith.constant 0 : index
    %c0_39 = arith.constant 0 : index
    %24 = vector.load %arg3[%c0_37, %c0_38, %c0_39] : memref<4x16x4xf32, #tpu.memory_space<vmem>>, vector<1x16x4xf32>
    %25 = vector.shape_cast %24 : vector<1x16x4xf32> to vector<16x4xf32>
    %cst = arith.constant dense<0.000000e+00> : vector<256x4xf32>
    %26 = tpu.matmul %23, %25, %cst {dimension_numbers = #tpu.dot_dimension_numbers<[1], [0], [0], [1], [0, 0, 1, 1], [], []>} : vector<256x16xf32>, vector<16x4xf32>, vector<256x4xf32> -> vector<256x4xf32>
    %27 = vector.broadcast %0 : vector<1x4xf32> to vector<256x4xf32>
    %28 = arith.addf %26, %27 : vector<256x4xf32>
    %c0_40 = arith.constant 0 : index
    %c0_41 = arith.constant 0 : index
    %c0_42 = arith.constant 0 : index
    %c1_43 = arith.constant 1 : index
    %c0_44 = arith.constant 0 : index
    %29 = vector.load %arg5[%c0_40, %c0_41, %c0_42, %c1_43, %c0_44] : memref<1x1x18x18x4xf32, #tpu.memory_space<vmem>>, vector<1x1x16x16x4xf32>
    %30 = vector.shape_cast %29 : vector<1x1x16x16x4xf32> to vector<16x16x4xf32>
    %c1_45 = arith.constant 1 : index
    %c0_46 = arith.constant 0 : index
    %c0_47 = arith.constant 0 : index
    %c0_48 = arith.constant 0 : index
    %31 = vector.load %arg7[%c1_45, %c0_46, %c0_47, %c0_48] : memref<2x16x16x16xf32, #tpu.memory_space<vmem>>, vector<1x16x16x4xf32>
    %32 = vector.shape_cast %31 : vector<1x16x16x4xf32> to vector<16x16x4xf32>
    %33 = vector.shape_cast %30 : vector<16x16x4xf32> to vector<1x16x16x4xf32>
    tpu.vector_store %arg7[%c1_45, %c0_46, %c0_47, %c0_48], %33 {strides = array<i32>} : memref<2x16x16x16xf32, #tpu.memory_space<vmem>>, vector<1x16x16x4xf32>,
    %c0_49 = arith.constant 0 : index
    %c0_50 = arith.constant 0 : index
    %c0_51 = arith.constant 0 : index
    %c2 = arith.constant 2 : index
    %c0_52 = arith.constant 0 : index
    %34 = vector.load %arg5[%c0_49, %c0_50, %c0_51, %c2, %c0_52] : memref<1x1x18x18x4xf32, #tpu.memory_space<vmem>>, vector<1x1x16x16x4xf32>
    %35 = vector.shape_cast %34 : vector<1x1x16x16x4xf32> to vector<16x16x4xf32>
    %c1_53 = arith.constant 1 : index
    %c0_54 = arith.constant 0 : index
    %c0_55 = arith.constant 0 : index
    %c4_56 = arith.constant 4 : index
    %36 = vector.load %arg7[%c1_53, %c0_54, %c0_55, %c4_56] : memref<2x16x16x16xf32, #tpu.memory_space<vmem>>, vector<1x16x16x4xf32>
    %37 = vector.shape_cast %36 : vector<1x16x16x4xf32> to vector<16x16x4xf32>
    %38 = vector.shape_cast %35 : vector<16x16x4xf32> to vector<1x16x16x4xf32>
    tpu.vector_store %arg7[%c1_53, %c0_54, %c0_55, %c4_56], %38 {strides = array<i32>} : memref<2x16x16x16xf32, #tpu.memory_space<vmem>>, vector<1x16x16x4xf32>,
    %c0_57 = arith.constant 0 : index
    %c0_58 = arith.constant 0 : index
    %c1_59 = arith.constant 1 : index
    %c1_60 = arith.constant 1 : index
    %c0_61 = arith.constant 0 : index
    %39 = vector.load %arg5[%c0_57, %c0_58, %c1_59, %c1_60, %c0_61] : memref<1x1x18x18x4xf32, #tpu.memory_space<vmem>>, vector<1x1x16x16x4xf32>
    %40 = vector.shape_cast %39 : vector<1x1x16x16x4xf32> to vector<16x16x4xf32>
    %c1_62 = arith.constant 1 : index
    %c0_63 = arith.constant 0 : index
    %c0_64 = arith.constant 0 : index
    %c8_65 = arith.constant 8 : index
    %41 = vector.load %arg7[%c1_62, %c0_63, %c0_64, %c8_65] : memref<2x16x16x16xf32, #tpu.memory_space<vmem>>, vector<1x16x16x4xf32>
    %42 = vector.shape_cast %41 : vector<1x16x16x4xf32> to vector<16x16x4xf32>
    %43 = vector.shape_cast %40 : vector<16x16x4xf32> to vector<1x16x16x4xf32>
    tpu.vector_store %arg7[%c1_62, %c0_63, %c0_64, %c8_65], %43 {strides = array<i32>} : memref<2x16x16x16xf32, #tpu.memory_space<vmem>>, vector<1x16x16x4xf32>,
    %c0_66 = arith.constant 0 : index
    %c0_67 = arith.constant 0 : index
    %c1_68 = arith.constant 1 : index
    %c2_69 = arith.constant 2 : index
    %c0_70 = arith.constant 0 : index
    %44 = vector.load %arg5[%c0_66, %c0_67, %c1_68, %c2_69, %c0_70] : memref<1x1x18x18x4xf32, #tpu.memory_space<vmem>>, vector<1x1x16x16x4xf32>
    %45 = vector.shape_cast %44 : vector<1x1x16x16x4xf32> to vector<16x16x4xf32>
    %c1_71 = arith.constant 1 : index
    %c0_72 = arith.constant 0 : index
    %c0_73 = arith.constant 0 : index
    %c12_74 = arith.constant 12 : index
    %46 = vector.load %arg7[%c1_71, %c0_72, %c0_73, %c12_74] : memref<2x16x16x16xf32, #tpu.memory_space<vmem>>, vector<1x16x16x4xf32>
    %47 = vector.shape_cast %46 : vector<1x16x16x4xf32> to vector<16x16x4xf32>
    %48 = vector.shape_cast %45 : vector<16x16x4xf32> to vector<1x16x16x4xf32>
    tpu.vector_store %arg7[%c1_71, %c0_72, %c0_73, %c12_74], %48 {strides = array<i32>} : memref<2x16x16x16xf32, #tpu.memory_space<vmem>>, vector<1x16x16x4xf32>,
    %c1_75 = arith.constant 1 : index
    %c0_76 = arith.constant 0 : index
    %c0_77 = arith.constant 0 : index
    %c0_78 = arith.constant 0 : index
    %49 = vector.load %arg7[%c1_75, %c0_76, %c0_77, %c0_78] : memref<2x16x16x16xf32, #tpu.memory_space<vmem>>, vector<1x16x16x16xf32>
    %50 = vector.shape_cast %49 : vector<1x16x16x16xf32> to vector<16x16x16xf32>
    %51 = vector.shape_cast %50 : vector<16x16x16xf32> to vector<256x16xf32>
    %c1_79 = arith.constant 1 : index
    %c0_80 = arith.constant 0 : index
    %c0_81 = arith.constant 0 : index
    %52 = vector.load %arg3[%c1_79, %c0_80, %c0_81] : memref<4x16x4xf32, #tpu.memory_space<vmem>>, vector<1x16x4xf32>
    %53 = vector.shape_cast %52 : vector<1x16x4xf32> to vector<16x4xf32>
    %cst_82 = arith.constant dense<0.000000e+00> : vector<256x4xf32>
    %54 = tpu.matmul %51, %53, %cst_82 {dimension_numbers = #tpu.dot_dimension_numbers<[1], [0], [0], [1], [0, 0, 1, 1], [], []>} : vector<256x16xf32>, vector<16x4xf32>, vector<256x4xf32> -> vector<256x4xf32>
    %55 = vector.broadcast %0 : vector<1x4xf32> to vector<256x4xf32>
    %56 = arith.addf %54, %55 : vector<256x4xf32>
    %c0_83 = arith.constant 0 : index
    %c0_84 = arith.constant 0 : index
    %c1_85 = arith.constant 1 : index
    %c0_86 = arith.constant 0 : index
    %c0_87 = arith.constant 0 : index
    %57 = vector.load %arg5[%c0_83, %c0_84, %c1_85, %c0_86, %c0_87] : memref<1x1x18x18x4xf32, #tpu.memory_space<vmem>>, vector<1x1x16x16x4xf32>
    %58 = vector.shape_cast %57 : vector<1x1x16x16x4xf32> to vector<16x16x4xf32>
    %c0_88 = arith.constant 0 : index
    %c0_89 = arith.constant 0 : index
    %c0_90 = arith.constant 0 : index
    %c0_91 = arith.constant 0 : index
    %59 = vector.load %arg7[%c0_88, %c0_89, %c0_90, %c0_91] : memref<2x16x16x16xf32, #tpu.memory_space<vmem>>, vector<1x16x16x4xf32>
    %60 = vector.shape_cast %59 : vector<1x16x16x4xf32> to vector<16x16x4xf32>
    %61 = vector.shape_cast %58 : vector<16x16x4xf32> to vector<1x16x16x4xf32>
    tpu.vector_store %arg7[%c0_88, %c0_89, %c0_90, %c0_91], %61 {strides = array<i32>} : memref<2x16x16x16xf32, #tpu.memory_space<vmem>>, vector<1x16x16x4xf32>,
    %c0_92 = arith.constant 0 : index
    %c0_93 = arith.constant 0 : index
    %c1_94 = arith.constant 1 : index
    %c1_95 = arith.constant 1 : index
    %c0_96 = arith.constant 0 : index
    %62 = vector.load %arg5[%c0_92, %c0_93, %c1_94, %c1_95, %c0_96] : memref<1x1x18x18x4xf32, #tpu.memory_space<vmem>>, vector<1x1x16x16x4xf32>
    %63 = vector.shape_cast %62 : vector<1x1x16x16x4xf32> to vector<16x16x4xf32>
    %c0_97 = arith.constant 0 : index
    %c0_98 = arith.constant 0 : index
    %c0_99 = arith.constant 0 : index
    %c4_100 = arith.constant 4 : index
    %64 = vector.load %arg7[%c0_97, %c0_98, %c0_99, %c4_100] : memref<2x16x16x16xf32, #tpu.memory_space<vmem>>, vector<1x16x16x4xf32>
    %65 = vector.shape_cast %64 : vector<1x16x16x4xf32> to vector<16x16x4xf32>
    %66 = vector.shape_cast %63 : vector<16x16x4xf32> to vector<1x16x16x4xf32>
    tpu.vector_store %arg7[%c0_97, %c0_98, %c0_99, %c4_100], %66 {strides = array<i32>} : memref<2x16x16x16xf32, #tpu.memory_space<vmem>>, vector<1x16x16x4xf32>,
    %c0_101 = arith.constant 0 : index
    %c0_102 = arith.constant 0 : index
    %c2_103 = arith.constant 2 : index
    %c0_104 = arith.constant 0 : index
    %c0_105 = arith.constant 0 : index
    %67 = vector.load %arg5[%c0_101, %c0_102, %c2_103, %c0_104, %c0_105] : memref<1x1x18x18x4xf32, #tpu.memory_space<vmem>>, vector<1x1x16x16x4xf32>
    %68 = vector.shape_cast %67 : vector<1x1x16x16x4xf32> to vector<16x16x4xf32>
    %c0_106 = arith.constant 0 : index
    %c0_107 = arith.constant 0 : index
    %c0_108 = arith.constant 0 : index
    %c8_109 = arith.constant 8 : index
    %69 = vector.load %arg7[%c0_106, %c0_107, %c0_108, %c8_109] : memref<2x16x16x16xf32, #tpu.memory_space<vmem>>, vector<1x16x16x4xf32>
    %70 = vector.shape_cast %69 : vector<1x16x16x4xf32> to vector<16x16x4xf32>
    %71 = vector.shape_cast %68 : vector<16x16x4xf32> to vector<1x16x16x4xf32>
    tpu.vector_store %arg7[%c0_106, %c0_107, %c0_108, %c8_109], %71 {strides = array<i32>} : memref<2x16x16x16xf32, #tpu.memory_space<vmem>>, vector<1x16x16x4xf32>,
    %c0_110 = arith.constant 0 : index
    %c0_111 = arith.constant 0 : index
    %c2_112 = arith.constant 2 : index
    %c1_113 = arith.constant 1 : index
    %c0_114 = arith.constant 0 : index
    %72 = vector.load %arg5[%c0_110, %c0_111, %c2_112, %c1_113, %c0_114] : memref<1x1x18x18x4xf32, #tpu.memory_space<vmem>>, vector<1x1x16x16x4xf32>
    %73 = vector.shape_cast %72 : vector<1x1x16x16x4xf32> to vector<16x16x4xf32>
    %c0_115 = arith.constant 0 : index
    %c0_116 = arith.constant 0 : index
    %c0_117 = arith.constant 0 : index
    %c12_118 = arith.constant 12 : index
    %74 = vector.load %arg7[%c0_115, %c0_116, %c0_117, %c12_118] : memref<2x16x16x16xf32, #tpu.memory_space<vmem>>, vector<1x16x16x4xf32>
    %75 = vector.shape_cast %74 : vector<1x16x16x4xf32> to vector<16x16x4xf32>
    %76 = vector.shape_cast %73 : vector<16x16x4xf32> to vector<1x16x16x4xf32>
    tpu.vector_store %arg7[%c0_115, %c0_116, %c0_117, %c12_118], %76 {strides = array<i32>} : memref<2x16x16x16xf32, #tpu.memory_space<vmem>>, vector<1x16x16x4xf32>,
    %c0_119 = arith.constant 0 : index
    %c0_120 = arith.constant 0 : index
    %c0_121 = arith.constant 0 : index
    %c0_122 = arith.constant 0 : index
    %77 = vector.load %arg7[%c0_119, %c0_120, %c0_121, %c0_122] : memref<2x16x16x16xf32, #tpu.memory_space<vmem>>, vector<1x16x16x16xf32>
    %78 = vector.shape_cast %77 : vector<1x16x16x16xf32> to vector<16x16x16xf32>
    %79 = vector.shape_cast %78 : vector<16x16x16xf32> to vector<256x16xf32>
    %c2_123 = arith.constant 2 : index
    %c0_124 = arith.constant 0 : index
    %c0_125 = arith.constant 0 : index
    %80 = vector.load %arg3[%c2_123, %c0_124, %c0_125] : memref<4x16x4xf32, #tpu.memory_space<vmem>>, vector<1x16x4xf32>
    %81 = vector.shape_cast %80 : vector<1x16x4xf32> to vector<16x4xf32>
    %cst_126 = arith.constant dense<0.000000e+00> : vector<256x4xf32>
    %82 = tpu.matmul %79, %81, %cst_126 {dimension_numbers = #tpu.dot_dimension_numbers<[1], [0], [0], [1], [0, 0, 1, 1], [], []>} : vector<256x16xf32>, vector<16x4xf32>, vector<256x4xf32> -> vector<256x4xf32>
    %83 = vector.broadcast %0 : vector<1x4xf32> to vector<256x4xf32>
    %84 = arith.addf %82, %83 : vector<256x4xf32>
    %c0_127 = arith.constant 0 : index
    %c0_128 = arith.constant 0 : index
    %c1_129 = arith.constant 1 : index
    %c1_130 = arith.constant 1 : index
    %c0_131 = arith.constant 0 : index
    %85 = vector.load %arg5[%c0_127, %c0_128, %c1_129, %c1_130, %c0_131] : memref<1x1x18x18x4xf32, #tpu.memory_space<vmem>>, vector<1x1x16x16x4xf32>
    %86 = vector.shape_cast %85 : vector<1x1x16x16x4xf32> to vector<16x16x4xf32>
    %c1_132 = arith.constant 1 : index
    %c0_133 = arith.constant 0 : index
    %c0_134 = arith.constant 0 : index
    %c0_135 = arith.constant 0 : index
    %87 = vector.load %arg7[%c1_132, %c0_133, %c0_134, %c0_135] : memref<2x16x16x16xf32, #tpu.memory_space<vmem>>, vector<1x16x16x4xf32>
    %88 = vector.shape_cast %87 : vector<1x16x16x4xf32> to vector<16x16x4xf32>
    %89 = vector.shape_cast %86 : vector<16x16x4xf32> to vector<1x16x16x4xf32>
    tpu.vector_store %arg7[%c1_132, %c0_133, %c0_134, %c0_135], %89 {strides = array<i32>} : memref<2x16x16x16xf32, #tpu.memory_space<vmem>>, vector<1x16x16x4xf32>,
    %c0_136 = arith.constant 0 : index
    %c0_137 = arith.constant 0 : index
    %c1_138 = arith.constant 1 : index
    %c2_139 = arith.constant 2 : index
    %c0_140 = arith.constant 0 : index
    %90 = vector.load %arg5[%c0_136, %c0_137, %c1_138, %c2_139, %c0_140] : memref<1x1x18x18x4xf32, #tpu.memory_space<vmem>>, vector<1x1x16x16x4xf32>
    %91 = vector.shape_cast %90 : vector<1x1x16x16x4xf32> to vector<16x16x4xf32>
    %c1_141 = arith.constant 1 : index
    %c0_142 = arith.constant 0 : index
    %c0_143 = arith.constant 0 : index
    %c4_144 = arith.constant 4 : index
    %92 = vector.load %arg7[%c1_141, %c0_142, %c0_143, %c4_144] : memref<2x16x16x16xf32, #tpu.memory_space<vmem>>, vector<1x16x16x4xf32>
    %93 = vector.shape_cast %92 : vector<1x16x16x4xf32> to vector<16x16x4xf32>
    %94 = vector.shape_cast %91 : vector<16x16x4xf32> to vector<1x16x16x4xf32>
    tpu.vector_store %arg7[%c1_141, %c0_142, %c0_143, %c4_144], %94 {strides = array<i32>} : memref<2x16x16x16xf32, #tpu.memory_space<vmem>>, vector<1x16x16x4xf32>,
    %c0_145 = arith.constant 0 : index
    %c0_146 = arith.constant 0 : index
    %c2_147 = arith.constant 2 : index
    %c1_148 = arith.constant 1 : index
    %c0_149 = arith.constant 0 : index
    %95 = vector.load %arg5[%c0_145, %c0_146, %c2_147, %c1_148, %c0_149] : memref<1x1x18x18x4xf32, #tpu.memory_space<vmem>>, vector<1x1x16x16x4xf32>
    %96 = vector.shape_cast %95 : vector<1x1x16x16x4xf32> to vector<16x16x4xf32>
    %c1_150 = arith.constant 1 : index
    %c0_151 = arith.constant 0 : index
    %c0_152 = arith.constant 0 : index
    %c8_153 = arith.constant 8 : index
    %97 = vector.load %arg7[%c1_150, %c0_151, %c0_152, %c8_153] : memref<2x16x16x16xf32, #tpu.memory_space<vmem>>, vector<1x16x16x4xf32>
    %98 = vector.shape_cast %97 : vector<1x16x16x4xf32> to vector<16x16x4xf32>
    %99 = vector.shape_cast %96 : vector<16x16x4xf32> to vector<1x16x16x4xf32>
    tpu.vector_store %arg7[%c1_150, %c0_151, %c0_152, %c8_153], %99 {strides = array<i32>} : memref<2x16x16x16xf32, #tpu.memory_space<vmem>>, vector<1x16x16x4xf32>,
    %c0_154 = arith.constant 0 : index
    %c0_155 = arith.constant 0 : index
    %c2_156 = arith.constant 2 : index
    %c2_157 = arith.constant 2 : index
    %c0_158 = arith.constant 0 : index
    %100 = vector.load %arg5[%c0_154, %c0_155, %c2_156, %c2_157, %c0_158] : memref<1x1x18x18x4xf32, #tpu.memory_space<vmem>>, vector<1x1x16x16x4xf32>
    %101 = vector.shape_cast %100 : vector<1x1x16x16x4xf32> to vector<16x16x4xf32>
    %c1_159 = arith.constant 1 : index
    %c0_160 = arith.constant 0 : index
    %c0_161 = arith.constant 0 : index
    %c12_162 = arith.constant 12 : index
    %102 = vector.load %arg7[%c1_159, %c0_160, %c0_161, %c12_162] : memref<2x16x16x16xf32, #tpu.memory_space<vmem>>, vector<1x16x16x4xf32>
    %103 = vector.shape_cast %102 : vector<1x16x16x4xf32> to vector<16x16x4xf32>
    %104 = vector.shape_cast %101 : vector<16x16x4xf32> to vector<1x16x16x4xf32>
    tpu.vector_store %arg7[%c1_159, %c0_160, %c0_161, %c12_162], %104 {strides = array<i32>} : memref<2x16x16x16xf32, #tpu.memory_space<vmem>>, vector<1x16x16x4xf32>,
    %c1_163 = arith.constant 1 : index
    %c0_164 = arith.constant 0 : index
    %c0_165 = arith.constant 0 : index
    %c0_166 = arith.constant 0 : index
    %105 = vector.load %arg7[%c1_163, %c0_164, %c0_165, %c0_166] : memref<2x16x16x16xf32, #tpu.memory_space<vmem>>, vector<1x16x16x16xf32>
    %106 = vector.shape_cast %105 : vector<1x16x16x16xf32> to vector<16x16x16xf32>
    %107 = vector.shape_cast %106 : vector<16x16x16xf32> to vector<256x16xf32>
    %c3 = arith.constant 3 : index
    %c0_167 = arith.constant 0 : index
    %c0_168 = arith.constant 0 : index
    %108 = vector.load %arg3[%c3, %c0_167, %c0_168] : memref<4x16x4xf32, #tpu.memory_space<vmem>>, vector<1x16x4xf32>
    %109 = vector.shape_cast %108 : vector<1x16x4xf32> to vector<16x4xf32>
    %cst_169 = arith.constant dense<0.000000e+00> : vector<256x4xf32>
    %110 = tpu.matmul %107, %109, %cst_169 {dimension_numbers = #tpu.dot_dimension_numbers<[1], [0], [0], [1], [0, 0, 1, 1], [], []>} : vector<256x16xf32>, vector<16x4xf32>, vector<256x4xf32> -> vector<256x4xf32>
    %111 = vector.broadcast %0 : vector<1x4xf32> to vector<256x4xf32>
    %112 = arith.addf %110, %111 : vector<256x4xf32>
    %113 = tpu.concatenate %28, %56, %84, %112 in 1 : vector<256x4xf32>, vector<256x4xf32>, vector<256x4xf32>, vector<256x4xf32> -> vector<256x16xf32>
    %c0_170 = arith.constant 0 : index
    %c0_171 = arith.constant 0 : index
    %c0_172 = arith.constant 0 : index
    %c0_173 = arith.constant 0 : index
    %114 = vector.load %arg6[%c0_170, %c0_171, %c0_172, %c0_173] : memref<1x1x256x16xf32, #tpu.memory_space<vmem>>, vector<1x1x256x16xf32>
    %115 = vector.shape_cast %114 : vector<1x1x256x16xf32> to vector<256x16xf32>
    %116 = vector.shape_cast %113 : vector<256x16xf32> to vector<1x1x256x16xf32>
    tpu.vector_store %arg6[%c0_170, %c0_171, %c0_172, %c0_173], %116 {strides = array<i32>} : memref<1x1x256x16xf32, #tpu.memory_space<vmem>>, vector<1x1x256x16xf32>,
    return
  }
  func.func @transform_0(%arg0: i32, %arg1: i32, %arg2: i32) -> (i32, i32, i32) {
    %c0_i32 = arith.constant 0 : i32
    %c0_i32_0 = arith.constant 0 : i32
    %c0_i32_1 = arith.constant 0 : i32
    return %c0_i32, %c0_i32_0, %arg2 : i32, i32, i32
  }
  func.func @transform_1(%arg0: i32, %arg1: i32, %arg2: i32) -> (i32, i32) {
    %c0_i32 = arith.constant 0 : i32
    %c0_i32_0 = arith.constant 0 : i32
    return %c0_i32, %arg2 : i32, i32
  }
  func.func @transform_2(%arg0: i32, %arg1: i32, %arg2: i32) -> (i32, i32, i32, i32, i32) {
    %c0_i32 = arith.constant 0 : i32
    %c0_i32_0 = arith.constant 0 : i32
    %c0_i32_1 = arith.constant 0 : i32
    %c0_i32_2 = arith.constant 0 : i32
    return %arg0, %arg1, %c0_i32, %c0_i32_0, %c0_i32_1 : i32, i32, i32, i32, i32
  }
  func.func @transform_3(%arg0: i32, %arg1: i32, %arg2: i32) -> (i32, i32, i32, i32) {
    %c0_i32 = arith.constant 0 : i32
    %c0_i32_0 = arith.constant 0 : i32
    return %arg0, %arg1, %c0_i32, %arg2 : i32, i32, i32, i32
  }
}

</mosaic_0001>

<llo_original>
// kernel: tpu_custom_call.1
$region0: #{tpu_custom_call.1}
  #allocation0 [shape = 'u32[]', space=smem, size = 0x4, offset = 0x4, fixed_abs, tag = 'smem constant byte address 0x4 - core index']
  #allocation1 [shape = 'u32[144,128]{1,0:T(1,128)}', space=vmem, size = 0x12000, scoped, tag = 'internal scratch']
  #allocation2 [shape = 'f32[2,16,16,16]{3,2,1,0:T(8,128)}', space=vmem, size = 0x40000, scoped, tag = 'scratch operand']
  %s0 = inlined_call_operand.vmem [shape: f32[4,16,4], index: 0, kind: input, shape index: {}]
  %s1 = inlined_call_operand.vmem [shape: f32[1,4], index: 1, kind: input, shape index: {}]
  %s2 = inlined_call_operand.vmem [shape: f32[2,1,18,18,4], index: 2, kind: input, shape index: {}]
  %s3 = inlined_call_operand.vmem [shape: f32[2,1,256,16], index: 3, kind: output, shape index: {}]
  %s4 = sld [smem:[#allocation0]]
  $region45: #{tpu_custom_call.1} parent=0
    _
  %s6 = ssub.s32 1, %s4
  %s7 = scalar_select 0, %s6, %s4
  loop: start=0, step=1, limit=4
  $region2: #{tpu_custom_call.1} parent=0 // loop_pre_header
    _
  $region3: #{tpu_custom_call.1} parent=0 // loop_header
    %s9 = sphi 0, %s13
    %p10 = scmp.ge.s32.totalorder %s9, 4
    %s16 = sphi 0, %s35
    %s17 = sphi 0, %s31
    %s18 = sphi 0, %s27
    %s19 = sphi 0, %s16
    %s20 = sphi 0, %s17
    %s21 = sphi 0, %s18
    %s22 = sphi 0, %s19
    %s23 = sphi 0, %s20
    %s24 = sphi 0, %s21
    %s38 = sphi 0, %s40
    %s41 = sphi 0, %s38
    %s42 = sphi 0, %s41
    %s58 = sphi 0, %s42
    %s64 = sphi 0, %s66
    %s67 = sphi 0, %s64
    %s68 = sphi 0, %s67
    %s84 = sphi 0, %s68
    %s92 = sphi 0, %s94
    %s95 = sphi 0, %s92
    %s96 = sphi 0, %s95
    %s112 = sphi 0, %s96
    %s122 = sphi 0, %s124
    %s125 = sphi 0, %s122
    %s126 = sphi 0, %s125
    %s142 = sphi 0, %s126
  $region4: #{tpu_custom_call.1} parent=0 // loop_header_branch
    %12 = sbr.rel (%p10) target = $region8
  $region5: #{tpu_custom_call.1} parent=0 // loop_body
    %s14 = ssub.s32 %s9, 1
    %s15 = ssub.s32 %s9, 2
    %s25 = sadd.s32 1, %s18
    %p26 = scmp.ge.s32.totalorder %s25, 1
    %s27 = scalar_select %p26, 0, %s25
    %s28 = sadd.s32 1, %s17
    %s29 = scalar_select %p26, %s28, %s17
    %p30 = scmp.ge.s32.totalorder %s29, 1
    %s31 = scalar_select %p30, 0, %s29
    %s32 = sadd.s32 1, %s16
    %s33 = scalar_select %p30, %s32, %s16
    %p34 = scmp.ge.s32.totalorder %s33, 2
    %s35 = scalar_select %p34, 0, %s33
    %s36 = ssub.s32 %s18, %s27
    %p37 = scmp.eq.s32.totalorder %s36, 0
    %s39 = sadd.s32 %s38, 1
    %s40 = scalar_select %p37, %s38, %s39
    %p43 = pneg %p37
    %p44 = scmp.eq.s32.totalorder %s9, 1
    %p45 = por %p43, %p44
    %p46 = scmp.ne.s32.totalorder %s38, %s41
    %p47 = scmp.eq.s32.totalorder %s9, 0
    %p48 = por %p46, %p47
    %p49 = scmp.ne.s32.totalorder %s38, %s41
    %p50 = scmp.eq.s32.totalorder %s14, 1
    %p51 = por %p49, %p50
    %p52 = scmp.ne.s32.totalorder %s41, %s42
    %p53 = scmp.eq.s32.totalorder %s14, 0
    %p54 = por %p52, %p53
    %p55 = scmp.ne.s32.totalorder %s41, %s42
    %p56 = scmp.eq.s32.totalorder %s15, 1
    %p57 = por %p55, %p56
    %p59 = scmp.ne.s32.totalorder %s42, %s58
    %p60 = scmp.eq.s32.totalorder %s15, 0
    %p61 = por %p59, %p60
    %s62 = ssub.s32 %s18, %s27
    %p63 = scmp.eq.s32.totalorder %s62, 0
    %s65 = sadd.s32 %s64, 1
    %s66 = scalar_select %p63, %s64, %s65
    %p69 = pneg %p63
    %p70 = scmp.eq.s32.totalorder %s9, 1
    %p71 = por %p69, %p70
    %p72 = scmp.ne.s32.totalorder %s64, %s67
    %p73 = scmp.eq.s32.totalorder %s9, 0
    %p74 = por %p72, %p73
    %p75 = scmp.ne.s32.totalorder %s64, %s67
    %p76 = scmp.eq.s32.totalorder %s14, 1
    %p77 = por %p75, %p76
    %p78 = scmp.ne.s32.totalorder %s67, %s68
    %p79 = scmp.eq.s32.totalorder %s14, 0
    %p80 = por %p78, %p79
    %p81 = scmp.ne.s32.totalorder %s67, %s68
    %p82 = scmp.eq.s32.totalorder %s15, 1
    %p83 = por %p81, %p82
    %p85 = scmp.ne.s32.totalorder %s68, %s84
    %p86 = scmp.eq.s32.totalorder %s15, 0
    %p87 = por %p85, %p86
    %s88 = ssub.s32 %s16, %s35
    %s89 = ssub.s32 %s17, %s31
    %s90 = sor.u32 %s88, %s89
    %p91 = scmp.eq.s32.totalorder %s90, 0
    %s93 = sadd.s32 %s92, 1
    %s94 = scalar_select %p91, %s92, %s93
    %p97 = pneg %p91
    %p98 = scmp.eq.s32.totalorder %s9, 1
    %p99 = por %p97, %p98
    %p100 = scmp.ne.s32.totalorder %s92, %s95
    %p101 = scmp.eq.s32.totalorder %s9, 0
    %p102 = por %p100, %p101
    %p103 = scmp.ne.s32.totalorder %s92, %s95
    %p104 = scmp.eq.s32.totalorder %s14, 1
    %p105 = por %p103, %p104
    %p106 = scmp.ne.s32.totalorder %s95, %s96
    %p107 = scmp.eq.s32.totalorder %s14, 0
    %p108 = por %p106, %p107
    %p109 = scmp.ne.s32.totalorder %s95, %s96
    %p110 = scmp.eq.s32.totalorder %s15, 1
    %p111 = por %p109, %p110
    %p113 = scmp.ne.s32.totalorder %s96, %s112
    %p114 = scmp.eq.s32.totalorder %s15, 0
    %p115 = por %p113, %p114
    %s116 = ssub.s32 %s16, %s35
    %s117 = ssub.s32 %s17, %s31
    %s118 = sor.u32 %s116, %s117
    %s119 = ssub.s32 %s18, %s27
    %s120 = sor.u32 %s118, %s119
    %p121 = scmp.eq.s32.totalorder %s120, 0
    %s123 = sadd.s32 %s122, 1
    %s124 = scalar_select %p121, %s122, %s123
    %p127 = pneg %p121
    %p128 = scmp.eq.s32.totalorder %s9, 1
    %p129 = por %p127, %p128
    %p130 = scmp.ne.s32.totalorder %s122, %s125
    %p131 = scmp.eq.s32.totalorder %s9, 0
    %p132 = por %p130, %p131
    %p133 = scmp.ne.s32.totalorder %s122, %s125
    %p134 = scmp.eq.s32.totalorder %s14, 1
    %p135 = por %p133, %p134
    %p136 = scmp.ne.s32.totalorder %s125, %s126
    %p137 = scmp.eq.s32.totalorder %s14, 0
    %p138 = por %p136, %p137
    %p139 = scmp.ne.s32.totalorder %s125, %s126
    %p140 = scmp.eq.s32.totalorder %s15, 1
    %p141 = por %p139, %p140
    %p143 = scmp.ne.s32.totalorder %s126, %s142
    %p144 = scmp.eq.s32.totalorder %s15, 0
    %p145 = por %p143, %p144
    %p146 = scmp.le.s32.totalorder 1, %s9
    %p147 = scmp.lt.s32.totalorder %s9, 3
    %p148 = pnand %p146, %p147
    %p149 = pneg %p148
    // Predicated region
    $region9: #{tpu_custom_call.1} parent=5 // pred_check
      _
    $region10: #{tpu_custom_call.1} parent=5 // pred_check_branch
      %151 = sbr.rel (%p148) target = $region12
    $region11: #{tpu_custom_call.1} parent=5 // pred_region
      %s152 = ssub.s32 %s9, 1
      // Predicated region
      $region13: #{tpu_custom_call.1} parent=11 // pred_check
        %p153 = pneg %p54
      $region14: #{tpu_custom_call.1} parent=11 // pred_check_branch
        %155 = sbr.rel (%p153) target = $region16
      $region15: #{tpu_custom_call.1} parent=11 // pred_region
        %p156 = scmp.lt.s32.totalorder %s21, 0
        %s157 = scalar_select %p156, %s21, 0
        %s158 = smul.addr %s157, 8
        %s159 = scalar_lea.vmem %s0, %s158
      $region16: #{tpu_custom_call.1} parent=11 // pred_fallthru
        _
      // Predicated region
      $region17: #{tpu_custom_call.1} parent=11 // pred_check
        %p160 = pneg %p80
      $region18: #{tpu_custom_call.1} parent=11 // pred_check_branch
        %162 = sbr.rel (%p160) target = $region20
      $region19: #{tpu_custom_call.1} parent=11 // pred_region
        %p163 = scmp.lt.s32.totalorder %s21, 0
        %s164 = scalar_select %p163, %s21, 0
        %s165 = scalar_lea.vmem %s1, %s164
      $region20: #{tpu_custom_call.1} parent=11 // pred_fallthru
        _
    $region12: #{tpu_custom_call.1} parent=5 // pred_fallthru
      _
    %p166 = scmp.lt.s32.totalorder %s9, 2
    // Predicated region
    $region21: #{tpu_custom_call.1} parent=5 // pred_check
      %p167 = pneg %p166
    $region22: #{tpu_custom_call.1} parent=5 // pred_check_branch
      %169 = sbr.rel (%p167) target = $region24
    $region23: #{tpu_custom_call.1} parent=5 // pred_region
      // Predicated region
      $region25: #{tpu_custom_call.1} parent=23 // pred_check
        %p170 = pneg %p102
      $region26: #{tpu_custom_call.1} parent=23 // pred_check_branch
        %172 = sbr.rel (%p170) target = $region28
      $region27: #{tpu_custom_call.1} parent=23 // pred_region
        %p173 = scmp.lt.s32.totalorder %s16, 1
        %s174 = scalar_select %p173, %s16, 1
        %p175 = scmp.lt.s32.totalorder %s17, 0
        %s176 = scalar_select %p175, %s17, 0
        %s177 = smul.addr %s176, 54
        %s178 = smul.addr %s174, 54
        %s179 = sadd.s32 %s177, %s178
        %s180 = smul.addr %s179, 8
        %s181 = scalar_lea.vmem %s2, %s180
      $region28: #{tpu_custom_call.1} parent=23 // pred_fallthru
        _
    $region24: #{tpu_custom_call.1} parent=5 // pred_fallthru
      _
    %p182 = scmp.le.s32.totalorder 1, %s9
    %p183 = scmp.lt.s32.totalorder %s9, 3
    %p184 = pnand %p182, %p183
    %p185 = pneg %p184
    // Predicated region
    $region29: #{tpu_custom_call.1} parent=5 // pred_check
      _
    $region30: #{tpu_custom_call.1} parent=5 // pred_check_branch
      %187 = sbr.rel (%p184) target = $region32
    $region31: #{tpu_custom_call.1} parent=5 // pred_region
      %s188 = ssub.s32 %s9, 1
      %p189 = scmp.lt.s32.totalorder %s21, 0
      %s190 = scalar_select %p189, %s21, 0
      %s191 = smul.addr %s190, 8
      %s192 = scalar_lea.vmem %s0, %s191
      %p193 = pneg %p54
      %p194 = pneg %p51
      %p195 = scmp.lt.s32.totalorder %s21, 0
      %s196 = scalar_select %p195, %s21, 0
      %s197 = scalar_lea.vmem %s1, %s196
      %p198 = pneg %p80
      %p199 = pneg %p77
      %p200 = scmp.lt.s32.totalorder %s19, 1
      %s201 = scalar_select %p200, %s19, 1
      %p202 = scmp.lt.s32.totalorder %s20, 0
      %s203 = scalar_select %p202, %s20, 0
      %s204 = smul.addr %s203, 54
      %s205 = smul.addr %s201, 54
      %s206 = sadd.s32 %s204, %s205
      %s207 = smul.addr %s206, 8
      %s208 = scalar_lea.vmem %s2, %s207
      %p209 = pneg %p108
      %p210 = pneg %p105
      %p211 = pneg %p138
      %p212 = pneg %p135
      %p213 = scmp.lt.s32.totalorder %s19, 1
      %s214 = scalar_select %p213, %s19, 1
      %p215 = scmp.lt.s32.totalorder %s20, 0
      %s216 = scalar_select %p215, %s20, 0
      %p217 = scmp.lt.s32.totalorder %s21, 0
      %s218 = scalar_select %p217, %s21, 0
      %s219 = smul.addr %s216, 32
      %s220 = sadd.s32 %s218, %s219
      %s221 = smul.addr %s214, 32
      %s222 = sadd.s32 %s220, %s221
      %s223 = smul.addr %s222, 8
      %s224 = scalar_lea.vmem %s3, %s223
      %p225 = scmp.lt.s32.totalorder %s21, 0
      %s226 = scalar_select %p225, %s21, 0
      %s227 = smul.addr %s226, 8
      %s228 = scalar_lea.vmem %s0, %s227
      %p229 = scmp.lt.s32.totalorder %s21, 0
      %s230 = scalar_select %p229, %s21, 0
      %s231 = scalar_lea.vmem %s1, %s230
      %p232 = scmp.lt.s32.totalorder %s19, 1
      %s233 = scalar_select %p232, %s19, 1
      %p234 = scmp.lt.s32.totalorder %s20, 0
      %s235 = scalar_select %p234, %s20, 0
      %s236 = smul.addr %s235, 54
      %s237 = smul.addr %s233, 54
      %s238 = sadd.s32 %s236, %s237
      %s239 = smul.addr %s238, 8
      %s240 = scalar_lea.vmem %s2, %s239
      %p241 = scmp.lt.s32.totalorder %s19, 1
      %s242 = scalar_select %p241, %s19, 1
      %p243 = scmp.lt.s32.totalorder %s20, 0
      %s244 = scalar_select %p243, %s20, 0
      %p245 = scmp.lt.s32.totalorder %s21, 0
      %s246 = scalar_select %p245, %s21, 0
      %s247 = smul.addr %s244, 32
      %s248 = sadd.s32 %s246, %s247
      %s249 = smul.addr %s242, 32
      %s250 = sadd.s32 %s248, %s249
      %s251 = smul.addr %s250, 8
      %s252 = scalar_lea.vmem %s3, %s251
      %v253 = vld [vmem:[%s231] sm:$0x1]
      %v254 = vld [vmem:[%s240] sm:$0xff]
      %v255 = vld [vmem:[%s240 + $0x8] sm:$0xff]
      %v256 = vld [vmem:[%s240 + $0x18] sm:$0xff]
      %v257 = vld [vmem:[%s240 + $0x20] sm:$0xff]
      %v258 = vld [vmem:[%s240 + $0x30] sm:$0xff]
      %v259 = vld [vmem:[%s240 + $0x38] sm:$0xff]
      %v260 = vld [vmem:[%s240 + $0x48] sm:$0xff]
      %v261 = vld [vmem:[%s240 + $0x50] sm:$0xff]
      %v262 = vld [vmem:[%s240 + $0x60] sm:$0xff]
      %v263 = vld [vmem:[%s240 + $0x68] sm:$0xff]
      %v264 = vld [vmem:[%s240 + $0x78] sm:$0xff]
      %v265 = vld [vmem:[%s240 + $0x80] sm:$0xff]
      %v266 = vld [vmem:[%s240 + $0x90] sm:$0xff]
      %v267 = vld [vmem:[%s240 + $0x98] sm:$0xff]
      %v268 = vld [vmem:[%s240 + $0xa8] sm:$0xff]
      %v269 = vld [vmem:[%s240 + $0xb0] sm:$0xff]
      %v270 = vld [vmem:[%s240 + $0xc0] sm:$0xff]
      %v271 = vld [vmem:[%s240 + $0xc8] sm:$0xff]
      %v272 = vld [vmem:[%s240 + $0xd8] sm:$0xff]
      %v273 = vld [vmem:[%s240 + $0xe0] sm:$0xff]
      %v274 = vld [vmem:[%s240 + $0xf0] sm:$0xff]
      %v275 = vld [vmem:[%s240 + $0xf8] sm:$0xff]
      %v276 = vld [vmem:[%s240 + $0x108] sm:$0xff]
      %v277 = vld [vmem:[%s240 + $0x110] sm:$0xff]
      %v278 = vld [vmem:[%s240 + $0x120] sm:$0xff]
      %v279 = vld [vmem:[%s240 + $0x128] sm:$0xff]
      %v280 = vld [vmem:[%s240 + $0x138] sm:$0xff]
      %v281 = vld [vmem:[%s240 + $0x140] sm:$0xff]
      %v282 = vld [vmem:[%s240 + $0x150] sm:$0xff]
      %v283 = vld [vmem:[%s240 + $0x158] sm:$0xff]
      %v284 = vld [vmem:[%s240 + $0x168] sm:$0xff]
      %v285 = vld [vmem:[%s240 + $0x170] sm:$0xff]
      %vm286 = vcmask 31744
      %287 = vst.msk [vmem:[#allocation2] sm:$0xff] %vm286, %v254
      %288 = vst.msk [vmem:[#allocation2 + $0x8] sm:$0xff] %vm286, %v255
      %289 = vst.msk [vmem:[#allocation2 + $0x10] sm:$0xff] %vm286, %v256
      %290 = vst.msk [vmem:[#allocation2 + $0x18] sm:$0xff] %vm286, %v257
      %291 = vst.msk [vmem:[#allocation2 + $0x20] sm:$0xff] %vm286, %v258
      %292 = vst.msk [vmem:[#allocation2 + $0x28] sm:$0xff] %vm286, %v259
      %293 = vst.msk [vmem:[#allocation2 + $0x30] sm:$0xff] %vm286, %v260
      %294 = vst.msk [vmem:[#allocation2 + $0x38] sm:$0xff] %vm286, %v261
      %295 = vst.msk [vmem:[#allocation2 + $0x40] sm:$0xff] %vm286, %v262
      %296 = vst.msk [vmem:[#allocation2 + $0x48] sm:$0xff] %vm286, %v263
      %297 = vst.msk [vmem:[#allocation2 + $0x50] sm:$0xff] %vm286, %v264
      %298 = vst.msk [vmem:[#allocation2 + $0x58] sm:$0xff] %vm286, %v265
      %299 = vst.msk [vmem:[#allocation2 + $0x60] sm:$0xff] %vm286, %v266
      %300 = vst.msk [vmem:[#allocation2 + $0x68] sm:$0xff] %vm286, %v267
      %301 = vst.msk [vmem:[#allocation2 + $0x70] sm:$0xff] %vm286, %v268
      %302 = vst.msk [vmem:[#allocation2 + $0x78] sm:$0xff] %vm286, %v269
      %303 = vst.msk [vmem:[#allocation2 + $0x80] sm:$0xff] %vm286, %v270
      %304 = vst.msk [vmem:[#allocation2 + $0x88] sm:$0xff] %vm286, %v271
      %305 = vst.msk [vmem:[#allocation2 + $0x90] sm:$0xff] %vm286, %v272
      %306 = vst.msk [vmem:[#allocation2 + $0x98] sm:$0xff] %vm286, %v273
      %307 = vst.msk [vmem:[#allocation2 + $0xa0] sm:$0xff] %vm286, %v274
      %308 = vst.msk [vmem:[#allocation2 + $0xa8] sm:$0xff] %vm286, %v275
      %309 = vst.msk [vmem:[#allocation2 + $0xb0] sm:$0xff] %vm286, %v276
      %310 = vst.msk [vmem:[#allocation2 + $0xb8] sm:$0xff] %vm286, %v277
      %311 = vst.msk [vmem:[#allocation2 + $0xc0] sm:$0xff] %vm286, %v278
      %312 = vst.msk [vmem:[#allocation2 + $0xc8] sm:$0xff] %vm286, %v279
      %313 = vst.msk [vmem:[#allocation2 + $0xd0] sm:$0xff] %vm286, %v280
      %314 = vst.msk [vmem:[#allocation2 + $0xd8] sm:$0xff] %vm286, %v281
      %315 = vst.msk [vmem:[#allocation2 + $0xe0] sm:$0xff] %vm286, %v282
      %316 = vst.msk [vmem:[#allocation2 + $0xe8] sm:$0xff] %vm286, %v283
      %317 = vst.msk [vmem:[#allocation2 + $0xf0] sm:$0xff] %vm286, %v284
      %318 = vst.msk [vmem:[#allocation2 + $0xf8] sm:$0xff] %vm286, %v285
      %v319 = vld [vmem:[%s240 + $0x1] sm:$0xff]
      %v320 = vld [vmem:[%s240 + $0x9] sm:$0xff]
      %v321 = vld [vmem:[%s240 + $0x19] sm:$0xff]
      %v322 = vld [vmem:[%s240 + $0x21] sm:$0xff]
      %v323 = vld [vmem:[%s240 + $0x31] sm:$0xff]
      %v324 = vld [vmem:[%s240 + $0x39] sm:$0xff]
      %v325 = vld [vmem:[%s240 + $0x49] sm:$0xff]
      %v326 = vld [vmem:[%s240 + $0x51] sm:$0xff]
      %v327 = vld [vmem:[%s240 + $0x61] sm:$0xff]
      %v328 = vld [vmem:[%s240 + $0x69] sm:$0xff]
      %v329 = vld [vmem:[%s240 + $0x79] sm:$0xff]
      %v330 = vld [vmem:[%s240 + $0x81] sm:$0xff]
      %v331 = vld [vmem:[%s240 + $0x91] sm:$0xff]
      %v332 = vld [vmem:[%s240 + $0x99] sm:$0xff]
      %v333 = vld [vmem:[%s240 + $0xa9] sm:$0xff]
      %v334 = vld [vmem:[%s240 + $0xb1] sm:$0xff]
      %v335 = vld [vmem:[%s240 + $0xc1] sm:$0xff]
      %v336 = vld [vmem:[%s240 + $0xc9] sm:$0xff]
      %v337 = vld [vmem:[%s240 + $0xd9] sm:$0xff]
      %v338 = vld [vmem:[%s240 + $0xe1] sm:$0xff]
      %v339 = vld [vmem:[%s240 + $0xf1] sm:$0xff]
      %v340 = vld [vmem:[%s240 + $0xf9] sm:$0xff]
      %v341 = vld [vmem:[%s240 + $0x109] sm:$0xff]
      %v342 = vld [vmem:[%s240 + $0x111] sm:$0xff]
      %v343 = vld [vmem:[%s240 + $0x121] sm:$0xff]
      %v344 = vld [vmem:[%s240 + $0x129] sm:$0xff]
      %v345 = vld [vmem:[%s240 + $0x139] sm:$0xff]
      %v346 = vld [vmem:[%s240 + $0x141] sm:$0xff]
      %v347 = vld [vmem:[%s240 + $0x151] sm:$0xff]
      %v348 = vld [vmem:[%s240 + $0x159] sm:$0xff]
      %v349 = vld [vmem:[%s240 + $0x169] sm:$0xff]
      %v350 = vld [vmem:[%s240 + $0x171] sm:$0xff]
      %383 = vrot.lane.b32.xlu0 %v319, 4
      %v384 = vpop.permute.xlu0 %383
      %385 = vrot.lane.b32.xlu0 %v320, 4
      %v386 = vpop.permute.xlu0 %385
      %387 = vrot.lane.b32.xlu0 %v321, 4
      %v388 = vpop.permute.xlu0 %387
      %389 = vrot.lane.b32.xlu0 %v322, 4
      %v390 = vpop.permute.xlu0 %389
      %391 = vrot.lane.b32.xlu0 %v323, 4
      %v392 = vpop.permute.xlu0 %391
      %393 = vrot.lane.b32.xlu0 %v324, 4
      %v394 = vpop.permute.xlu0 %393
      %395 = vrot.lane.b32.xlu0 %v325, 4
      %v396 = vpop.permute.xlu0 %395
      %397 = vrot.lane.b32.xlu0 %v326, 4
      %v398 = vpop.permute.xlu0 %397
      %399 = vrot.lane.b32.xlu0 %v327, 4
      %v400 = vpop.permute.xlu0 %399
      %401 = vrot.lane.b32.xlu0 %v328, 4
      %v402 = vpop.permute.xlu0 %401
      %403 = vrot.lane.b32.xlu0 %v329, 4
      %v404 = vpop.permute.xlu0 %403
      %405 = vrot.lane.b32.xlu0 %v330, 4
      %v406 = vpop.permute.xlu0 %405
      %407 = vrot.lane.b32.xlu0 %v331, 4
      %v408 = vpop.permute.xlu0 %407
      %409 = vrot.lane.b32.xlu0 %v332, 4
      %v410 = vpop.permute.xlu0 %409
      %411 = vrot.lane.b32.xlu0 %v333, 4
      %v412 = vpop.permute.xlu0 %411
      %413 = vrot.lane.b32.xlu0 %v334, 4
      %v414 = vpop.permute.xlu0 %413
      %415 = vrot.lane.b32.xlu0 %v335, 4
      %v416 = vpop.permute.xlu0 %415
      %417 = vrot.lane.b32.xlu0 %v336, 4
      %v418 = vpop.permute.xlu0 %417
      %419 = vrot.lane.b32.xlu0 %v337, 4
      %v420 = vpop.permute.xlu0 %419
      %421 = vrot.lane.b32.xlu0 %v338, 4
      %v422 = vpop.permute.xlu0 %421
      %423 = vrot.lane.b32.xlu0 %v339, 4
      %v424 = vpop.permute.xlu0 %423
      %425 = vrot.lane.b32.xlu0 %v340, 4
      %v426 = vpop.permute.xlu0 %425
      %427 = vrot.lane.b32.xlu0 %v341, 4
      %v428 = vpop.permute.xlu0 %427
      %429 = vrot.lane.b32.xlu0 %v342, 4
      %v430 = vpop.permute.xlu0 %429
      %431 = vrot.lane.b32.xlu0 %v343, 4
      %v432 = vpop.permute.xlu0 %431
      %433 = vrot.lane.b32.xlu0 %v344, 4
      %v434 = vpop.permute.xlu0 %433
      %435 = vrot.lane.b32.xlu0 %v345, 4
      %v436 = vpop.permute.xlu0 %435
      %437 = vrot.lane.b32.xlu0 %v346, 4
      %v438 = vpop.permute.xlu0 %437
      %439 = vrot.lane.b32.xlu0 %v347, 4
      %v440 = vpop.permute.xlu0 %439
      %441 = vrot.lane.b32.xlu0 %v348, 4
      %v442 = vpop.permute.xlu0 %441
      %443 = vrot.lane.b32.xlu0 %v349, 4
      %v444 = vpop.permute.xlu0 %443
      %445 = vrot.lane.b32.xlu0 %v350, 4
      %v446 = vpop.permute.xlu0 %445
      %vm479 = vcmask 64544
      %480 = vst.msk [vmem:[#allocation2] sm:$0xff] %vm479, %v384
      %481 = vst.msk [vmem:[#allocation2 + $0x8] sm:$0xff] %vm479, %v386
      %482 = vst.msk [vmem:[#allocation2 + $0x10] sm:$0xff] %vm479, %v388
      %483 = vst.msk [vmem:[#allocation2 + $0x18] sm:$0xff] %vm479, %v390
      %484 = vst.msk [vmem:[#allocation2 + $0x20] sm:$0xff] %vm479, %v392
      %485 = vst.msk [vmem:[#allocation2 + $0x28] sm:$0xff] %vm479, %v394
      %486 = vst.msk [vmem:[#allocation2 + $0x30] sm:$0xff] %vm479, %v396
      %487 = vst.msk [vmem:[#allocation2 + $0x38] sm:$0xff] %vm479, %v398
      %488 = vst.msk [vmem:[#allocation2 + $0x40] sm:$0xff] %vm479, %v400
      %489 = vst.msk [vmem:[#allocation2 + $0x48] sm:$0xff] %vm479, %v402
      %490 = vst.msk [vmem:[#allocation2 + $0x50] sm:$0xff] %vm479, %v404
      %491 = vst.msk [vmem:[#allocation2 + $0x58] sm:$0xff] %vm479, %v406
      %492 = vst.msk [vmem:[#allocation2 + $0x60] sm:$0xff] %vm479, %v408
      %493 = vst.msk [vmem:[#allocation2 + $0x68] sm:$0xff] %vm479, %v410
      %494 = vst.msk [vmem:[#allocation2 + $0x70] sm:$0xff] %vm479, %v412
      %495 = vst.msk [vmem:[#allocation2 + $0x78] sm:$0xff] %vm479, %v414
      %496 = vst.msk [vmem:[#allocation2 + $0x80] sm:$0xff] %vm479, %v416
      %497 = vst.msk [vmem:[#allocation2 + $0x88] sm:$0xff] %vm479, %v418
      %498 = vst.msk [vmem:[#allocation2 + $0x90] sm:$0xff] %vm479, %v420
      %499 = vst.msk [vmem:[#allocation2 + $0x98] sm:$0xff] %vm479, %v422
      %500 = vst.msk [vmem:[#allocation2 + $0xa0] sm:$0xff] %vm479, %v424
      %501 = vst.msk [vmem:[#allocation2 + $0xa8] sm:$0xff] %vm479, %v426
      %502 = vst.msk [vmem:[#allocation2 + $0xb0] sm:$0xff] %vm479, %v428
      %503 = vst.msk [vmem:[#allocation2 + $0xb8] sm:$0xff] %vm479, %v430
      %504 = vst.msk [vmem:[#allocation2 + $0xc0] sm:$0xff] %vm479, %v432
      %505 = vst.msk [vmem:[#allocation2 + $0xc8] sm:$0xff] %vm479, %v434
      %506 = vst.msk [vmem:[#allocation2 + $0xd0] sm:$0xff] %vm479, %v436
      %507 = vst.msk [vmem:[#allocation2 + $0xd8] sm:$0xff] %vm479, %v438
      %508 = vst.msk [vmem:[#allocation2 + $0xe0] sm:$0xff] %vm479, %v440
      %509 = vst.msk [vmem:[#allocation2 + $0xe8] sm:$0xff] %vm479, %v442
      %510 = vst.msk [vmem:[#allocation2 + $0xf0] sm:$0xff] %vm479, %v444
      %511 = vst.msk [vmem:[#allocation2 + $0xf8] sm:$0xff] %vm479, %v446
      %s512 = scalar_lea.vmem %s240, 24
      %v513 = vld [vmem:[%s512] sm:$0xff]
      %v514 = vld [vmem:[%s512 + $0x8] sm:$0xff]
      %v515 = vld [vmem:[%s512 + $0x18] sm:$0xff]
      %v516 = vld [vmem:[%s512 + $0x20] sm:$0xff]
      %v517 = vld [vmem:[%s512 + $0x30] sm:$0xff]
      %v518 = vld [vmem:[%s512 + $0x38] sm:$0xff]
      %v519 = vld [vmem:[%s512 + $0x48] sm:$0xff]
      %v520 = vld [vmem:[%s512 + $0x50] sm:$0xff]
      %v521 = vld [vmem:[%s512 + $0x60] sm:$0xff]
      %v522 = vld [vmem:[%s512 + $0x68] sm:$0xff]
      %v523 = vld [vmem:[%s512 + $0x78] sm:$0xff]
      %v524 = vld [vmem:[%s512 + $0x80] sm:$0xff]
      %v525 = vld [vmem:[%s512 + $0x90] sm:$0xff]
      %v526 = vld [vmem:[%s512 + $0x98] sm:$0xff]
      %v527 = vld [vmem:[%s512 + $0xa8] sm:$0xff]
      %v528 = vld [vmem:[%s512 + $0xb0] sm:$0xff]
      %v529 = vld [vmem:[%s512 + $0xc0] sm:$0xff]
      %v530 = vld [vmem:[%s512 + $0xc8] sm:$0xff]
      %v531 = vld [vmem:[%s512 + $0xd8] sm:$0xff]
      %v532 = vld [vmem:[%s512 + $0xe0] sm:$0xff]
      %v533 = vld [vmem:[%s512 + $0xf0] sm:$0xff]
      %v534 = vld [vmem:[%s512 + $0xf8] sm:$0xff]
      %v535 = vld [vmem:[%s512 + $0x108] sm:$0xff]
      %v536 = vld [vmem:[%s512 + $0x110] sm:$0xff]
      %v537 = vld [vmem:[%s512 + $0x120] sm:$0xff]
      %v538 = vld [vmem:[%s512 + $0x128] sm:$0xff]
      %v539 = vld [vmem:[%s512 + $0x138] sm:$0xff]
      %v540 = vld [vmem:[%s512 + $0x140] sm:$0xff]
      %v541 = vld [vmem:[%s512 + $0x150] sm:$0xff]
      %v542 = vld [vmem:[%s512 + $0x158] sm:$0xff]
      %v543 = vld [vmem:[%s512 + $0x168] sm:$0xff]
      %v544 = vld [vmem:[%s512 + $0x170] sm:$0xff]
      %577 = vrot.lane.b32.xlu0 %v513, 8
      %v578 = vpop.permute.xlu0 %577
      %579 = vrot.lane.b32.xlu0 %v514, 8
      %v580 = vpop.permute.xlu0 %579
      %581 = vrot.lane.b32.xlu0 %v515, 8
      %v582 = vpop.permute.xlu0 %581
      %583 = vrot.lane.b32.xlu0 %v516, 8
      %v584 = vpop.permute.xlu0 %583
      %585 = vrot.lane.b32.xlu0 %v517, 8
      %v586 = vpop.permute.xlu0 %585
      %587 = vrot.lane.b32.xlu0 %v518, 8
      %v588 = vpop.permute.xlu0 %587
      %589 = vrot.lane.b32.xlu0 %v519, 8
      %v590 = vpop.permute.xlu0 %589
      %591 = vrot.lane.b32.xlu0 %v520, 8
      %v592 = vpop.permute.xlu0 %591
      %593 = vrot.lane.b32.xlu0 %v521, 8
      %v594 = vpop.permute.xlu0 %593
      %595 = vrot.lane.b32.xlu0 %v522, 8
      %v596 = vpop.permute.xlu0 %595
      %597 = vrot.lane.b32.xlu0 %v523, 8
      %v598 = vpop.permute.xlu0 %597
      %599 = vrot.lane.b32.xlu0 %v524, 8
      %v600 = vpop.permute.xlu0 %599
      %601 = vrot.lane.b32.xlu0 %v525, 8
      %v602 = vpop.permute.xlu0 %601
      %603 = vrot.lane.b32.xlu0 %v526, 8
      %v604 = vpop.permute.xlu0 %603
      %605 = vrot.lane.b32.xlu0 %v527, 8
      %v606 = vpop.permute.xlu0 %605
      %607 = vrot.lane.b32.xlu0 %v528, 8
      %v608 = vpop.permute.xlu0 %607
      %609 = vrot.lane.b32.xlu0 %v529, 8
      %v610 = vpop.permute.xlu0 %609
      %611 = vrot.lane.b32.xlu0 %v530, 8
      %v612 = vpop.permute.xlu0 %611
      %613 = vrot.lane.b32.xlu0 %v531, 8
      %v614 = vpop.permute.xlu0 %613
      %615 = vrot.lane.b32.xlu0 %v532, 8
      %v616 = vpop.permute.xlu0 %615
      %617 = vrot.lane.b32.xlu0 %v533, 8
      %v618 = vpop.permute.xlu0 %617
      %619 = vrot.lane.b32.xlu0 %v534, 8
      %v620 = vpop.permute.xlu0 %619
      %621 = vrot.lane.b32.xlu0 %v535, 8
      %v622 = vpop.permute.xlu0 %621
      %623 = vrot.lane.b32.xlu0 %v536, 8
      %v624 = vpop.permute.xlu0 %623
      %625 = vrot.lane.b32.xlu0 %v537, 8
      %v626 = vpop.permute.xlu0 %625
      %627 = vrot.lane.b32.xlu0 %v538, 8
      %v628 = vpop.permute.xlu0 %627
      %629 = vrot.lane.b32.xlu0 %v539, 8
      %v630 = vpop.permute.xlu0 %629
      %631 = vrot.lane.b32.xlu0 %v540, 8
      %v632 = vpop.permute.xlu0 %631
      %633 = vrot.lane.b32.xlu0 %v541, 8
      %v634 = vpop.permute.xlu0 %633
      %635 = vrot.lane.b32.xlu0 %v542, 8
      %v636 = vpop.permute.xlu0 %635
      %637 = vrot.lane.b32.xlu0 %v543, 8
      %v638 = vpop.permute.xlu0 %637
      %639 = vrot.lane.b32.xlu0 %v544, 8
      %v640 = vpop.permute.xlu0 %639
      %vm673 = vcmask 97344
      %674 = vst.msk [vmem:[#allocation2] sm:$0xff] %vm673, %v578
      %675 = vst.msk [vmem:[#allocation2 + $0x8] sm:$0xff] %vm673, %v580
      %676 = vst.msk [vmem:[#allocation2 + $0x10] sm:$0xff] %vm673, %v582
      %677 = vst.msk [vmem:[#allocation2 + $0x18] sm:$0xff] %vm673, %v584
      %678 = vst.msk [vmem:[#allocation2 + $0x20] sm:$0xff] %vm673, %v586
      %679 = vst.msk [vmem:[#allocation2 + $0x28] sm:$0xff] %vm673, %v588
      %680 = vst.msk [vmem:[#allocation2 + $0x30] sm:$0xff] %vm673, %v590
      %681 = vst.msk [vmem:[#allocation2 + $0x38] sm:$0xff] %vm673, %v592
      %682 = vst.msk [vmem:[#allocation2 + $0x40] sm:$0xff] %vm673, %v594
      %683 = vst.msk [vmem:[#allocation2 + $0x48] sm:$0xff] %vm673, %v596
      %684 = vst.msk [vmem:[#allocation2 + $0x50] sm:$0xff] %vm673, %v598
      %685 = vst.msk [vmem:[#allocation2 + $0x58] sm:$0xff] %vm673, %v600
      %686 = vst.msk [vmem:[#allocation2 + $0x60] sm:$0xff] %vm673, %v602
      %687 = vst.msk [vmem:[#allocation2 + $0x68] sm:$0xff] %vm673, %v604
      %688 = vst.msk [vmem:[#allocation2 + $0x70] sm:$0xff] %vm673, %v606
      %689 = vst.msk [vmem:[#allocation2 + $0x78] sm:$0xff] %vm673, %v608
      %690 = vst.msk [vmem:[#allocation2 + $0x80] sm:$0xff] %vm673, %v610
      %691 = vst.msk [vmem:[#allocation2 + $0x88] sm:$0xff] %vm673, %v612
      %692 = vst.msk [vmem:[#allocation2 + $0x90] sm:$0xff] %vm673, %v614
      %693 = vst.msk [vmem:[#allocation2 + $0x98] sm:$0xff] %vm673, %v616
      %694 = vst.msk [vmem:[#allocation2 + $0xa0] sm:$0xff] %vm673, %v618
      %695 = vst.msk [vmem:[#allocation2 + $0xa8] sm:$0xff] %vm673, %v620
      %696 = vst.msk [vmem:[#allocation2 + $0xb0] sm:$0xff] %vm673, %v622
      %697 = vst.msk [vmem:[#allocation2 + $0xb8] sm:$0xff] %vm673, %v624
      %698 = vst.msk [vmem:[#allocation2 + $0xc0] sm:$0xff] %vm673, %v626
      %699 = vst.msk [vmem:[#allocation2 + $0xc8] sm:$0xff] %vm673, %v628
      %700 = vst.msk [vmem:[#allocation2 + $0xd0] sm:$0xff] %vm673, %v630
      %701 = vst.msk [vmem:[#allocation2 + $0xd8] sm:$0xff] %vm673, %v632
      %702 = vst.msk [vmem:[#allocation2 + $0xe0] sm:$0xff] %vm673, %v634
      %703 = vst.msk [vmem:[#allocation2 + $0xe8] sm:$0xff] %vm673, %v636
      %704 = vst.msk [vmem:[#allocation2 + $0xf0] sm:$0xff] %vm673, %v638
      %705 = vst.msk [vmem:[#allocation2 + $0xf8] sm:$0xff] %vm673, %v640
      %v706 = vld [vmem:[%s512 + $0x1] sm:$0xff]
      %v707 = vld [vmem:[%s512 + $0x9] sm:$0xff]
      %v708 = vld [vmem:[%s512 + $0x19] sm:$0xff]
      %v709 = vld [vmem:[%s512 + $0x21] sm:$0xff]
      %v710 = vld [vmem:[%s512 + $0x31] sm:$0xff]
      %v711 = vld [vmem:[%s512 + $0x39] sm:$0xff]
      %v712 = vld [vmem:[%s512 + $0x49] sm:$0xff]
      %v713 = vld [vmem:[%s512 + $0x51] sm:$0xff]
      %v714 = vld [vmem:[%s512 + $0x61] sm:$0xff]
      %v715 = vld [vmem:[%s512 + $0x69] sm:$0xff]
      %v716 = vld [vmem:[%s512 + $0x79] sm:$0xff]
      %v717 = vld [vmem:[%s512 + $0x81] sm:$0xff]
      %v718 = vld [vmem:[%s512 + $0x91] sm:$0xff]
      %v719 = vld [vmem:[%s512 + $0x99] sm:$0xff]
      %v720 = vld [vmem:[%s512 + $0xa9] sm:$0xff]
      %v721 = vld [vmem:[%s512 + $0xb1] sm:$0xff]
      %v722 = vld [vmem:[%s512 + $0xc1] sm:$0xff]
      %v723 = vld [vmem:[%s512 + $0xc9] sm:$0xff]
      %v724 = vld [vmem:[%s512 + $0xd9] sm:$0xff]
      %v725 = vld [vmem:[%s512 + $0xe1] sm:$0xff]
      %v726 = vld [vmem:[%s512 + $0xf1] sm:$0xff]
      %v727 = vld [vmem:[%s512 + $0xf9] sm:$0xff]
      %v728 = vld [vmem:[%s512 + $0x109] sm:$0xff]
      %v729 = vld [vmem:[%s512 + $0x111] sm:$0xff]
      %v730 = vld [vmem:[%s512 + $0x121] sm:$0xff]
      %v731 = vld [vmem:[%s512 + $0x129] sm:$0xff]
      %v732 = vld [vmem:[%s512 + $0x139] sm:$0xff]
      %v733 = vld [vmem:[%s512 + $0x141] sm:$0xff]
      %v734 = vld [vmem:[%s512 + $0x151] sm:$0xff]
      %v735 = vld [vmem:[%s512 + $0x159] sm:$0xff]
      %v736 = vld [vmem:[%s512 + $0x169] sm:$0xff]
      %v737 = vld [vmem:[%s512 + $0x171] sm:$0xff]
      %770 = vrot.lane.b32.xlu0 %v706, 12
      %v771 = vpop.permute.xlu0 %770
      %772 = vrot.lane.b32.xlu0 %v707, 12
      %v773 = vpop.permute.xlu0 %772
      %774 = vrot.lane.b32.xlu0 %v708, 12
      %v775 = vpop.permute.xlu0 %774
      %776 = vrot.lane.b32.xlu0 %v709, 12
      %v777 = vpop.permute.xlu0 %776
      %778 = vrot.lane.b32.xlu0 %v710, 12
      %v779 = vpop.permute.xlu0 %778
      %780 = vrot.lane.b32.xlu0 %v711, 12
      %v781 = vpop.permute.xlu0 %780
      %782 = vrot.lane.b32.xlu0 %v712, 12
      %v783 = vpop.permute.xlu0 %782
      %784 = vrot.lane.b32.xlu0 %v713, 12
      %v785 = vpop.permute.xlu0 %784
      %786 = vrot.lane.b32.xlu0 %v714, 12
      %v787 = vpop.permute.xlu0 %786
      %788 = vrot.lane.b32.xlu0 %v715, 12
      %v789 = vpop.permute.xlu0 %788
      %790 = vrot.lane.b32.xlu0 %v716, 12
      %v791 = vpop.permute.xlu0 %790
      %792 = vrot.lane.b32.xlu0 %v717, 12
      %v793 = vpop.permute.xlu0 %792
      %794 = vrot.lane.b32.xlu0 %v718, 12
      %v795 = vpop.permute.xlu0 %794
      %796 = vrot.lane.b32.xlu0 %v719, 12
      %v797 = vpop.permute.xlu0 %796
      %798 = vrot.lane.b32.xlu0 %v720, 12
      %v799 = vpop.permute.xlu0 %798
      %800 = vrot.lane.b32.xlu0 %v721, 12
      %v801 = vpop.permute.xlu0 %800
      %802 = vrot.lane.b32.xlu0 %v722, 12
      %v803 = vpop.permute.xlu0 %802
      %804 = vrot.lane.b32.xlu0 %v723, 12
      %v805 = vpop.permute.xlu0 %804
      %806 = vrot.lane.b32.xlu0 %v724, 12
      %v807 = vpop.permute.xlu0 %806
      %808 = vrot.lane.b32.xlu0 %v725, 12
      %v809 = vpop.permute.xlu0 %808
      %810 = vrot.lane.b32.xlu0 %v726, 12
      %v811 = vpop.permute.xlu0 %810
      %812 = vrot.lane.b32.xlu0 %v727, 12
      %v813 = vpop.permute.xlu0 %812
      %814 = vrot.lane.b32.xlu0 %v728, 12
      %v815 = vpop.permute.xlu0 %814
      %816 = vrot.lane.b32.xlu0 %v729, 12
      %v817 = vpop.permute.xlu0 %816
      %818 = vrot.lane.b32.xlu0 %v730, 12
      %v819 = vpop.permute.xlu0 %818
      %820 = vrot.lane.b32.xlu0 %v731, 12
      %v821 = vpop.permute.xlu0 %820
      %822 = vrot.lane.b32.xlu0 %v732, 12
      %v823 = vpop.permute.xlu0 %822
      %824 = vrot.lane.b32.xlu0 %v733, 12
      %v825 = vpop.permute.xlu0 %824
      %826 = vrot.lane.b32.xlu0 %v734, 12
      %v827 = vpop.permute.xlu0 %826
      %828 = vrot.lane.b32.xlu0 %v735, 12
      %v829 = vpop.permute.xlu0 %828
      %830 = vrot.lane.b32.xlu0 %v736, 12
      %v831 = vpop.permute.xlu0 %830
      %832 = vrot.lane.b32.xlu0 %v737, 12
      %v833 = vpop.permute.xlu0 %832
      %vm866 = vcmask 130144
      %867 = vst.msk [vmem:[#allocation2] sm:$0xff] %vm866, %v771
      %868 = vst.msk [vmem:[#allocation2 + $0x8] sm:$0xff] %vm866, %v773
      %869 = vst.msk [vmem:[#allocation2 + $0x10] sm:$0xff] %vm866, %v775
      %870 = vst.msk [vmem:[#allocation2 + $0x18] sm:$0xff] %vm866, %v777
      %871 = vst.msk [vmem:[#allocation2 + $0x20] sm:$0xff] %vm866, %v779
      %872 = vst.msk [vmem:[#allocation2 + $0x28] sm:$0xff] %vm866, %v781
      %873 = vst.msk [vmem:[#allocation2 + $0x30] sm:$0xff] %vm866, %v783
      %874 = vst.msk [vmem:[#allocation2 + $0x38] sm:$0xff] %vm866, %v785
      %875 = vst.msk [vmem:[#allocation2 + $0x40] sm:$0xff] %vm866, %v787
      %876 = vst.msk [vmem:[#allocation2 + $0x48] sm:$0xff] %vm866, %v789
      %877 = vst.msk [vmem:[#allocation2 + $0x50] sm:$0xff] %vm866, %v791
      %878 = vst.msk [vmem:[#allocation2 + $0x58] sm:$0xff] %vm866, %v793
      %879 = vst.msk [vmem:[#allocation2 + $0x60] sm:$0xff] %vm866, %v795
      %880 = vst.msk [vmem:[#allocation2 + $0x68] sm:$0xff] %vm866, %v797
      %881 = vst.msk [vmem:[#allocation2 + $0x70] sm:$0xff] %vm866, %v799
      %882 = vst.msk [vmem:[#allocation2 + $0x78] sm:$0xff] %vm866, %v801
      %883 = vst.msk [vmem:[#allocation2 + $0x80] sm:$0xff] %vm866, %v803
      %884 = vst.msk [vmem:[#allocation2 + $0x88] sm:$0xff] %vm866, %v805
      %885 = vst.msk [vmem:[#allocation2 + $0x90] sm:$0xff] %vm866, %v807
      %886 = vst.msk [vmem:[#allocation2 + $0x98] sm:$0xff] %vm866, %v809
      %887 = vst.msk [vmem:[#allocation2 + $0xa0] sm:$0xff] %vm866, %v811
      %888 = vst.msk [vmem:[#allocation2 + $0xa8] sm:$0xff] %vm866, %v813
      %889 = vst.msk [vmem:[#allocation2 + $0xb0] sm:$0xff] %vm866, %v815
      %890 = vst.msk [vmem:[#allocation2 + $0xb8] sm:$0xff] %vm866, %v817
      %891 = vst.msk [vmem:[#allocation2 + $0xc0] sm:$0xff] %vm866, %v819
      %892 = vst.msk [vmem:[#allocation2 + $0xc8] sm:$0xff] %vm866, %v821
      %893 = vst.msk [vmem:[#allocation2 + $0xd0] sm:$0xff] %vm866, %v823
      %894 = vst.msk [vmem:[#allocation2 + $0xd8] sm:$0xff] %vm866, %v825
      %895 = vst.msk [vmem:[#allocation2 + $0xe0] sm:$0xff] %vm866, %v827
      %896 = vst.msk [vmem:[#allocation2 + $0xe8] sm:$0xff] %vm866, %v829
      %897 = vst.msk [vmem:[#allocation2 + $0xf0] sm:$0xff] %vm866, %v831
      %898 = vst.msk [vmem:[#allocation2 + $0xf8] sm:$0xff] %vm866, %v833
      %v899 = vld [vmem:[#allocation2] sm:$0xff]
      %v900 = vld [vmem:[#allocation2 + $0x8] sm:$0xff]
      %v901 = vld [vmem:[#allocation2 + $0x10] sm:$0xff]
      %v902 = vld [vmem:[#allocation2 + $0x18] sm:$0xff]
      %v903 = vld [vmem:[#allocation2 + $0x20] sm:$0xff]
      %v904 = vld [vmem:[#allocation2 + $0x28] sm:$0xff]
      %v905 = vld [vmem:[#allocation2 + $0x30] sm:$0xff]
      %v906 = vld [vmem:[#allocation2 + $0x38] sm:$0xff]
      %v907 = vld [vmem:[#allocation2 + $0x40] sm:$0xff]
      %v908 = vld [vmem:[#allocation2 + $0x48] sm:$0xff]
      %v909 = vld [vmem:[#allocation2 + $0x50] sm:$0xff]
      %v910 = vld [vmem:[#allocation2 + $0x58] sm:$0xff]
      %v911 = vld [vmem:[#allocation2 + $0x60] sm:$0xff]
      %v912 = vld [vmem:[#allocation2 + $0x68] sm:$0xff]
      %v913 = vld [vmem:[#allocation2 + $0x70] sm:$0xff]
      %v914 = vld [vmem:[#allocation2 + $0x78] sm:$0xff]
      %v915 = vld [vmem:[#allocation2 + $0x80] sm:$0xff]
      %v916 = vld [vmem:[#allocation2 + $0x88] sm:$0xff]
      %v917 = vld [vmem:[#allocation2 + $0x90] sm:$0xff]
      %v918 = vld [vmem:[#allocation2 + $0x98] sm:$0xff]
      %v919 = vld [vmem:[#allocation2 + $0xa0] sm:$0xff]
      %v920 = vld [vmem:[#allocation2 + $0xa8] sm:$0xff]
      %v921 = vld [vmem:[#allocation2 + $0xb0] sm:$0xff]
      %v922 = vld [vmem:[#allocation2 + $0xb8] sm:$0xff]
      %v923 = vld [vmem:[#allocation2 + $0xc0] sm:$0xff]
      %v924 = vld [vmem:[#allocation2 + $0xc8] sm:$0xff]
      %v925 = vld [vmem:[#allocation2 + $0xd0] sm:$0xff]
      %v926 = vld [vmem:[#allocation2 + $0xd8] sm:$0xff]
      %v927 = vld [vmem:[#allocation2 + $0xe0] sm:$0xff]
      %v928 = vld [vmem:[#allocation2 + $0xe8] sm:$0xff]
      %v929 = vld [vmem:[#allocation2 + $0xf0] sm:$0xff]
      %v930 = vld [vmem:[#allocation2 + $0xf8] sm:$0xff]
      %v931 = vld [vmem:[%s228] sm:$0xff]
      %v932 = vld [vmem:[%s228 + $0x8] sm:$0xff]
      %v934 = vlaneseq
      %v935 = vshrl.u32 %v934, 7
      %v936 = vsub.s32 0, %v935
      %v937 = vrot.slane %v253, %v936
      %vm939 = vcmask 130048
      %v941 = vsel %vm939, %v899, 0
      %v944 = vsel %vm939, %v900, 0
      %v947 = vsel %vm939, %v901, 0
      %v950 = vsel %vm939, %v902, 0
      %v953 = vsel %vm939, %v903, 0
      %v956 = vsel %vm939, %v904, 0
      %v959 = vsel %vm939, %v905, 0
      %v962 = vsel %vm939, %v906, 0
      %v965 = vsel %vm939, %v907, 0
      %v968 = vsel %vm939, %v908, 0
      %v971 = vsel %vm939, %v909, 0
      %v974 = vsel %vm939, %v910, 0
      %v977 = vsel %vm939, %v911, 0
      %v980 = vsel %vm939, %v912, 0
      %v983 = vsel %vm939, %v913, 0
      %v986 = vsel %vm939, %v914, 0
      %v989 = vsel %vm939, %v915, 0
      %v992 = vsel %vm939, %v916, 0
      %v995 = vsel %vm939, %v917, 0
      %v998 = vsel %vm939, %v918, 0
      %v1001 = vsel %vm939, %v919, 0
      %v1004 = vsel %vm939, %v920, 0
      %v1007 = vsel %vm939, %v921, 0
      %v1010 = vsel %vm939, %v922, 0
      %v1013 = vsel %vm939, %v923, 0
      %v1016 = vsel %vm939, %v924, 0
      %v1019 = vsel %vm939, %v925, 0
      %v1022 = vsel %vm939, %v926, 0
      %v1025 = vsel %vm939, %v927, 0
      %v1028 = vsel %vm939, %v928, 0
      %v1031 = vsel %vm939, %v929, 0
      %v1034 = vsel %vm939, %v930, 0
      %1036 = vmatprep.subr.mxu0 0.0
      %1037 = vmatpush1.msra.mxu0 %v931
      %1038 = vmatprep.subr.mxu0 0.0
      %1039 = vmatpush1.msra.mxu0 %v932
      %1040 = vmatprep.subr.mxu0 0.0
      %1041 = vmatpush1.msra.mxu0 0.0
      %1042 = vmatprep.subr.mxu0 0.0
      %1043 = vmatpush1.msra.mxu0 0.0
      %1044 = vmatprep.subr.mxu0 0.0
      %1045 = vmatpush1.msra.mxu0 0.0
      %1046 = vmatprep.subr.mxu0 0.0
      %1047 = vmatpush1.msra.mxu0 0.0
      %1048 = vmatprep.subr.mxu0 0.0
      %1049 = vmatpush1.msra.mxu0 0.0
      %1050 = vmatprep.subr.mxu0 0.0
      %1051 = vmatpush1.msra.mxu0 0.0
      %1052 = vmatprep.subr.mxu0 0.0
      %1053 = vmatpush1.msra.mxu0 0.0
      %1054 = vmatprep.subr.mxu0 0.0
      %1055 = vmatpush1.msra.mxu0 0.0
      %1056 = vmatprep.subr.mxu0 0.0
      %1057 = vmatpush1.msra.mxu0 0.0
      %1058 = vmatprep.subr.mxu0 0.0
      %1059 = vmatpush1.msra.mxu0 0.0
      %1060 = vmatprep.subr.mxu0 0.0
      %1061 = vmatpush1.msra.mxu0 0.0
      %1062 = vmatprep.subr.mxu0 0.0
      %1063 = vmatpush1.msra.mxu0 0.0
      %1064 = vmatprep.subr.mxu0 0.0
      %1065 = vmatpush1.msra.mxu0 0.0
      %1066 = vmatprep.subr.mxu0 0.0
      %1067 = vmatpush1.msra.mxu0 0.0
      %1068 = vmatprep.subr.mxu0 0.0
      %1069 = vmatpush1.msra.mxu0 0.0
      %1070 = vmatprep.subr.mxu0 0.0
      %1071 = vmatpush1.msra.mxu0 0.0
      %1072 = vmatprep.subr.mxu0 0.0
      %1073 = vmatpush1.msra.mxu0 0.0
      %1074 = vmatprep.subr.mxu0 0.0
      %1075 = vmatpush1.msra.mxu0 0.0
      %1076 = vmatprep.subr.mxu0 0.0
      %1077 = vmatpush1.msra.mxu0 0.0
      %1078 = vmatprep.subr.mxu0 0.0
      %1079 = vmatpush1.msra.mxu0 0.0
      %1080 = vmatprep.subr.mxu0 0.0
      %1081 = vmatpush1.msra.mxu0 0.0
      %1082 = vmatprep.subr.mxu0 0.0
      %1083 = vmatpush1.msra.mxu0 0.0
      %1084 = vmatprep.subr.mxu0 0.0
      %1085 = vmatpush1.msra.mxu0 0.0
      %1086 = vmatprep.subr.mxu0 0.0
      %1087 = vmatpush1.msra.mxu0 0.0
      %1088 = vmatprep.subr.mxu0 0.0
      %1089 = vmatpush1.msra.mxu0 0.0
      %1090 = vmatprep.subr.mxu0 0.0
      %1091 = vmatpush1.msra.mxu0 0.0
      %1092 = vmatprep.subr.mxu0 0.0
      %1093 = vmatpush1.msra.mxu0 0.0
      %1094 = vmatprep.subr.mxu0 0.0
      %1095 = vmatpush1.msra.mxu0 0.0
      %1096 = vmatprep.subr.mxu0 0.0
      %1097 = vmatpush1.msra.mxu0 0.0
      %1098 = vmatprep.subr.mxu0 0.0
      %1099 = vmatpush1.msra.mxu0 0.0
      %1100 = vmatprep.mubr.f32.mxu0 0.0
      %1101 = vmatmul.mubr.f32.gmra.mrb[0].mxu0 %v941
      %v1102 = vpop.f32.mrb[0].mxu0
      %v1103 = vadd.f32 %v937, %v1102
      %v1104 = vpop.f32.mrb[0].mxu0
      %1105 = vmatprep.mubr.f32.mxu0 0.0
      %1106 = vmatmul.mubr.f32.gmra.mrb[0].mxu0 %v944
      %v1107 = vpop.f32.mrb[0].mxu0
      %v1108 = vadd.f32 %v937, %v1107
      %v1109 = vpop.f32.mrb[0].mxu0
      %1110 = vmatprep.mubr.f32.mxu0 0.0
      %1111 = vmatmul.mubr.f32.gmra.mrb[0].mxu0 %v947
      %v1112 = vpop.f32.mrb[0].mxu0
      %v1113 = vadd.f32 %v937, %v1112
      %v1114 = vpop.f32.mrb[0].mxu0
      %1115 = vmatprep.mubr.f32.mxu0 0.0
      %1116 = vmatmul.mubr.f32.gmra.mrb[0].mxu0 %v950
      %v1117 = vpop.f32.mrb[0].mxu0
      %v1118 = vadd.f32 %v937, %v1117
      %v1119 = vpop.f32.mrb[0].mxu0
      %1120 = vmatprep.mubr.f32.mxu0 0.0
      %1121 = vmatmul.mubr.f32.gmra.mrb[0].mxu0 %v953
      %v1122 = vpop.f32.mrb[0].mxu0
      %v1123 = vadd.f32 %v937, %v1122
      %v1124 = vpop.f32.mrb[0].mxu0
      %1125 = vmatprep.mubr.f32.mxu0 0.0
      %1126 = vmatmul.mubr.f32.gmra.mrb[0].mxu0 %v956
      %v1127 = vpop.f32.mrb[0].mxu0
      %v1128 = vadd.f32 %v937, %v1127
      %v1129 = vpop.f32.mrb[0].mxu0
      %1130 = vmatprep.mubr.f32.mxu0 0.0
      %1131 = vmatmul.mubr.f32.gmra.mrb[0].mxu0 %v959
      %v1132 = vpop.f32.mrb[0].mxu0
      %v1133 = vadd.f32 %v937, %v1132
      %v1134 = vpop.f32.mrb[0].mxu0
      %1135 = vmatprep.mubr.f32.mxu0 0.0
      %1136 = vmatmul.mubr.f32.gmra.mrb[0].mxu0 %v962
      %v1137 = vpop.f32.mrb[0].mxu0
      %v1138 = vadd.f32 %v937, %v1137
      %v1139 = vpop.f32.mrb[0].mxu0
      %1140 = vmatprep.mubr.f32.mxu0 0.0
      %1141 = vmatmul.mubr.f32.gmra.mrb[0].mxu0 %v965
      %v1142 = vpop.f32.mrb[0].mxu0
      %v1143 = vadd.f32 %v937, %v1142
      %v1144 = vpop.f32.mrb[0].mxu0
      %1145 = vmatprep.mubr.f32.mxu0 0.0
      %1146 = vmatmul.mubr.f32.gmra.mrb[0].mxu0 %v968
      %v1147 = vpop.f32.mrb[0].mxu0
      %v1148 = vadd.f32 %v937, %v1147
      %v1149 = vpop.f32.mrb[0].mxu0
      %1150 = vmatprep.mubr.f32.mxu0 0.0
      %1151 = vmatmul.mubr.f32.gmra.mrb[0].mxu0 %v971
      %v1152 = vpop.f32.mrb[0].mxu0
      %v1153 = vadd.f32 %v937, %v1152
      %v1154 = vpop.f32.mrb[0].mxu0
      %1155 = vmatprep.mubr.f32.mxu0 0.0
      %1156 = vmatmul.mubr.f32.gmra.mrb[0].mxu0 %v974
      %v1157 = vpop.f32.mrb[0].mxu0
      %v1158 = vadd.f32 %v937, %v1157
      %v1159 = vpop.f32.mrb[0].mxu0
      %1160 = vmatprep.mubr.f32.mxu0 0.0
      %1161 = vmatmul.mubr.f32.gmra.mrb[0].mxu0 %v977
      %v1162 = vpop.f32.mrb[0].mxu0
      %v1163 = vadd.f32 %v937, %v1162
      %v1164 = vpop.f32.mrb[0].mxu0
      %1165 = vmatprep.mubr.f32.mxu0 0.0
      %1166 = vmatmul.mubr.f32.gmra.mrb[0].mxu0 %v980
      %v1167 = vpop.f32.mrb[0].mxu0
      %v1168 = vadd.f32 %v937, %v1167
      %v1169 = vpop.f32.mrb[0].mxu0
      %1170 = vmatprep.mubr.f32.mxu0 0.0
      %1171 = vmatmul.mubr.f32.gmra.mrb[0].mxu0 %v983
      %v1172 = vpop.f32.mrb[0].mxu0
      %v1173 = vadd.f32 %v937, %v1172
      %v1174 = vpop.f32.mrb[0].mxu0
      %1175 = vmatprep.mubr.f32.mxu0 0.0
      %1176 = vmatmul.mubr.f32.gmra.mrb[0].mxu0 %v986
      %v1177 = vpop.f32.mrb[0].mxu0
      %v1178 = vadd.f32 %v937, %v1177
      %v1179 = vpop.f32.mrb[0].mxu0
      %1180 = vmatprep.mubr.f32.mxu0 0.0
      %1181 = vmatmul.mubr.f32.gmra.mrb[0].mxu0 %v989
      %v1182 = vpop.f32.mrb[0].mxu0
      %v1183 = vadd.f32 %v937, %v1182
      %v1184 = vpop.f32.mrb[0].mxu0
      %1185 = vmatprep.mubr.f32.mxu0 0.0
      %1186 = vmatmul.mubr.f32.gmra.mrb[0].mxu0 %v992
      %v1187 = vpop.f32.mrb[0].mxu0
      %v1188 = vadd.f32 %v937, %v1187
      %v1189 = vpop.f32.mrb[0].mxu0
      %1190 = vmatprep.mubr.f32.mxu0 0.0
      %1191 = vmatmul.mubr.f32.gmra.mrb[0].mxu0 %v995
      %v1192 = vpop.f32.mrb[0].mxu0
      %v1193 = vadd.f32 %v937, %v1192
      %v1194 = vpop.f32.mrb[0].mxu0
      %1195 = vmatprep.mubr.f32.mxu0 0.0
      %1196 = vmatmul.mubr.f32.gmra.mrb[0].mxu0 %v998
      %v1197 = vpop.f32.mrb[0].mxu0
      %v1198 = vadd.f32 %v937, %v1197
      %v1199 = vpop.f32.mrb[0].mxu0
      %1200 = vmatprep.mubr.f32.mxu0 0.0
      %1201 = vmatmul.mubr.f32.gmra.mrb[0].mxu0 %v1001
      %v1202 = vpop.f32.mrb[0].mxu0
      %v1203 = vadd.f32 %v937, %v1202
      %v1204 = vpop.f32.mrb[0].mxu0
      %1205 = vmatprep.mubr.f32.mxu0 0.0
      %1206 = vmatmul.mubr.f32.gmra.mrb[0].mxu0 %v1004
      %v1207 = vpop.f32.mrb[0].mxu0
      %v1208 = vadd.f32 %v937, %v1207
      %v1209 = vpop.f32.mrb[0].mxu0
      %1210 = vmatprep.mubr.f32.mxu0 0.0
      %1211 = vmatmul.mubr.f32.gmra.mrb[0].mxu0 %v1007
      %v1212 = vpop.f32.mrb[0].mxu0
      %v1213 = vadd.f32 %v937, %v1212
      %v1214 = vpop.f32.mrb[0].mxu0
      %1215 = vmatprep.mubr.f32.mxu0 0.0
      %1216 = vmatmul.mubr.f32.gmra.mrb[0].mxu0 %v1010
      %v1217 = vpop.f32.mrb[0].mxu0
      %v1218 = vadd.f32 %v937, %v1217
      %v1219 = vpop.f32.mrb[0].mxu0
      %1220 = vmatprep.mubr.f32.mxu0 0.0
      %1221 = vmatmul.mubr.f32.gmra.mrb[0].mxu0 %v1013
      %v1222 = vpop.f32.mrb[0].mxu0
      %v1223 = vadd.f32 %v937, %v1222
      %v1224 = vpop.f32.mrb[0].mxu0
      %1225 = vmatprep.mubr.f32.mxu0 0.0
      %1226 = vmatmul.mubr.f32.gmra.mrb[0].mxu0 %v1016
      %v1227 = vpop.f32.mrb[0].mxu0
      %v1228 = vadd.f32 %v937, %v1227
      %v1229 = vpop.f32.mrb[0].mxu0
      %1230 = vmatprep.mubr.f32.mxu0 0.0
      %1231 = vmatmul.mubr.f32.gmra.mrb[0].mxu0 %v1019
      %v1232 = vpop.f32.mrb[0].mxu0
      %v1233 = vadd.f32 %v937, %v1232
      %v1234 = vpop.f32.mrb[0].mxu0
      %1235 = vmatprep.mubr.f32.mxu0 0.0
      %1236 = vmatmul.mubr.f32.gmra.mrb[0].mxu0 %v1022
      %v1237 = vpop.f32.mrb[0].mxu0
      %v1238 = vadd.f32 %v937, %v1237
      %v1239 = vpop.f32.mrb[0].mxu0
      %1240 = vmatprep.mubr.f32.mxu0 0.0
      %1241 = vmatmul.mubr.f32.gmra.mrb[0].mxu0 %v1025
      %v1242 = vpop.f32.mrb[0].mxu0
      %v1243 = vadd.f32 %v937, %v1242
      %v1244 = vpop.f32.mrb[0].mxu0
      %1245 = vmatprep.mubr.f32.mxu0 0.0
      %1246 = vmatmul.mubr.f32.gmra.mrb[0].mxu0 %v1028
      %v1247 = vpop.f32.mrb[0].mxu0
      %v1248 = vadd.f32 %v937, %v1247
      %v1249 = vpop.f32.mrb[0].mxu0
      %1250 = vmatprep.mubr.f32.mxu0 0.0
      %1251 = vmatmul.mubr.f32.gmra.mrb[0].mxu0 %v1031
      %v1252 = vpop.f32.mrb[0].mxu0
      %v1253 = vadd.f32 %v937, %v1252
      %v1254 = vpop.f32.mrb[0].mxu0
      %1255 = vmatprep.mubr.f32.mxu0 0.0
      %1256 = vmatmul.mubr.f32.gmra.mrb[0].mxu0 %v1034
      %v1257 = vpop.f32.mrb[0].mxu0
      %v1258 = vadd.f32 %v937, %v1257
      %v1259 = vpop.f32.mrb[0].mxu0
      %1260 = vdwg.mxu0
      %v1261 = vld [vmem:[%s240 + $0x1] sm:$0xff]
      %v1262 = vld [vmem:[%s240 + $0x9] sm:$0xff]
      %v1263 = vld [vmem:[%s240 + $0x19] sm:$0xff]
      %v1264 = vld [vmem:[%s240 + $0x21] sm:$0xff]
      %v1265 = vld [vmem:[%s240 + $0x31] sm:$0xff]
      %v1266 = vld [vmem:[%s240 + $0x39] sm:$0xff]
      %v1267 = vld [vmem:[%s240 + $0x49] sm:$0xff]
      %v1268 = vld [vmem:[%s240 + $0x51] sm:$0xff]
      %v1269 = vld [vmem:[%s240 + $0x61] sm:$0xff]
      %v1270 = vld [vmem:[%s240 + $0x69] sm:$0xff]
      %v1271 = vld [vmem:[%s240 + $0x79] sm:$0xff]
      %v1272 = vld [vmem:[%s240 + $0x81] sm:$0xff]
      %v1273 = vld [vmem:[%s240 + $0x91] sm:$0xff]
      %v1274 = vld [vmem:[%s240 + $0x99] sm:$0xff]
      %v1275 = vld [vmem:[%s240 + $0xa9] sm:$0xff]
      %v1276 = vld [vmem:[%s240 + $0xb1] sm:$0xff]
      %v1277 = vld [vmem:[%s240 + $0xc1] sm:$0xff]
      %v1278 = vld [vmem:[%s240 + $0xc9] sm:$0xff]
      %v1279 = vld [vmem:[%s240 + $0xd9] sm:$0xff]
      %v1280 = vld [vmem:[%s240 + $0xe1] sm:$0xff]
      %v1281 = vld [vmem:[%s240 + $0xf1] sm:$0xff]
      %v1282 = vld [vmem:[%s240 + $0xf9] sm:$0xff]
      %v1283 = vld [vmem:[%s240 + $0x109] sm:$0xff]
      %v1284 = vld [vmem:[%s240 + $0x111] sm:$0xff]
      %v1285 = vld [vmem:[%s240 + $0x121] sm:$0xff]
      %v1286 = vld [vmem:[%s240 + $0x129] sm:$0xff]
      %v1287 = vld [vmem:[%s240 + $0x139] sm:$0xff]
      %v1288 = vld [vmem:[%s240 + $0x141] sm:$0xff]
      %v1289 = vld [vmem:[%s240 + $0x151] sm:$0xff]
      %v1290 = vld [vmem:[%s240 + $0x159] sm:$0xff]
      %v1291 = vld [vmem:[%s240 + $0x169] sm:$0xff]
      %v1292 = vld [vmem:[%s240 + $0x171] sm:$0xff]
      %s1293 = scalar_lea.vmem [#allocation2], 256
      %1294 = vst.msk [vmem:[%s1293] sm:$0xff] %vm286, %v1261
      %1295 = vst.msk [vmem:[%s1293 + $0x8] sm:$0xff] %vm286, %v1262
      %1296 = vst.msk [vmem:[%s1293 + $0x10] sm:$0xff] %vm286, %v1263
      %1297 = vst.msk [vmem:[%s1293 + $0x18] sm:$0xff] %vm286, %v1264
      %1298 = vst.msk [vmem:[%s1293 + $0x20] sm:$0xff] %vm286, %v1265
      %1299 = vst.msk [vmem:[%s1293 + $0x28] sm:$0xff] %vm286, %v1266
      %1300 = vst.msk [vmem:[%s1293 + $0x30] sm:$0xff] %vm286, %v1267
      %1301 = vst.msk [vmem:[%s1293 + $0x38] sm:$0xff] %vm286, %v1268
      %1302 = vst.msk [vmem:[%s1293 + $0x40] sm:$0xff] %vm286, %v1269
      %1303 = vst.msk [vmem:[%s1293 + $0x48] sm:$0xff] %vm286, %v1270
      %1304 = vst.msk [vmem:[%s1293 + $0x50] sm:$0xff] %vm286, %v1271
      %1305 = vst.msk [vmem:[%s1293 + $0x58] sm:$0xff] %vm286, %v1272
      %1306 = vst.msk [vmem:[%s1293 + $0x60] sm:$0xff] %vm286, %v1273
      %1307 = vst.msk [vmem:[%s1293 + $0x68] sm:$0xff] %vm286, %v1274
      %1308 = vst.msk [vmem:[%s1293 + $0x70] sm:$0xff] %vm286, %v1275
      %1309 = vst.msk [vmem:[%s1293 + $0x78] sm:$0xff] %vm286, %v1276
      %1310 = vst.msk [vmem:[%s1293 + $0x80] sm:$0xff] %vm286, %v1277
      %1311 = vst.msk [vmem:[%s1293 + $0x88] sm:$0xff] %vm286, %v1278
      %1312 = vst.msk [vmem:[%s1293 + $0x90] sm:$0xff] %vm286, %v1279
      %1313 = vst.msk [vmem:[%s1293 + $0x98] sm:$0xff] %vm286, %v1280
      %1314 = vst.msk [vmem:[%s1293 + $0xa0] sm:$0xff] %vm286, %v1281
      %1315 = vst.msk [vmem:[%s1293 + $0xa8] sm:$0xff] %vm286, %v1282
      %1316 = vst.msk [vmem:[%s1293 + $0xb0] sm:$0xff] %vm286, %v1283
      %1317 = vst.msk [vmem:[%s1293 + $0xb8] sm:$0xff] %vm286, %v1284
      %1318 = vst.msk [vmem:[%s1293 + $0xc0] sm:$0xff] %vm286, %v1285
      %1319 = vst.msk [vmem:[%s1293 + $0xc8] sm:$0xff] %vm286, %v1286
      %1320 = vst.msk [vmem:[%s1293 + $0xd0] sm:$0xff] %vm286, %v1287
      %1321 = vst.msk [vmem:[%s1293 + $0xd8] sm:$0xff] %vm286, %v1288
      %1322 = vst.msk [vmem:[%s1293 + $0xe0] sm:$0xff] %vm286, %v1289
      %1323 = vst.msk [vmem:[%s1293 + $0xe8] sm:$0xff] %vm286, %v1290
      %1324 = vst.msk [vmem:[%s1293 + $0xf0] sm:$0xff] %vm286, %v1291
      %1325 = vst.msk [vmem:[%s1293 + $0xf8] sm:$0xff] %vm286, %v1292
      %v1326 = vld [vmem:[%s240 + $0x2] sm:$0xff]
      %v1327 = vld [vmem:[%s240 + $0xa] sm:$0xff]
      %v1328 = vld [vmem:[%s240 + $0x1a] sm:$0xff]
      %v1329 = vld [vmem:[%s240 + $0x22] sm:$0xff]
      %v1330 = vld [vmem:[%s240 + $0x32] sm:$0xff]
      %v1331 = vld [vmem:[%s240 + $0x3a] sm:$0xff]
      %v1332 = vld [vmem:[%s240 + $0x4a] sm:$0xff]
      %v1333 = vld [vmem:[%s240 + $0x52] sm:$0xff]
      %v1334 = vld [vmem:[%s240 + $0x62] sm:$0xff]
      %v1335 = vld [vmem:[%s240 + $0x6a] sm:$0xff]
      %v1336 = vld [vmem:[%s240 + $0x7a] sm:$0xff]
      %v1337 = vld [vmem:[%s240 + $0x82] sm:$0xff]
      %v1338 = vld [vmem:[%s240 + $0x92] sm:$0xff]
      %v1339 = vld [vmem:[%s240 + $0x9a] sm:$0xff]
      %v1340 = vld [vmem:[%s240 + $0xaa] sm:$0xff]
      %v1341 = vld [vmem:[%s240 + $0xb2] sm:$0xff]
      %v1342 = vld [vmem:[%s240 + $0xc2] sm:$0xff]
      %v1343 = vld [vmem:[%s240 + $0xca] sm:$0xff]
      %v1344 = vld [vmem:[%s240 + $0xda] sm:$0xff]
      %v1345 = vld [vmem:[%s240 + $0xe2] sm:$0xff]
      %v1346 = vld [vmem:[%s240 + $0xf2] sm:$0xff]
      %v1347 = vld [vmem:[%s240 + $0xfa] sm:$0xff]
      %v1348 = vld [vmem:[%s240 + $0x10a] sm:$0xff]
      %v1349 = vld [vmem:[%s240 + $0x112] sm:$0xff]
      %v1350 = vld [vmem:[%s240 + $0x122] sm:$0xff]
      %v1351 = vld [vmem:[%s240 + $0x12a] sm:$0xff]
      %v1352 = vld [vmem:[%s240 + $0x13a] sm:$0xff]
      %v1353 = vld [vmem:[%s240 + $0x142] sm:$0xff]
      %v1354 = vld [vmem:[%s240 + $0x152] sm:$0xff]
      %v1355 = vld [vmem:[%s240 + $0x15a] sm:$0xff]
      %v1356 = vld [vmem:[%s240 + $0x16a] sm:$0xff]
      %v1357 = vld [vmem:[%s240 + $0x172] sm:$0xff]
      %1390 = vrot.lane.b32.xlu0 %v1326, 4
      %v1391 = vpop.permute.xlu0 %1390
      %1392 = vrot.lane.b32.xlu0 %v1327, 4
      %v1393 = vpop.permute.xlu0 %1392
      %1394 = vrot.lane.b32.xlu0 %v1328, 4
      %v1395 = vpop.permute.xlu0 %1394
      %1396 = vrot.lane.b32.xlu0 %v1329, 4
      %v1397 = vpop.permute.xlu0 %1396
      %1398 = vrot.lane.b32.xlu0 %v1330, 4
      %v1399 = vpop.permute.xlu0 %1398
      %1400 = vrot.lane.b32.xlu0 %v1331, 4
      %v1401 = vpop.permute.xlu0 %1400
      %1402 = vrot.lane.b32.xlu0 %v1332, 4
      %v1403 = vpop.permute.xlu0 %1402
      %1404 = vrot.lane.b32.xlu0 %v1333, 4
      %v1405 = vpop.permute.xlu0 %1404
      %1406 = vrot.lane.b32.xlu0 %v1334, 4
      %v1407 = vpop.permute.xlu0 %1406
      %1408 = vrot.lane.b32.xlu0 %v1335, 4
      %v1409 = vpop.permute.xlu0 %1408
      %1410 = vrot.lane.b32.xlu0 %v1336, 4
      %v1411 = vpop.permute.xlu0 %1410
      %1412 = vrot.lane.b32.xlu0 %v1337, 4
      %v1413 = vpop.permute.xlu0 %1412
      %1414 = vrot.lane.b32.xlu0 %v1338, 4
      %v1415 = vpop.permute.xlu0 %1414
      %1416 = vrot.lane.b32.xlu0 %v1339, 4
      %v1417 = vpop.permute.xlu0 %1416
      %1418 = vrot.lane.b32.xlu0 %v1340, 4
      %v1419 = vpop.permute.xlu0 %1418
      %1420 = vrot.lane.b32.xlu0 %v1341, 4
      %v1421 = vpop.permute.xlu0 %1420
      %1422 = vrot.lane.b32.xlu0 %v1342, 4
      %v1423 = vpop.permute.xlu0 %1422
      %1424 = vrot.lane.b32.xlu0 %v1343, 4
      %v1425 = vpop.permute.xlu0 %1424
      %1426 = vrot.lane.b32.xlu0 %v1344, 4
      %v1427 = vpop.permute.xlu0 %1426
      %1428 = vrot.lane.b32.xlu0 %v1345, 4
      %v1429 = vpop.permute.xlu0 %1428
      %1430 = vrot.lane.b32.xlu0 %v1346, 4
      %v1431 = vpop.permute.xlu0 %1430
      %1432 = vrot.lane.b32.xlu0 %v1347, 4
      %v1433 = vpop.permute.xlu0 %1432
      %1434 = vrot.lane.b32.xlu0 %v1348, 4
      %v1435 = vpop.permute.xlu0 %1434
      %1436 = vrot.lane.b32.xlu0 %v1349, 4
      %v1437 = vpop.permute.xlu0 %1436
      %1438 = vrot.lane.b32.xlu0 %v1350, 4
      %v1439 = vpop.permute.xlu0 %1438
      %1440 = vrot.lane.b32.xlu0 %v1351, 4
      %v1441 = vpop.permute.xlu0 %1440
      %1442 = vrot.lane.b32.xlu0 %v1352, 4
      %v1443 = vpop.permute.xlu0 %1442
      %1444 = vrot.lane.b32.xlu0 %v1353, 4
      %v1445 = vpop.permute.xlu0 %1444
      %1446 = vrot.lane.b32.xlu0 %v1354, 4
      %v1447 = vpop.permute.xlu0 %1446
      %1448 = vrot.lane.b32.xlu0 %v1355, 4
      %v1449 = vpop.permute.xlu0 %1448
      %1450 = vrot.lane.b32.xlu0 %v1356, 4
      %v1451 = vpop.permute.xlu0 %1450
      %1452 = vrot.lane.b32.xlu0 %v1357, 4
      %v1453 = vpop.permute.xlu0 %1452
      %1486 = vst.msk [vmem:[%s1293] sm:$0xff] %vm479, %v1391
      %1487 = vst.msk [vmem:[%s1293 + $0x8] sm:$0xff] %vm479, %v1393
      %1488 = vst.msk [vmem:[%s1293 + $0x10] sm:$0xff] %vm479, %v1395
      %1489 = vst.msk [vmem:[%s1293 + $0x18] sm:$0xff] %vm479, %v1397
      %1490 = vst.msk [vmem:[%s1293 + $0x20] sm:$0xff] %vm479, %v1399
      %1491 = vst.msk [vmem:[%s1293 + $0x28] sm:$0xff] %vm479, %v1401
      %1492 = vst.msk [vmem:[%s1293 + $0x30] sm:$0xff] %vm479, %v1403
      %1493 = vst.msk [vmem:[%s1293 + $0x38] sm:$0xff] %vm479, %v1405
      %1494 = vst.msk [vmem:[%s1293 + $0x40] sm:$0xff] %vm479, %v1407
      %1495 = vst.msk [vmem:[%s1293 + $0x48] sm:$0xff] %vm479, %v1409
      %1496 = vst.msk [vmem:[%s1293 + $0x50] sm:$0xff] %vm479, %v1411
      %1497 = vst.msk [vmem:[%s1293 + $0x58] sm:$0xff] %vm479, %v1413
      %1498 = vst.msk [vmem:[%s1293 + $0x60] sm:$0xff] %vm479, %v1415
      %1499 = vst.msk [vmem:[%s1293 + $0x68] sm:$0xff] %vm479, %v1417
      %1500 = vst.msk [vmem:[%s1293 + $0x70] sm:$0xff] %vm479, %v1419
      %1501 = vst.msk [vmem:[%s1293 + $0x78] sm:$0xff] %vm479, %v1421
      %1502 = vst.msk [vmem:[%s1293 + $0x80] sm:$0xff] %vm479, %v1423
      %1503 = vst.msk [vmem:[%s1293 + $0x88] sm:$0xff] %vm479, %v1425
      %1504 = vst.msk [vmem:[%s1293 + $0x90] sm:$0xff] %vm479, %v1427
      %1505 = vst.msk [vmem:[%s1293 + $0x98] sm:$0xff] %vm479, %v1429
      %1506 = vst.msk [vmem:[%s1293 + $0xa0] sm:$0xff] %vm479, %v1431
      %1507 = vst.msk [vmem:[%s1293 + $0xa8] sm:$0xff] %vm479, %v1433
      %1508 = vst.msk [vmem:[%s1293 + $0xb0] sm:$0xff] %vm479, %v1435
      %1509 = vst.msk [vmem:[%s1293 + $0xb8] sm:$0xff] %vm479, %v1437
      %1510 = vst.msk [vmem:[%s1293 + $0xc0] sm:$0xff] %vm479, %v1439
      %1511 = vst.msk [vmem:[%s1293 + $0xc8] sm:$0xff] %vm479, %v1441
      %1512 = vst.msk [vmem:[%s1293 + $0xd0] sm:$0xff] %vm479, %v1443
      %1513 = vst.msk [vmem:[%s1293 + $0xd8] sm:$0xff] %vm479, %v1445
      %1514 = vst.msk [vmem:[%s1293 + $0xe0] sm:$0xff] %vm479, %v1447
      %1515 = vst.msk [vmem:[%s1293 + $0xe8] sm:$0xff] %vm479, %v1449
      %1516 = vst.msk [vmem:[%s1293 + $0xf0] sm:$0xff] %vm479, %v1451
      %1517 = vst.msk [vmem:[%s1293 + $0xf8] sm:$0xff] %vm479, %v1453
      %v1518 = vld [vmem:[%s512 + $0x1] sm:$0xff]
      %v1519 = vld [vmem:[%s512 + $0x9] sm:$0xff]
      %v1520 = vld [vmem:[%s512 + $0x19] sm:$0xff]
      %v1521 = vld [vmem:[%s512 + $0x21] sm:$0xff]
      %v1522 = vld [vmem:[%s512 + $0x31] sm:$0xff]
      %v1523 = vld [vmem:[%s512 + $0x39] sm:$0xff]
      %v1524 = vld [vmem:[%s512 + $0x49] sm:$0xff]
      %v1525 = vld [vmem:[%s512 + $0x51] sm:$0xff]
      %v1526 = vld [vmem:[%s512 + $0x61] sm:$0xff]
      %v1527 = vld [vmem:[%s512 + $0x69] sm:$0xff]
      %v1528 = vld [vmem:[%s512 + $0x79] sm:$0xff]
      %v1529 = vld [vmem:[%s512 + $0x81] sm:$0xff]
      %v1530 = vld [vmem:[%s512 + $0x91] sm:$0xff]
      %v1531 = vld [vmem:[%s512 + $0x99] sm:$0xff]
      %v1532 = vld [vmem:[%s512 + $0xa9] sm:$0xff]
      %v1533 = vld [vmem:[%s512 + $0xb1] sm:$0xff]
      %v1534 = vld [vmem:[%s512 + $0xc1] sm:$0xff]
      %v1535 = vld [vmem:[%s512 + $0xc9] sm:$0xff]
      %v1536 = vld [vmem:[%s512 + $0xd9] sm:$0xff]
      %v1537 = vld [vmem:[%s512 + $0xe1] sm:$0xff]
      %v1538 = vld [vmem:[%s512 + $0xf1] sm:$0xff]
      %v1539 = vld [vmem:[%s512 + $0xf9] sm:$0xff]
      %v1540 = vld [vmem:[%s512 + $0x109] sm:$0xff]
      %v1541 = vld [vmem:[%s512 + $0x111] sm:$0xff]
      %v1542 = vld [vmem:[%s512 + $0x121] sm:$0xff]
      %v1543 = vld [vmem:[%s512 + $0x129] sm:$0xff]
      %v1544 = vld [vmem:[%s512 + $0x139] sm:$0xff]
      %v1545 = vld [vmem:[%s512 + $0x141] sm:$0xff]
      %v1546 = vld [vmem:[%s512 + $0x151] sm:$0xff]
      %v1547 = vld [vmem:[%s512 + $0x159] sm:$0xff]
      %v1548 = vld [vmem:[%s512 + $0x169] sm:$0xff]
      %v1549 = vld [vmem:[%s512 + $0x171] sm:$0xff]
      %1582 = vrot.lane.b32.xlu0 %v1518, 8
      %v1583 = vpop.permute.xlu0 %1582
      %1584 = vrot.lane.b32.xlu0 %v1519, 8
      %v1585 = vpop.permute.xlu0 %1584
      %1586 = vrot.lane.b32.xlu0 %v1520, 8
      %v1587 = vpop.permute.xlu0 %1586
      %1588 = vrot.lane.b32.xlu0 %v1521, 8
      %v1589 = vpop.permute.xlu0 %1588
      %1590 = vrot.lane.b32.xlu0 %v1522, 8
      %v1591 = vpop.permute.xlu0 %1590
      %1592 = vrot.lane.b32.xlu0 %v1523, 8
      %v1593 = vpop.permute.xlu0 %1592
      %1594 = vrot.lane.b32.xlu0 %v1524, 8
      %v1595 = vpop.permute.xlu0 %1594
      %1596 = vrot.lane.b32.xlu0 %v1525, 8
      %v1597 = vpop.permute.xlu0 %1596
      %1598 = vrot.lane.b32.xlu0 %v1526, 8
      %v1599 = vpop.permute.xlu0 %1598
      %1600 = vrot.lane.b32.xlu0 %v1527, 8
      %v1601 = vpop.permute.xlu0 %1600
      %1602 = vrot.lane.b32.xlu0 %v1528, 8
      %v1603 = vpop.permute.xlu0 %1602
      %1604 = vrot.lane.b32.xlu0 %v1529, 8
      %v1605 = vpop.permute.xlu0 %1604
      %1606 = vrot.lane.b32.xlu0 %v1530, 8
      %v1607 = vpop.permute.xlu0 %1606
      %1608 = vrot.lane.b32.xlu0 %v1531, 8
      %v1609 = vpop.permute.xlu0 %1608
      %1610 = vrot.lane.b32.xlu0 %v1532, 8
      %v1611 = vpop.permute.xlu0 %1610
      %1612 = vrot.lane.b32.xlu0 %v1533, 8
      %v1613 = vpop.permute.xlu0 %1612
      %1614 = vrot.lane.b32.xlu0 %v1534, 8
      %v1615 = vpop.permute.xlu0 %1614
      %1616 = vrot.lane.b32.xlu0 %v1535, 8
      %v1617 = vpop.permute.xlu0 %1616
      %1618 = vrot.lane.b32.xlu0 %v1536, 8
      %v1619 = vpop.permute.xlu0 %1618
      %1620 = vrot.lane.b32.xlu0 %v1537, 8
      %v1621 = vpop.permute.xlu0 %1620
      %1622 = vrot.lane.b32.xlu0 %v1538, 8
      %v1623 = vpop.permute.xlu0 %1622
      %1624 = vrot.lane.b32.xlu0 %v1539, 8
      %v1625 = vpop.permute.xlu0 %1624
      %1626 = vrot.lane.b32.xlu0 %v1540, 8
      %v1627 = vpop.permute.xlu0 %1626
      %1628 = vrot.lane.b32.xlu0 %v1541, 8
      %v1629 = vpop.permute.xlu0 %1628
      %1630 = vrot.lane.b32.xlu0 %v1542, 8
      %v1631 = vpop.permute.xlu0 %1630
      %1632 = vrot.lane.b32.xlu0 %v1543, 8
      %v1633 = vpop.permute.xlu0 %1632
      %1634 = vrot.lane.b32.xlu0 %v1544, 8
      %v1635 = vpop.permute.xlu0 %1634
      %1636 = vrot.lane.b32.xlu0 %v1545, 8
      %v1637 = vpop.permute.xlu0 %1636
      %1638 = vrot.lane.b32.xlu0 %v1546, 8
      %v1639 = vpop.permute.xlu0 %1638
      %1640 = vrot.lane.b32.xlu0 %v1547, 8
      %v1641 = vpop.permute.xlu0 %1640
      %1642 = vrot.lane.b32.xlu0 %v1548, 8
      %v1643 = vpop.permute.xlu0 %1642
      %1644 = vrot.lane.b32.xlu0 %v1549, 8
      %v1645 = vpop.permute.xlu0 %1644
      %1678 = vst.msk [vmem:[%s1293] sm:$0xff] %vm673, %v1583
      %1679 = vst.msk [vmem:[%s1293 + $0x8] sm:$0xff] %vm673, %v1585
      %1680 = vst.msk [vmem:[%s1293 + $0x10] sm:$0xff] %vm673, %v1587
      %1681 = vst.msk [vmem:[%s1293 + $0x18] sm:$0xff] %vm673, %v1589
      %1682 = vst.msk [vmem:[%s1293 + $0x20] sm:$0xff] %vm673, %v1591
      %1683 = vst.msk [vmem:[%s1293 + $0x28] sm:$0xff] %vm673, %v1593
      %1684 = vst.msk [vmem:[%s1293 + $0x30] sm:$0xff] %vm673, %v1595
      %1685 = vst.msk [vmem:[%s1293 + $0x38] sm:$0xff] %vm673, %v1597
      %1686 = vst.msk [vmem:[%s1293 + $0x40] sm:$0xff] %vm673, %v1599
      %1687 = vst.msk [vmem:[%s1293 + $0x48] sm:$0xff] %vm673, %v1601
      %1688 = vst.msk [vmem:[%s1293 + $0x50] sm:$0xff] %vm673, %v1603
      %1689 = vst.msk [vmem:[%s1293 + $0x58] sm:$0xff] %vm673, %v1605
      %1690 = vst.msk [vmem:[%s1293 + $0x60] sm:$0xff] %vm673, %v1607
      %1691 = vst.msk [vmem:[%s1293 + $0x68] sm:$0xff] %vm673, %v1609
      %1692 = vst.msk [vmem:[%s1293 + $0x70] sm:$0xff] %vm673, %v1611
      %1693 = vst.msk [vmem:[%s1293 + $0x78] sm:$0xff] %vm673, %v1613
      %1694 = vst.msk [vmem:[%s1293 + $0x80] sm:$0xff] %vm673, %v1615
      %1695 = vst.msk [vmem:[%s1293 + $0x88] sm:$0xff] %vm673, %v1617
      %1696 = vst.msk [vmem:[%s1293 + $0x90] sm:$0xff] %vm673, %v1619
      %1697 = vst.msk [vmem:[%s1293 + $0x98] sm:$0xff] %vm673, %v1621
      %1698 = vst.msk [vmem:[%s1293 + $0xa0] sm:$0xff] %vm673, %v1623
      %1699 = vst.msk [vmem:[%s1293 + $0xa8] sm:$0xff] %vm673, %v1625
      %1700 = vst.msk [vmem:[%s1293 + $0xb0] sm:$0xff] %vm673, %v1627
      %1701 = vst.msk [vmem:[%s1293 + $0xb8] sm:$0xff] %vm673, %v1629
      %1702 = vst.msk [vmem:[%s1293 + $0xc0] sm:$0xff] %vm673, %v1631
      %1703 = vst.msk [vmem:[%s1293 + $0xc8] sm:$0xff] %vm673, %v1633
      %1704 = vst.msk [vmem:[%s1293 + $0xd0] sm:$0xff] %vm673, %v1635
      %1705 = vst.msk [vmem:[%s1293 + $0xd8] sm:$0xff] %vm673, %v1637
      %1706 = vst.msk [vmem:[%s1293 + $0xe0] sm:$0xff] %vm673, %v1639
      %1707 = vst.msk [vmem:[%s1293 + $0xe8] sm:$0xff] %vm673, %v1641
      %1708 = vst.msk [vmem:[%s1293 + $0xf0] sm:$0xff] %vm673, %v1643
      %1709 = vst.msk [vmem:[%s1293 + $0xf8] sm:$0xff] %vm673, %v1645
      %v1710 = vld [vmem:[%s512 + $0x2] sm:$0xff]
      %v1711 = vld [vmem:[%s512 + $0xa] sm:$0xff]
      %v1712 = vld [vmem:[%s512 + $0x1a] sm:$0xff]
      %v1713 = vld [vmem:[%s512 + $0x22] sm:$0xff]
      %v1714 = vld [vmem:[%s512 + $0x32] sm:$0xff]
      %v1715 = vld [vmem:[%s512 + $0x3a] sm:$0xff]
      %v1716 = vld [vmem:[%s512 + $0x4a] sm:$0xff]
      %v1717 = vld [vmem:[%s512 + $0x52] sm:$0xff]
      %v1718 = vld [vmem:[%s512 + $0x62] sm:$0xff]
      %v1719 = vld [vmem:[%s512 + $0x6a] sm:$0xff]
      %v1720 = vld [vmem:[%s512 + $0x7a] sm:$0xff]
      %v1721 = vld [vmem:[%s512 + $0x82] sm:$0xff]
      %v1722 = vld [vmem:[%s512 + $0x92] sm:$0xff]
      %v1723 = vld [vmem:[%s512 + $0x9a] sm:$0xff]
      %v1724 = vld [vmem:[%s512 + $0xaa] sm:$0xff]
      %v1725 = vld [vmem:[%s512 + $0xb2] sm:$0xff]
      %v1726 = vld [vmem:[%s512 + $0xc2] sm:$0xff]
      %v1727 = vld [vmem:[%s512 + $0xca] sm:$0xff]
      %v1728 = vld [vmem:[%s512 + $0xda] sm:$0xff]
      %v1729 = vld [vmem:[%s512 + $0xe2] sm:$0xff]
      %v1730 = vld [vmem:[%s512 + $0xf2] sm:$0xff]
      %v1731 = vld [vmem:[%s512 + $0xfa] sm:$0xff]
      %v1732 = vld [vmem:[%s512 + $0x10a] sm:$0xff]
      %v1733 = vld [vmem:[%s512 + $0x112] sm:$0xff]
      %v1734 = vld [vmem:[%s512 + $0x122] sm:$0xff]
      %v1735 = vld [vmem:[%s512 + $0x12a] sm:$0xff]
      %v1736 = vld [vmem:[%s512 + $0x13a] sm:$0xff]
      %v1737 = vld [vmem:[%s512 + $0x142] sm:$0xff]
      %v1738 = vld [vmem:[%s512 + $0x152] sm:$0xff]
      %v1739 = vld [vmem:[%s512 + $0x15a] sm:$0xff]
      %v1740 = vld [vmem:[%s512 + $0x16a] sm:$0xff]
      %v1741 = vld [vmem:[%s512 + $0x172] sm:$0xff]
      %1774 = vrot.lane.b32.xlu0 %v1710, 12
      %v1775 = vpop.permute.xlu0 %1774
      %1776 = vrot.lane.b32.xlu0 %v1711, 12
      %v1777 = vpop.permute.xlu0 %1776
      %1778 = vrot.lane.b32.xlu0 %v1712, 12
      %v1779 = vpop.permute.xlu0 %1778
      %1780 = vrot.lane.b32.xlu0 %v1713, 12
      %v1781 = vpop.permute.xlu0 %1780
      %1782 = vrot.lane.b32.xlu0 %v1714, 12
      %v1783 = vpop.permute.xlu0 %1782
      %1784 = vrot.lane.b32.xlu0 %v1715, 12
      %v1785 = vpop.permute.xlu0 %1784
      %1786 = vrot.lane.b32.xlu0 %v1716, 12
      %v1787 = vpop.permute.xlu0 %1786
      %1788 = vrot.lane.b32.xlu0 %v1717, 12
      %v1789 = vpop.permute.xlu0 %1788
      %1790 = vrot.lane.b32.xlu0 %v1718, 12
      %v1791 = vpop.permute.xlu0 %1790
      %1792 = vrot.lane.b32.xlu0 %v1719, 12
      %v1793 = vpop.permute.xlu0 %1792
      %1794 = vrot.lane.b32.xlu0 %v1720, 12
      %v1795 = vpop.permute.xlu0 %1794
      %1796 = vrot.lane.b32.xlu0 %v1721, 12
      %v1797 = vpop.permute.xlu0 %1796
      %1798 = vrot.lane.b32.xlu0 %v1722, 12
      %v1799 = vpop.permute.xlu0 %1798
      %1800 = vrot.lane.b32.xlu0 %v1723, 12
      %v1801 = vpop.permute.xlu0 %1800
      %1802 = vrot.lane.b32.xlu0 %v1724, 12
      %v1803 = vpop.permute.xlu0 %1802
      %1804 = vrot.lane.b32.xlu0 %v1725, 12
      %v1805 = vpop.permute.xlu0 %1804
      %1806 = vrot.lane.b32.xlu0 %v1726, 12
      %v1807 = vpop.permute.xlu0 %1806
      %1808 = vrot.lane.b32.xlu0 %v1727, 12
      %v1809 = vpop.permute.xlu0 %1808
      %1810 = vrot.lane.b32.xlu0 %v1728, 12
      %v1811 = vpop.permute.xlu0 %1810
      %1812 = vrot.lane.b32.xlu0 %v1729, 12
      %v1813 = vpop.permute.xlu0 %1812
      %1814 = vrot.lane.b32.xlu0 %v1730, 12
      %v1815 = vpop.permute.xlu0 %1814
      %1816 = vrot.lane.b32.xlu0 %v1731, 12
      %v1817 = vpop.permute.xlu0 %1816
      %1818 = vrot.lane.b32.xlu0 %v1732, 12
      %v1819 = vpop.permute.xlu0 %1818
      %1820 = vrot.lane.b32.xlu0 %v1733, 12
      %v1821 = vpop.permute.xlu0 %1820
      %1822 = vrot.lane.b32.xlu0 %v1734, 12
      %v1823 = vpop.permute.xlu0 %1822
      %1824 = vrot.lane.b32.xlu0 %v1735, 12
      %v1825 = vpop.permute.xlu0 %1824
      %1826 = vrot.lane.b32.xlu0 %v1736, 12
      %v1827 = vpop.permute.xlu0 %1826
      %1828 = vrot.lane.b32.xlu0 %v1737, 12
      %v1829 = vpop.permute.xlu0 %1828
      %1830 = vrot.lane.b32.xlu0 %v1738, 12
      %v1831 = vpop.permute.xlu0 %1830
      %1832 = vrot.lane.b32.xlu0 %v1739, 12
      %v1833 = vpop.permute.xlu0 %1832
      %1834 = vrot.lane.b32.xlu0 %v1740, 12
      %v1835 = vpop.permute.xlu0 %1834
      %1836 = vrot.lane.b32.xlu0 %v1741, 12
      %v1837 = vpop.permute.xlu0 %1836
      %1870 = vst.msk [vmem:[%s1293] sm:$0xff] %vm866, %v1775
      %1871 = vst.msk [vmem:[%s1293 + $0x8] sm:$0xff] %vm866, %v1777
      %1872 = vst.msk [vmem:[%s1293 + $0x10] sm:$0xff] %vm866, %v1779
      %1873 = vst.msk [vmem:[%s1293 + $0x18] sm:$0xff] %vm866, %v1781
      %1874 = vst.msk [vmem:[%s1293 + $0x20] sm:$0xff] %vm866, %v1783
      %1875 = vst.msk [vmem:[%s1293 + $0x28] sm:$0xff] %vm866, %v1785
      %1876 = vst.msk [vmem:[%s1293 + $0x30] sm:$0xff] %vm866, %v1787
      %1877 = vst.msk [vmem:[%s1293 + $0x38] sm:$0xff] %vm866, %v1789
      %1878 = vst.msk [vmem:[%s1293 + $0x40] sm:$0xff] %vm866, %v1791
      %1879 = vst.msk [vmem:[%s1293 + $0x48] sm:$0xff] %vm866, %v1793
      %1880 = vst.msk [vmem:[%s1293 + $0x50] sm:$0xff] %vm866, %v1795
      %1881 = vst.msk [vmem:[%s1293 + $0x58] sm:$0xff] %vm866, %v1797
      %1882 = vst.msk [vmem:[%s1293 + $0x60] sm:$0xff] %vm866, %v1799
      %1883 = vst.msk [vmem:[%s1293 + $0x68] sm:$0xff] %vm866, %v1801
      %1884 = vst.msk [vmem:[%s1293 + $0x70] sm:$0xff] %vm866, %v1803
      %1885 = vst.msk [vmem:[%s1293 + $0x78] sm:$0xff] %vm866, %v1805
      %1886 = vst.msk [vmem:[%s1293 + $0x80] sm:$0xff] %vm866, %v1807
      %1887 = vst.msk [vmem:[%s1293 + $0x88] sm:$0xff] %vm866, %v1809
      %1888 = vst.msk [vmem:[%s1293 + $0x90] sm:$0xff] %vm866, %v1811
      %1889 = vst.msk [vmem:[%s1293 + $0x98] sm:$0xff] %vm866, %v1813
      %1890 = vst.msk [vmem:[%s1293 + $0xa0] sm:$0xff] %vm866, %v1815
      %1891 = vst.msk [vmem:[%s1293 + $0xa8] sm:$0xff] %vm866, %v1817
      %1892 = vst.msk [vmem:[%s1293 + $0xb0] sm:$0xff] %vm866, %v1819
      %1893 = vst.msk [vmem:[%s1293 + $0xb8] sm:$0xff] %vm866, %v1821
      %1894 = vst.msk [vmem:[%s1293 + $0xc0] sm:$0xff] %vm866, %v1823
      %1895 = vst.msk [vmem:[%s1293 + $0xc8] sm:$0xff] %vm866, %v1825
      %1896 = vst.msk [vmem:[%s1293 + $0xd0] sm:$0xff] %vm866, %v1827
      %1897 = vst.msk [vmem:[%s1293 + $0xd8] sm:$0xff] %vm866, %v1829
      %1898 = vst.msk [vmem:[%s1293 + $0xe0] sm:$0xff] %vm866, %v1831
      %1899 = vst.msk [vmem:[%s1293 + $0xe8] sm:$0xff] %vm866, %v1833
      %1900 = vst.msk [vmem:[%s1293 + $0xf0] sm:$0xff] %vm866, %v1835
      %1901 = vst.msk [vmem:[%s1293 + $0xf8] sm:$0xff] %vm866, %v1837
      %v1902 = vld [vmem:[%s1293] sm:$0xff]
      %v1903 = vld [vmem:[%s1293 + $0x8] sm:$0xff]
      %v1904 = vld [vmem:[%s1293 + $0x10] sm:$0xff]
      %v1905 = vld [vmem:[%s1293 + $0x18] sm:$0xff]
      %v1906 = vld [vmem:[%s1293 + $0x20] sm:$0xff]
      %v1907 = vld [vmem:[%s1293 + $0x28] sm:$0xff]
      %v1908 = vld [vmem:[%s1293 + $0x30] sm:$0xff]
      %v1909 = vld [vmem:[%s1293 + $0x38] sm:$0xff]
      %v1910 = vld [vmem:[%s1293 + $0x40] sm:$0xff]
      %v1911 = vld [vmem:[%s1293 + $0x48] sm:$0xff]
      %v1912 = vld [vmem:[%s1293 + $0x50] sm:$0xff]
      %v1913 = vld [vmem:[%s1293 + $0x58] sm:$0xff]
      %v1914 = vld [vmem:[%s1293 + $0x60] sm:$0xff]
      %v1915 = vld [vmem:[%s1293 + $0x68] sm:$0xff]
      %v1916 = vld [vmem:[%s1293 + $0x70] sm:$0xff]
      %v1917 = vld [vmem:[%s1293 + $0x78] sm:$0xff]
      %v1918 = vld [vmem:[%s1293 + $0x80] sm:$0xff]
      %v1919 = vld [vmem:[%s1293 + $0x88] sm:$0xff]
      %v1920 = vld [vmem:[%s1293 + $0x90] sm:$0xff]
      %v1921 = vld [vmem:[%s1293 + $0x98] sm:$0xff]
      %v1922 = vld [vmem:[%s1293 + $0xa0] sm:$0xff]
      %v1923 = vld [vmem:[%s1293 + $0xa8] sm:$0xff]
      %v1924 = vld [vmem:[%s1293 + $0xb0] sm:$0xff]
      %v1925 = vld [vmem:[%s1293 + $0xb8] sm:$0xff]
      %v1926 = vld [vmem:[%s1293 + $0xc0] sm:$0xff]
      %v1927 = vld [vmem:[%s1293 + $0xc8] sm:$0xff]
      %v1928 = vld [vmem:[%s1293 + $0xd0] sm:$0xff]
      %v1929 = vld [vmem:[%s1293 + $0xd8] sm:$0xff]
      %v1930 = vld [vmem:[%s1293 + $0xe0] sm:$0xff]
      %v1931 = vld [vmem:[%s1293 + $0xe8] sm:$0xff]
      %v1932 = vld [vmem:[%s1293 + $0xf0] sm:$0xff]
      %v1933 = vld [vmem:[%s1293 + $0xf8] sm:$0xff]
      %s1934 = scalar_lea.vmem %s228, 16
      %v1935 = vld [vmem:[%s1934] sm:$0xff]
      %v1936 = vld [vmem:[%s1934 + $0x8] sm:$0xff]
      %v1938 = vsel %vm939, %v1902, 0
      %v1941 = vsel %vm939, %v1903, 0
      %v1944 = vsel %vm939, %v1904, 0
      %v1947 = vsel %vm939, %v1905, 0
      %v1950 = vsel %vm939, %v1906, 0
      %v1953 = vsel %vm939, %v1907, 0
      %v1956 = vsel %vm939, %v1908, 0
      %v1959 = vsel %vm939, %v1909, 0
      %v1962 = vsel %vm939, %v1910, 0
      %v1965 = vsel %vm939, %v1911, 0
      %v1968 = vsel %vm939, %v1912, 0
      %v1971 = vsel %vm939, %v1913, 0
      %v1974 = vsel %vm939, %v1914, 0
      %v1977 = vsel %vm939, %v1915, 0
      %v1980 = vsel %vm939, %v1916, 0
      %v1983 = vsel %vm939, %v1917, 0
      %v1986 = vsel %vm939, %v1918, 0
      %v1989 = vsel %vm939, %v1919, 0
      %v1992 = vsel %vm939, %v1920, 0
      %v1995 = vsel %vm939, %v1921, 0
      %v1998 = vsel %vm939, %v1922, 0
      %v2001 = vsel %vm939, %v1923, 0
      %v2004 = vsel %vm939, %v1924, 0
      %v2007 = vsel %vm939, %v1925, 0
      %v2010 = vsel %vm939, %v1926, 0
      %v2013 = vsel %vm939, %v1927, 0
      %v2016 = vsel %vm939, %v1928, 0
      %v2019 = vsel %vm939, %v1929, 0
      %v2022 = vsel %vm939, %v1930, 0
      %v2025 = vsel %vm939, %v1931, 0
      %v2028 = vsel %vm939, %v1932, 0
      %v2031 = vsel %vm939, %v1933, 0
      %2033 = vmatprep.subr.mxu0 0.0
      %2034 = vmatpush1.msra.mxu0 %v1935
      %2035 = vmatprep.subr.mxu0 0.0
      %2036 = vmatpush1.msra.mxu0 %v1936
      %2037 = vmatprep.subr.mxu0 0.0
      %2038 = vmatpush1.msra.mxu0 0.0
      %2039 = vmatprep.subr.mxu0 0.0
      %2040 = vmatpush1.msra.mxu0 0.0
      %2041 = vmatprep.subr.mxu0 0.0
      %2042 = vmatpush1.msra.mxu0 0.0
      %2043 = vmatprep.subr.mxu0 0.0
      %2044 = vmatpush1.msra.mxu0 0.0
      %2045 = vmatprep.subr.mxu0 0.0
      %2046 = vmatpush1.msra.mxu0 0.0
      %2047 = vmatprep.subr.mxu0 0.0
      %2048 = vmatpush1.msra.mxu0 0.0
      %2049 = vmatprep.subr.mxu0 0.0
      %2050 = vmatpush1.msra.mxu0 0.0
      %2051 = vmatprep.subr.mxu0 0.0
      %2052 = vmatpush1.msra.mxu0 0.0
      %2053 = vmatprep.subr.mxu0 0.0
      %2054 = vmatpush1.msra.mxu0 0.0
      %2055 = vmatprep.subr.mxu0 0.0
      %2056 = vmatpush1.msra.mxu0 0.0
      %2057 = vmatprep.subr.mxu0 0.0
      %2058 = vmatpush1.msra.mxu0 0.0
      %2059 = vmatprep.subr.mxu0 0.0
      %2060 = vmatpush1.msra.mxu0 0.0
      %2061 = vmatprep.subr.mxu0 0.0
      %2062 = vmatpush1.msra.mxu0 0.0
      %2063 = vmatprep.subr.mxu0 0.0
      %2064 = vmatpush1.msra.mxu0 0.0
      %2065 = vmatprep.subr.mxu0 0.0
      %2066 = vmatpush1.msra.mxu0 0.0
      %2067 = vmatprep.subr.mxu0 0.0
      %2068 = vmatpush1.msra.mxu0 0.0
      %2069 = vmatprep.subr.mxu0 0.0
      %2070 = vmatpush1.msra.mxu0 0.0
      %2071 = vmatprep.subr.mxu0 0.0
      %2072 = vmatpush1.msra.mxu0 0.0
      %2073 = vmatprep.subr.mxu0 0.0
      %2074 = vmatpush1.msra.mxu0 0.0
      %2075 = vmatprep.subr.mxu0 0.0
      %2076 = vmatpush1.msra.mxu0 0.0
      %2077 = vmatprep.subr.mxu0 0.0
      %2078 = vmatpush1.msra.mxu0 0.0
      %2079 = vmatprep.subr.mxu0 0.0
      %2080 = vmatpush1.msra.mxu0 0.0
      %2081 = vmatprep.subr.mxu0 0.0
      %2082 = vmatpush1.msra.mxu0 0.0
      %2083 = vmatprep.subr.mxu0 0.0
      %2084 = vmatpush1.msra.mxu0 0.0
      %2085 = vmatprep.subr.mxu0 0.0
      %2086 = vmatpush1.msra.mxu0 0.0
      %2087 = vmatprep.subr.mxu0 0.0
      %2088 = vmatpush1.msra.mxu0 0.0
      %2089 = vmatprep.subr.mxu0 0.0
      %2090 = vmatpush1.msra.mxu0 0.0
      %2091 = vmatprep.subr.mxu0 0.0
      %2092 = vmatpush1.msra.mxu0 0.0
      %2093 = vmatprep.subr.mxu0 0.0
      %2094 = vmatpush1.msra.mxu0 0.0
      %2095 = vmatprep.subr.mxu0 0.0
      %2096 = vmatpush1.msra.mxu0 0.0
      %2097 = vmatprep.mubr.f32.mxu0 0.0
      %2098 = vmatmul.mubr.f32.gmra.mrb[0].mxu0 %v1938
      %v2099 = vpop.f32.mrb[0].mxu0
      %v2100 = vadd.f32 %v937, %v2099
      %v2101 = vpop.f32.mrb[0].mxu0
      %2102 = vmatprep.mubr.f32.mxu0 0.0
      %2103 = vmatmul.mubr.f32.gmra.mrb[0].mxu0 %v1941
      %v2104 = vpop.f32.mrb[0].mxu0
      %v2105 = vadd.f32 %v937, %v2104
      %v2106 = vpop.f32.mrb[0].mxu0
      %2107 = vmatprep.mubr.f32.mxu0 0.0
      %2108 = vmatmul.mubr.f32.gmra.mrb[0].mxu0 %v1944
      %v2109 = vpop.f32.mrb[0].mxu0
      %v2110 = vadd.f32 %v937, %v2109
      %v2111 = vpop.f32.mrb[0].mxu0
      %2112 = vmatprep.mubr.f32.mxu0 0.0
      %2113 = vmatmul.mubr.f32.gmra.mrb[0].mxu0 %v1947
      %v2114 = vpop.f32.mrb[0].mxu0
      %v2115 = vadd.f32 %v937, %v2114
      %v2116 = vpop.f32.mrb[0].mxu0
      %2117 = vmatprep.mubr.f32.mxu0 0.0
      %2118 = vmatmul.mubr.f32.gmra.mrb[0].mxu0 %v1950
      %v2119 = vpop.f32.mrb[0].mxu0
      %v2120 = vadd.f32 %v937, %v2119
      %v2121 = vpop.f32.mrb[0].mxu0
      %2122 = vmatprep.mubr.f32.mxu0 0.0
      %2123 = vmatmul.mubr.f32.gmra.mrb[0].mxu0 %v1953
      %v2124 = vpop.f32.mrb[0].mxu0
      %v2125 = vadd.f32 %v937, %v2124
      %v2126 = vpop.f32.mrb[0].mxu0
      %2127 = vmatprep.mubr.f32.mxu0 0.0
      %2128 = vmatmul.mubr.f32.gmra.mrb[0].mxu0 %v1956
      %v2129 = vpop.f32.mrb[0].mxu0
      %v2130 = vadd.f32 %v937, %v2129
      %v2131 = vpop.f32.mrb[0].mxu0
      %2132 = vmatprep.mubr.f32.mxu0 0.0
      %2133 = vmatmul.mubr.f32.gmra.mrb[0].mxu0 %v1959
      %v2134 = vpop.f32.mrb[0].mxu0
      %v2135 = vadd.f32 %v937, %v2134
      %v2136 = vpop.f32.mrb[0].mxu0
      %2137 = vmatprep.mubr.f32.mxu0 0.0
      %2138 = vmatmul.mubr.f32.gmra.mrb[0].mxu0 %v1962
      %v2139 = vpop.f32.mrb[0].mxu0
      %v2140 = vadd.f32 %v937, %v2139
      %v2141 = vpop.f32.mrb[0].mxu0
      %2142 = vmatprep.mubr.f32.mxu0 0.0
      %2143 = vmatmul.mubr.f32.gmra.mrb[0].mxu0 %v1965
      %v2144 = vpop.f32.mrb[0].mxu0
      %v2145 = vadd.f32 %v937, %v2144
      %v2146 = vpop.f32.mrb[0].mxu0
      %2147 = vmatprep.mubr.f32.mxu0 0.0
      %2148 = vmatmul.mubr.f32.gmra.mrb[0].mxu0 %v1968
      %v2149 = vpop.f32.mrb[0].mxu0
      %v2150 = vadd.f32 %v937, %v2149
      %v2151 = vpop.f32.mrb[0].mxu0
      %2152 = vmatprep.mubr.f32.mxu0 0.0
      %2153 = vmatmul.mubr.f32.gmra.mrb[0].mxu0 %v1971
      %v2154 = vpop.f32.mrb[0].mxu0
      %v2155 = vadd.f32 %v937, %v2154
      %v2156 = vpop.f32.mrb[0].mxu0
      %2157 = vmatprep.mubr.f32.mxu0 0.0
      %2158 = vmatmul.mubr.f32.gmra.mrb[0].mxu0 %v1974
      %v2159 = vpop.f32.mrb[0].mxu0
      %v2160 = vadd.f32 %v937, %v2159
      %v2161 = vpop.f32.mrb[0].mxu0
      %2162 = vmatprep.mubr.f32.mxu0 0.0
      %2163 = vmatmul.mubr.f32.gmra.mrb[0].mxu0 %v1977
      %v2164 = vpop.f32.mrb[0].mxu0
      %v2165 = vadd.f32 %v937, %v2164
      %v2166 = vpop.f32.mrb[0].mxu0
      %2167 = vmatprep.mubr.f32.mxu0 0.0
      %2168 = vmatmul.mubr.f32.gmra.mrb[0].mxu0 %v1980
      %v2169 = vpop.f32.mrb[0].mxu0
      %v2170 = vadd.f32 %v937, %v2169
      %v2171 = vpop.f32.mrb[0].mxu0
      %2172 = vmatprep.mubr.f32.mxu0 0.0
      %2173 = vmatmul.mubr.f32.gmra.mrb[0].mxu0 %v1983
      %v2174 = vpop.f32.mrb[0].mxu0
      %v2175 = vadd.f32 %v937, %v2174
      %v2176 = vpop.f32.mrb[0].mxu0
      %2177 = vmatprep.mubr.f32.mxu0 0.0
      %2178 = vmatmul.mubr.f32.gmra.mrb[0].mxu0 %v1986
      %v2179 = vpop.f32.mrb[0].mxu0
      %v2180 = vadd.f32 %v937, %v2179
      %v2181 = vpop.f32.mrb[0].mxu0
      %2182 = vmatprep.mubr.f32.mxu0 0.0
      %2183 = vmatmul.mubr.f32.gmra.mrb[0].mxu0 %v1989
      %v2184 = vpop.f32.mrb[0].mxu0
      %v2185 = vadd.f32 %v937, %v2184
      %v2186 = vpop.f32.mrb[0].mxu0
      %2187 = vmatprep.mubr.f32.mxu0 0.0
      %2188 = vmatmul.mubr.f32.gmra.mrb[0].mxu0 %v1992
      %v2189 = vpop.f32.mrb[0].mxu0
      %v2190 = vadd.f32 %v937, %v2189
      %v2191 = vpop.f32.mrb[0].mxu0
      %2192 = vmatprep.mubr.f32.mxu0 0.0
      %2193 = vmatmul.mubr.f32.gmra.mrb[0].mxu0 %v1995
      %v2194 = vpop.f32.mrb[0].mxu0
      %v2195 = vadd.f32 %v937, %v2194
      %v2196 = vpop.f32.mrb[0].mxu0
      %2197 = vmatprep.mubr.f32.mxu0 0.0
      %2198 = vmatmul.mubr.f32.gmra.mrb[0].mxu0 %v1998
      %v2199 = vpop.f32.mrb[0].mxu0
      %v2200 = vadd.f32 %v937, %v2199
      %v2201 = vpop.f32.mrb[0].mxu0
      %2202 = vmatprep.mubr.f32.mxu0 0.0
      %2203 = vmatmul.mubr.f32.gmra.mrb[0].mxu0 %v2001
      %v2204 = vpop.f32.mrb[0].mxu0
      %v2205 = vadd.f32 %v937, %v2204
      %v2206 = vpop.f32.mrb[0].mxu0
      %2207 = vmatprep.mubr.f32.mxu0 0.0
      %2208 = vmatmul.mubr.f32.gmra.mrb[0].mxu0 %v2004
      %v2209 = vpop.f32.mrb[0].mxu0
      %v2210 = vadd.f32 %v937, %v2209
      %v2211 = vpop.f32.mrb[0].mxu0
      %2212 = vmatprep.mubr.f32.mxu0 0.0
      %2213 = vmatmul.mubr.f32.gmra.mrb[0].mxu0 %v2007
      %v2214 = vpop.f32.mrb[0].mxu0
      %v2215 = vadd.f32 %v937, %v2214
      %v2216 = vpop.f32.mrb[0].mxu0
      %2217 = vmatprep.mubr.f32.mxu0 0.0
      %2218 = vmatmul.mubr.f32.gmra.mrb[0].mxu0 %v2010
      %v2219 = vpop.f32.mrb[0].mxu0
      %v2220 = vadd.f32 %v937, %v2219
      %v2221 = vpop.f32.mrb[0].mxu0
      %2222 = vmatprep.mubr.f32.mxu0 0.0
      %2223 = vmatmul.mubr.f32.gmra.mrb[0].mxu0 %v2013
      %v2224 = vpop.f32.mrb[0].mxu0
      %v2225 = vadd.f32 %v937, %v2224
      %v2226 = vpop.f32.mrb[0].mxu0
      %2227 = vmatprep.mubr.f32.mxu0 0.0
      %2228 = vmatmul.mubr.f32.gmra.mrb[0].mxu0 %v2016
      %v2229 = vpop.f32.mrb[0].mxu0
      %v2230 = vadd.f32 %v937, %v2229
      %v2231 = vpop.f32.mrb[0].mxu0
      %2232 = vmatprep.mubr.f32.mxu0 0.0
      %2233 = vmatmul.mubr.f32.gmra.mrb[0].mxu0 %v2019
      %v2234 = vpop.f32.mrb[0].mxu0
      %v2235 = vadd.f32 %v937, %v2234
      %v2236 = vpop.f32.mrb[0].mxu0
      %2237 = vmatprep.mubr.f32.mxu0 0.0
      %2238 = vmatmul.mubr.f32.gmra.mrb[0].mxu0 %v2022
      %v2239 = vpop.f32.mrb[0].mxu0
      %v2240 = vadd.f32 %v937, %v2239
      %v2241 = vpop.f32.mrb[0].mxu0
      %2242 = vmatprep.mubr.f32.mxu0 0.0
      %2243 = vmatmul.mubr.f32.gmra.mrb[0].mxu0 %v2025
      %v2244 = vpop.f32.mrb[0].mxu0
      %v2245 = vadd.f32 %v937, %v2244
      %v2246 = vpop.f32.mrb[0].mxu0
      %2247 = vmatprep.mubr.f32.mxu0 0.0
      %2248 = vmatmul.mubr.f32.gmra.mrb[0].mxu0 %v2028
      %v2249 = vpop.f32.mrb[0].mxu0
      %v2250 = vadd.f32 %v937, %v2249
      %v2251 = vpop.f32.mrb[0].mxu0
      %2252 = vmatprep.mubr.f32.mxu0 0.0
      %2253 = vmatmul.mubr.f32.gmra.mrb[0].mxu0 %v2031
      %v2254 = vpop.f32.mrb[0].mxu0
      %v2255 = vadd.f32 %v937, %v2254
      %v2256 = vpop.f32.mrb[0].mxu0
      %2257 = vdwg.mxu0
      %v2258 = vld [vmem:[%s512] sm:$0xff]
      %v2259 = vld [vmem:[%s512 + $0x8] sm:$0xff]
      %v2260 = vld [vmem:[%s512 + $0x18] sm:$0xff]
      %v2261 = vld [vmem:[%s512 + $0x20] sm:$0xff]
      %v2262 = vld [vmem:[%s512 + $0x30] sm:$0xff]
      %v2263 = vld [vmem:[%s512 + $0x38] sm:$0xff]
      %v2264 = vld [vmem:[%s512 + $0x48] sm:$0xff]
      %v2265 = vld [vmem:[%s512 + $0x50] sm:$0xff]
      %v2266 = vld [vmem:[%s512 + $0x60] sm:$0xff]
      %v2267 = vld [vmem:[%s512 + $0x68] sm:$0xff]
      %v2268 = vld [vmem:[%s512 + $0x78] sm:$0xff]
      %v2269 = vld [vmem:[%s512 + $0x80] sm:$0xff]
      %v2270 = vld [vmem:[%s512 + $0x90] sm:$0xff]
      %v2271 = vld [vmem:[%s512 + $0x98] sm:$0xff]
      %v2272 = vld [vmem:[%s512 + $0xa8] sm:$0xff]
      %v2273 = vld [vmem:[%s512 + $0xb0] sm:$0xff]
      %v2274 = vld [vmem:[%s512 + $0xc0] sm:$0xff]
      %v2275 = vld [vmem:[%s512 + $0xc8] sm:$0xff]
      %v2276 = vld [vmem:[%s512 + $0xd8] sm:$0xff]
      %v2277 = vld [vmem:[%s512 + $0xe0] sm:$0xff]
      %v2278 = vld [vmem:[%s512 + $0xf0] sm:$0xff]
      %v2279 = vld [vmem:[%s512 + $0xf8] sm:$0xff]
      %v2280 = vld [vmem:[%s512 + $0x108] sm:$0xff]
      %v2281 = vld [vmem:[%s512 + $0x110] sm:$0xff]
      %v2282 = vld [vmem:[%s512 + $0x120] sm:$0xff]
      %v2283 = vld [vmem:[%s512 + $0x128] sm:$0xff]
      %v2284 = vld [vmem:[%s512 + $0x138] sm:$0xff]
      %v2285 = vld [vmem:[%s512 + $0x140] sm:$0xff]
      %v2286 = vld [vmem:[%s512 + $0x150] sm:$0xff]
      %v2287 = vld [vmem:[%s512 + $0x158] sm:$0xff]
      %v2288 = vld [vmem:[%s512 + $0x168] sm:$0xff]
      %v2289 = vld [vmem:[%s512 + $0x170] sm:$0xff]
      %2290 = vst.msk [vmem:[#allocation2] sm:$0xff] %vm286, %v2258
      %2291 = vst.msk [vmem:[#allocation2 + $0x8] sm:$0xff] %vm286, %v2259
      %2292 = vst.msk [vmem:[#allocation2 + $0x10] sm:$0xff] %vm286, %v2260
      %2293 = vst.msk [vmem:[#allocation2 + $0x18] sm:$0xff] %vm286, %v2261
      %2294 = vst.msk [vmem:[#allocation2 + $0x20] sm:$0xff] %vm286, %v2262
      %2295 = vst.msk [vmem:[#allocation2 + $0x28] sm:$0xff] %vm286, %v2263
      %2296 = vst.msk [vmem:[#allocation2 + $0x30] sm:$0xff] %vm286, %v2264
      %2297 = vst.msk [vmem:[#allocation2 + $0x38] sm:$0xff] %vm286, %v2265
      %2298 = vst.msk [vmem:[#allocation2 + $0x40] sm:$0xff] %vm286, %v2266
      %2299 = vst.msk [vmem:[#allocation2 + $0x48] sm:$0xff] %vm286, %v2267
      %2300 = vst.msk [vmem:[#allocation2 + $0x50] sm:$0xff] %vm286, %v2268
      %2301 = vst.msk [vmem:[#allocation2 + $0x58] sm:$0xff] %vm286, %v2269
      %2302 = vst.msk [vmem:[#allocation2 + $0x60] sm:$0xff] %vm286, %v2270
      %2303 = vst.msk [vmem:[#allocation2 + $0x68] sm:$0xff] %vm286, %v2271
      %2304 = vst.msk [vmem:[#allocation2 + $0x70] sm:$0xff] %vm286, %v2272
      %2305 = vst.msk [vmem:[#allocation2 + $0x78] sm:$0xff] %vm286, %v2273
      %2306 = vst.msk [vmem:[#allocation2 + $0x80] sm:$0xff] %vm286, %v2274
      %2307 = vst.msk [vmem:[#allocation2 + $0x88] sm:$0xff] %vm286, %v2275
      %2308 = vst.msk [vmem:[#allocation2 + $0x90] sm:$0xff] %vm286, %v2276
      %2309 = vst.msk [vmem:[#allocation2 + $0x98] sm:$0xff] %vm286, %v2277
      %2310 = vst.msk [vmem:[#allocation2 + $0xa0] sm:$0xff] %vm286, %v2278
      %2311 = vst.msk [vmem:[#allocation2 + $0xa8] sm:$0xff] %vm286, %v2279
      %2312 = vst.msk [vmem:[#allocation2 + $0xb0] sm:$0xff] %vm286, %v2280
      %2313 = vst.msk [vmem:[#allocation2 + $0xb8] sm:$0xff] %vm286, %v2281
      %2314 = vst.msk [vmem:[#allocation2 + $0xc0] sm:$0xff] %vm286, %v2282
      %2315 = vst.msk [vmem:[#allocation2 + $0xc8] sm:$0xff] %vm286, %v2283
      %2316 = vst.msk [vmem:[#allocation2 + $0xd0] sm:$0xff] %vm286, %v2284
      %2317 = vst.msk [vmem:[#allocation2 + $0xd8] sm:$0xff] %vm286, %v2285
      %2318 = vst.msk [vmem:[#allocation2 + $0xe0] sm:$0xff] %vm286, %v2286
      %2319 = vst.msk [vmem:[#allocation2 + $0xe8] sm:$0xff] %vm286, %v2287
      %2320 = vst.msk [vmem:[#allocation2 + $0xf0] sm:$0xff] %vm286, %v2288
      %2321 = vst.msk [vmem:[#allocation2 + $0xf8] sm:$0xff] %vm286, %v2289
      %v2322 = vld [vmem:[%s512 + $0x1] sm:$0xff]
      %v2323 = vld [vmem:[%s512 + $0x9] sm:$0xff]
      %v2324 = vld [vmem:[%s512 + $0x19] sm:$0xff]
      %v2325 = vld [vmem:[%s512 + $0x21] sm:$0xff]
      %v2326 = vld [vmem:[%s512 + $0x31] sm:$0xff]
      %v2327 = vld [vmem:[%s512 + $0x39] sm:$0xff]
      %v2328 = vld [vmem:[%s512 + $0x49] sm:$0xff]
      %v2329 = vld [vmem:[%s512 + $0x51] sm:$0xff]
      %v2330 = vld [vmem:[%s512 + $0x61] sm:$0xff]
      %v2331 = vld [vmem:[%s512 + $0x69] sm:$0xff]
      %v2332 = vld [vmem:[%s512 + $0x79] sm:$0xff]
      %v2333 = vld [vmem:[%s512 + $0x81] sm:$0xff]
      %v2334 = vld [vmem:[%s512 + $0x91] sm:$0xff]
      %v2335 = vld [vmem:[%s512 + $0x99] sm:$0xff]
      %v2336 = vld [vmem:[%s512 + $0xa9] sm:$0xff]
      %v2337 = vld [vmem:[%s512 + $0xb1] sm:$0xff]
      %v2338 = vld [vmem:[%s512 + $0xc1] sm:$0xff]
      %v2339 = vld [vmem:[%s512 + $0xc9] sm:$0xff]
      %v2340 = vld [vmem:[%s512 + $0xd9] sm:$0xff]
      %v2341 = vld [vmem:[%s512 + $0xe1] sm:$0xff]
      %v2342 = vld [vmem:[%s512 + $0xf1] sm:$0xff]
      %v2343 = vld [vmem:[%s512 + $0xf9] sm:$0xff]
      %v2344 = vld [vmem:[%s512 + $0x109] sm:$0xff]
      %v2345 = vld [vmem:[%s512 + $0x111] sm:$0xff]
      %v2346 = vld [vmem:[%s512 + $0x121] sm:$0xff]
      %v2347 = vld [vmem:[%s512 + $0x129] sm:$0xff]
      %v2348 = vld [vmem:[%s512 + $0x139] sm:$0xff]
      %v2349 = vld [vmem:[%s512 + $0x141] sm:$0xff]
      %v2350 = vld [vmem:[%s512 + $0x151] sm:$0xff]
      %v2351 = vld [vmem:[%s512 + $0x159] sm:$0xff]
      %v2352 = vld [vmem:[%s512 + $0x169] sm:$0xff]
      %v2353 = vld [vmem:[%s512 + $0x171] sm:$0xff]
      %2386 = vrot.lane.b32.xlu0 %v2322, 4
      %v2387 = vpop.permute.xlu0 %2386
      %2388 = vrot.lane.b32.xlu0 %v2323, 4
      %v2389 = vpop.permute.xlu0 %2388
      %2390 = vrot.lane.b32.xlu0 %v2324, 4
      %v2391 = vpop.permute.xlu0 %2390
      %2392 = vrot.lane.b32.xlu0 %v2325, 4
      %v2393 = vpop.permute.xlu0 %2392
      %2394 = vrot.lane.b32.xlu0 %v2326, 4
      %v2395 = vpop.permute.xlu0 %2394
      %2396 = vrot.lane.b32.xlu0 %v2327, 4
      %v2397 = vpop.permute.xlu0 %2396
      %2398 = vrot.lane.b32.xlu0 %v2328, 4
      %v2399 = vpop.permute.xlu0 %2398
      %2400 = vrot.lane.b32.xlu0 %v2329, 4
      %v2401 = vpop.permute.xlu0 %2400
      %2402 = vrot.lane.b32.xlu0 %v2330, 4
      %v2403 = vpop.permute.xlu0 %2402
      %2404 = vrot.lane.b32.xlu0 %v2331, 4
      %v2405 = vpop.permute.xlu0 %2404
      %2406 = vrot.lane.b32.xlu0 %v2332, 4
      %v2407 = vpop.permute.xlu0 %2406
      %2408 = vrot.lane.b32.xlu0 %v2333, 4
      %v2409 = vpop.permute.xlu0 %2408
      %2410 = vrot.lane.b32.xlu0 %v2334, 4
      %v2411 = vpop.permute.xlu0 %2410
      %2412 = vrot.lane.b32.xlu0 %v2335, 4
      %v2413 = vpop.permute.xlu0 %2412
      %2414 = vrot.lane.b32.xlu0 %v2336, 4
      %v2415 = vpop.permute.xlu0 %2414
      %2416 = vrot.lane.b32.xlu0 %v2337, 4
      %v2417 = vpop.permute.xlu0 %2416
      %2418 = vrot.lane.b32.xlu0 %v2338, 4
      %v2419 = vpop.permute.xlu0 %2418
      %2420 = vrot.lane.b32.xlu0 %v2339, 4
      %v2421 = vpop.permute.xlu0 %2420
      %2422 = vrot.lane.b32.xlu0 %v2340, 4
      %v2423 = vpop.permute.xlu0 %2422
      %2424 = vrot.lane.b32.xlu0 %v2341, 4
      %v2425 = vpop.permute.xlu0 %2424
      %2426 = vrot.lane.b32.xlu0 %v2342, 4
      %v2427 = vpop.permute.xlu0 %2426
      %2428 = vrot.lane.b32.xlu0 %v2343, 4
      %v2429 = vpop.permute.xlu0 %2428
      %2430 = vrot.lane.b32.xlu0 %v2344, 4
      %v2431 = vpop.permute.xlu0 %2430
      %2432 = vrot.lane.b32.xlu0 %v2345, 4
      %v2433 = vpop.permute.xlu0 %2432
      %2434 = vrot.lane.b32.xlu0 %v2346, 4
      %v2435 = vpop.permute.xlu0 %2434
      %2436 = vrot.lane.b32.xlu0 %v2347, 4
      %v2437 = vpop.permute.xlu0 %2436
      %2438 = vrot.lane.b32.xlu0 %v2348, 4
      %v2439 = vpop.permute.xlu0 %2438
      %2440 = vrot.lane.b32.xlu0 %v2349, 4
      %v2441 = vpop.permute.xlu0 %2440
      %2442 = vrot.lane.b32.xlu0 %v2350, 4
      %v2443 = vpop.permute.xlu0 %2442
      %2444 = vrot.lane.b32.xlu0 %v2351, 4
      %v2445 = vpop.permute.xlu0 %2444
      %2446 = vrot.lane.b32.xlu0 %v2352, 4
      %v2447 = vpop.permute.xlu0 %2446
      %2448 = vrot.lane.b32.xlu0 %v2353, 4
      %v2449 = vpop.permute.xlu0 %2448
      %2482 = vst.msk [vmem:[#allocation2] sm:$0xff] %vm479, %v2387
      %2483 = vst.msk [vmem:[#allocation2 + $0x8] sm:$0xff] %vm479, %v2389
      %2484 = vst.msk [vmem:[#allocation2 + $0x10] sm:$0xff] %vm479, %v2391
      %2485 = vst.msk [vmem:[#allocation2 + $0x18] sm:$0xff] %vm479, %v2393
      %2486 = vst.msk [vmem:[#allocation2 + $0x20] sm:$0xff] %vm479, %v2395
      %2487 = vst.msk [vmem:[#allocation2 + $0x28] sm:$0xff] %vm479, %v2397
      %2488 = vst.msk [vmem:[#allocation2 + $0x30] sm:$0xff] %vm479, %v2399
      %2489 = vst.msk [vmem:[#allocation2 + $0x38] sm:$0xff] %vm479, %v2401
      %2490 = vst.msk [vmem:[#allocation2 + $0x40] sm:$0xff] %vm479, %v2403
      %2491 = vst.msk [vmem:[#allocation2 + $0x48] sm:$0xff] %vm479, %v2405
      %2492 = vst.msk [vmem:[#allocation2 + $0x50] sm:$0xff] %vm479, %v2407
      %2493 = vst.msk [vmem:[#allocation2 + $0x58] sm:$0xff] %vm479, %v2409
      %2494 = vst.msk [vmem:[#allocation2 + $0x60] sm:$0xff] %vm479, %v2411
      %2495 = vst.msk [vmem:[#allocation2 + $0x68] sm:$0xff] %vm479, %v2413
      %2496 = vst.msk [vmem:[#allocation2 + $0x70] sm:$0xff] %vm479, %v2415
      %2497 = vst.msk [vmem:[#allocation2 + $0x78] sm:$0xff] %vm479, %v2417
      %2498 = vst.msk [vmem:[#allocation2 + $0x80] sm:$0xff] %vm479, %v2419
      %2499 = vst.msk [vmem:[#allocation2 + $0x88] sm:$0xff] %vm479, %v2421
      %2500 = vst.msk [vmem:[#allocation2 + $0x90] sm:$0xff] %vm479, %v2423
      %2501 = vst.msk [vmem:[#allocation2 + $0x98] sm:$0xff] %vm479, %v2425
      %2502 = vst.msk [vmem:[#allocation2 + $0xa0] sm:$0xff] %vm479, %v2427
      %2503 = vst.msk [vmem:[#allocation2 + $0xa8] sm:$0xff] %vm479, %v2429
      %2504 = vst.msk [vmem:[#allocation2 + $0xb0] sm:$0xff] %vm479, %v2431
      %2505 = vst.msk [vmem:[#allocation2 + $0xb8] sm:$0xff] %vm479, %v2433
      %2506 = vst.msk [vmem:[#allocation2 + $0xc0] sm:$0xff] %vm479, %v2435
      %2507 = vst.msk [vmem:[#allocation2 + $0xc8] sm:$0xff] %vm479, %v2437
      %2508 = vst.msk [vmem:[#allocation2 + $0xd0] sm:$0xff] %vm479, %v2439
      %2509 = vst.msk [vmem:[#allocation2 + $0xd8] sm:$0xff] %vm479, %v2441
      %2510 = vst.msk [vmem:[#allocation2 + $0xe0] sm:$0xff] %vm479, %v2443
      %2511 = vst.msk [vmem:[#allocation2 + $0xe8] sm:$0xff] %vm479, %v2445
      %2512 = vst.msk [vmem:[#allocation2 + $0xf0] sm:$0xff] %vm479, %v2447
      %2513 = vst.msk [vmem:[#allocation2 + $0xf8] sm:$0xff] %vm479, %v2449
      %s2514 = scalar_lea.vmem %s240, 48
      %v2515 = vld [vmem:[%s2514] sm:$0xff]
      %v2516 = vld [vmem:[%s2514 + $0x8] sm:$0xff]
      %v2517 = vld [vmem:[%s2514 + $0x18] sm:$0xff]
      %v2518 = vld [vmem:[%s2514 + $0x20] sm:$0xff]
      %v2519 = vld [vmem:[%s2514 + $0x30] sm:$0xff]
      %v2520 = vld [vmem:[%s2514 + $0x38] sm:$0xff]
      %v2521 = vld [vmem:[%s2514 + $0x48] sm:$0xff]
      %v2522 = vld [vmem:[%s2514 + $0x50] sm:$0xff]
      %v2523 = vld [vmem:[%s2514 + $0x60] sm:$0xff]
      %v2524 = vld [vmem:[%s2514 + $0x68] sm:$0xff]
      %v2525 = vld [vmem:[%s2514 + $0x78] sm:$0xff]
      %v2526 = vld [vmem:[%s2514 + $0x80] sm:$0xff]
      %v2527 = vld [vmem:[%s2514 + $0x90] sm:$0xff]
      %v2528 = vld [vmem:[%s2514 + $0x98] sm:$0xff]
      %v2529 = vld [vmem:[%s2514 + $0xa8] sm:$0xff]
      %v2530 = vld [vmem:[%s2514 + $0xb0] sm:$0xff]
      %v2531 = vld [vmem:[%s2514 + $0xc0] sm:$0xff]
      %v2532 = vld [vmem:[%s2514 + $0xc8] sm:$0xff]
      %v2533 = vld [vmem:[%s2514 + $0xd8] sm:$0xff]
      %v2534 = vld [vmem:[%s2514 + $0xe0] sm:$0xff]
      %v2535 = vld [vmem:[%s2514 + $0xf0] sm:$0xff]
      %v2536 = vld [vmem:[%s2514 + $0xf8] sm:$0xff]
      %v2537 = vld [vmem:[%s2514 + $0x108] sm:$0xff]
      %v2538 = vld [vmem:[%s2514 + $0x110] sm:$0xff]
      %v2539 = vld [vmem:[%s2514 + $0x120] sm:$0xff]
      %v2540 = vld [vmem:[%s2514 + $0x128] sm:$0xff]
      %v2541 = vld [vmem:[%s2514 + $0x138] sm:$0xff]
      %v2542 = vld [vmem:[%s2514 + $0x140] sm:$0xff]
      %v2543 = vld [vmem:[%s2514 + $0x150] sm:$0xff]
      %v2544 = vld [vmem:[%s2514 + $0x158] sm:$0xff]
      %v2545 = vld [vmem:[%s2514 + $0x168] sm:$0xff]
      %v2546 = vld [vmem:[%s2514 + $0x170] sm:$0xff]
      %2579 = vrot.lane.b32.xlu0 %v2515, 8
      %v2580 = vpop.permute.xlu0 %2579
      %2581 = vrot.lane.b32.xlu0 %v2516, 8
      %v2582 = vpop.permute.xlu0 %2581
      %2583 = vrot.lane.b32.xlu0 %v2517, 8
      %v2584 = vpop.permute.xlu0 %2583
      %2585 = vrot.lane.b32.xlu0 %v2518, 8
      %v2586 = vpop.permute.xlu0 %2585
      %2587 = vrot.lane.b32.xlu0 %v2519, 8
      %v2588 = vpop.permute.xlu0 %2587
      %2589 = vrot.lane.b32.xlu0 %v2520, 8
      %v2590 = vpop.permute.xlu0 %2589
      %2591 = vrot.lane.b32.xlu0 %v2521, 8
      %v2592 = vpop.permute.xlu0 %2591
      %2593 = vrot.lane.b32.xlu0 %v2522, 8
      %v2594 = vpop.permute.xlu0 %2593
      %2595 = vrot.lane.b32.xlu0 %v2523, 8
      %v2596 = vpop.permute.xlu0 %2595
      %2597 = vrot.lane.b32.xlu0 %v2524, 8
      %v2598 = vpop.permute.xlu0 %2597
      %2599 = vrot.lane.b32.xlu0 %v2525, 8
      %v2600 = vpop.permute.xlu0 %2599
      %2601 = vrot.lane.b32.xlu0 %v2526, 8
      %v2602 = vpop.permute.xlu0 %2601
      %2603 = vrot.lane.b32.xlu0 %v2527, 8
      %v2604 = vpop.permute.xlu0 %2603
      %2605 = vrot.lane.b32.xlu0 %v2528, 8
      %v2606 = vpop.permute.xlu0 %2605
      %2607 = vrot.lane.b32.xlu0 %v2529, 8
      %v2608 = vpop.permute.xlu0 %2607
      %2609 = vrot.lane.b32.xlu0 %v2530, 8
      %v2610 = vpop.permute.xlu0 %2609
      %2611 = vrot.lane.b32.xlu0 %v2531, 8
      %v2612 = vpop.permute.xlu0 %2611
      %2613 = vrot.lane.b32.xlu0 %v2532, 8
      %v2614 = vpop.permute.xlu0 %2613
      %2615 = vrot.lane.b32.xlu0 %v2533, 8
      %v2616 = vpop.permute.xlu0 %2615
      %2617 = vrot.lane.b32.xlu0 %v2534, 8
      %v2618 = vpop.permute.xlu0 %2617
      %2619 = vrot.lane.b32.xlu0 %v2535, 8
      %v2620 = vpop.permute.xlu0 %2619
      %2621 = vrot.lane.b32.xlu0 %v2536, 8
      %v2622 = vpop.permute.xlu0 %2621
      %2623 = vrot.lane.b32.xlu0 %v2537, 8
      %v2624 = vpop.permute.xlu0 %2623
      %2625 = vrot.lane.b32.xlu0 %v2538, 8
      %v2626 = vpop.permute.xlu0 %2625
      %2627 = vrot.lane.b32.xlu0 %v2539, 8
      %v2628 = vpop.permute.xlu0 %2627
      %2629 = vrot.lane.b32.xlu0 %v2540, 8
      %v2630 = vpop.permute.xlu0 %2629
      %2631 = vrot.lane.b32.xlu0 %v2541, 8
      %v2632 = vpop.permute.xlu0 %2631
      %2633 = vrot.lane.b32.xlu0 %v2542, 8
      %v2634 = vpop.permute.xlu0 %2633
      %2635 = vrot.lane.b32.xlu0 %v2543, 8
      %v2636 = vpop.permute.xlu0 %2635
      %2637 = vrot.lane.b32.xlu0 %v2544, 8
      %v2638 = vpop.permute.xlu0 %2637
      %2639 = vrot.lane.b32.xlu0 %v2545, 8
      %v2640 = vpop.permute.xlu0 %2639
      %2641 = vrot.lane.b32.xlu0 %v2546, 8
      %v2642 = vpop.permute.xlu0 %2641
      %2675 = vst.msk [vmem:[#allocation2] sm:$0xff] %vm673, %v2580
      %2676 = vst.msk [vmem:[#allocation2 + $0x8] sm:$0xff] %vm673, %v2582
      %2677 = vst.msk [vmem:[#allocation2 + $0x10] sm:$0xff] %vm673, %v2584
      %2678 = vst.msk [vmem:[#allocation2 + $0x18] sm:$0xff] %vm673, %v2586
      %2679 = vst.msk [vmem:[#allocation2 + $0x20] sm:$0xff] %vm673, %v2588
      %2680 = vst.msk [vmem:[#allocation2 + $0x28] sm:$0xff] %vm673, %v2590
      %2681 = vst.msk [vmem:[#allocation2 + $0x30] sm:$0xff] %vm673, %v2592
      %2682 = vst.msk [vmem:[#allocation2 + $0x38] sm:$0xff] %vm673, %v2594
      %2683 = vst.msk [vmem:[#allocation2 + $0x40] sm:$0xff] %vm673, %v2596
      %2684 = vst.msk [vmem:[#allocation2 + $0x48] sm:$0xff] %vm673, %v2598
      %2685 = vst.msk [vmem:[#allocation2 + $0x50] sm:$0xff] %vm673, %v2600
      %2686 = vst.msk [vmem:[#allocation2 + $0x58] sm:$0xff] %vm673, %v2602
      %2687 = vst.msk [vmem:[#allocation2 + $0x60] sm:$0xff] %vm673, %v2604
      %2688 = vst.msk [vmem:[#allocation2 + $0x68] sm:$0xff] %vm673, %v2606
      %2689 = vst.msk [vmem:[#allocation2 + $0x70] sm:$0xff] %vm673, %v2608
      %2690 = vst.msk [vmem:[#allocation2 + $0x78] sm:$0xff] %vm673, %v2610
      %2691 = vst.msk [vmem:[#allocation2 + $0x80] sm:$0xff] %vm673, %v2612
      %2692 = vst.msk [vmem:[#allocation2 + $0x88] sm:$0xff] %vm673, %v2614
      %2693 = vst.msk [vmem:[#allocation2 + $0x90] sm:$0xff] %vm673, %v2616
      %2694 = vst.msk [vmem:[#allocation2 + $0x98] sm:$0xff] %vm673, %v2618
      %2695 = vst.msk [vmem:[#allocation2 + $0xa0] sm:$0xff] %vm673, %v2620
      %2696 = vst.msk [vmem:[#allocation2 + $0xa8] sm:$0xff] %vm673, %v2622
      %2697 = vst.msk [vmem:[#allocation2 + $0xb0] sm:$0xff] %vm673, %v2624
      %2698 = vst.msk [vmem:[#allocation2 + $0xb8] sm:$0xff] %vm673, %v2626
      %2699 = vst.msk [vmem:[#allocation2 + $0xc0] sm:$0xff] %vm673, %v2628
      %2700 = vst.msk [vmem:[#allocation2 + $0xc8] sm:$0xff] %vm673, %v2630
      %2701 = vst.msk [vmem:[#allocation2 + $0xd0] sm:$0xff] %vm673, %v2632
      %2702 = vst.msk [vmem:[#allocation2 + $0xd8] sm:$0xff] %vm673, %v2634
      %2703 = vst.msk [vmem:[#allocation2 + $0xe0] sm:$0xff] %vm673, %v2636
      %2704 = vst.msk [vmem:[#allocation2 + $0xe8] sm:$0xff] %vm673, %v2638
      %2705 = vst.msk [vmem:[#allocation2 + $0xf0] sm:$0xff] %vm673, %v2640
      %2706 = vst.msk [vmem:[#allocation2 + $0xf8] sm:$0xff] %vm673, %v2642
      %v2707 = vld [vmem:[%s2514 + $0x1] sm:$0xff]
      %v2708 = vld [vmem:[%s2514 + $0x9] sm:$0xff]
      %v2709 = vld [vmem:[%s2514 + $0x19] sm:$0xff]
      %v2710 = vld [vmem:[%s2514 + $0x21] sm:$0xff]
      %v2711 = vld [vmem:[%s2514 + $0x31] sm:$0xff]
      %v2712 = vld [vmem:[%s2514 + $0x39] sm:$0xff]
      %v2713 = vld [vmem:[%s2514 + $0x49] sm:$0xff]
      %v2714 = vld [vmem:[%s2514 + $0x51] sm:$0xff]
      %v2715 = vld [vmem:[%s2514 + $0x61] sm:$0xff]
      %v2716 = vld [vmem:[%s2514 + $0x69] sm:$0xff]
      %v2717 = vld [vmem:[%s2514 + $0x79] sm:$0xff]
      %v2718 = vld [vmem:[%s2514 + $0x81] sm:$0xff]
      %v2719 = vld [vmem:[%s2514 + $0x91] sm:$0xff]
      %v2720 = vld [vmem:[%s2514 + $0x99] sm:$0xff]
      %v2721 = vld [vmem:[%s2514 + $0xa9] sm:$0xff]
      %v2722 = vld [vmem:[%s2514 + $0xb1] sm:$0xff]
      %v2723 = vld [vmem:[%s2514 + $0xc1] sm:$0xff]
      %v2724 = vld [vmem:[%s2514 + $0xc9] sm:$0xff]
      %v2725 = vld [vmem:[%s2514 + $0xd9] sm:$0xff]
      %v2726 = vld [vmem:[%s2514 + $0xe1] sm:$0xff]
      %v2727 = vld [vmem:[%s2514 + $0xf1] sm:$0xff]
      %v2728 = vld [vmem:[%s2514 + $0xf9] sm:$0xff]
      %v2729 = vld [vmem:[%s2514 + $0x109] sm:$0xff]
      %v2730 = vld [vmem:[%s2514 + $0x111] sm:$0xff]
      %v2731 = vld [vmem:[%s2514 + $0x121] sm:$0xff]
      %v2732 = vld [vmem:[%s2514 + $0x129] sm:$0xff]
      %v2733 = vld [vmem:[%s2514 + $0x139] sm:$0xff]
      %v2734 = vld [vmem:[%s2514 + $0x141] sm:$0xff]
      %v2735 = vld [vmem:[%s2514 + $0x151] sm:$0xff]
      %v2736 = vld [vmem:[%s2514 + $0x159] sm:$0xff]
      %v2737 = vld [vmem:[%s2514 + $0x169] sm:$0xff]
      %v2738 = vld [vmem:[%s2514 + $0x171] sm:$0xff]
      %2771 = vrot.lane.b32.xlu0 %v2707, 12
      %v2772 = vpop.permute.xlu0 %2771
      %2773 = vrot.lane.b32.xlu0 %v2708, 12
      %v2774 = vpop.permute.xlu0 %2773
      %2775 = vrot.lane.b32.xlu0 %v2709, 12
      %v2776 = vpop.permute.xlu0 %2775
      %2777 = vrot.lane.b32.xlu0 %v2710, 12
      %v2778 = vpop.permute.xlu0 %2777
      %2779 = vrot.lane.b32.xlu0 %v2711, 12
      %v2780 = vpop.permute.xlu0 %2779
      %2781 = vrot.lane.b32.xlu0 %v2712, 12
      %v2782 = vpop.permute.xlu0 %2781
      %2783 = vrot.lane.b32.xlu0 %v2713, 12
      %v2784 = vpop.permute.xlu0 %2783
      %2785 = vrot.lane.b32.xlu0 %v2714, 12
      %v2786 = vpop.permute.xlu0 %2785
      %2787 = vrot.lane.b32.xlu0 %v2715, 12
      %v2788 = vpop.permute.xlu0 %2787
      %2789 = vrot.lane.b32.xlu0 %v2716, 12
      %v2790 = vpop.permute.xlu0 %2789
      %2791 = vrot.lane.b32.xlu0 %v2717, 12
      %v2792 = vpop.permute.xlu0 %2791
      %2793 = vrot.lane.b32.xlu0 %v2718, 12
      %v2794 = vpop.permute.xlu0 %2793
      %2795 = vrot.lane.b32.xlu0 %v2719, 12
      %v2796 = vpop.permute.xlu0 %2795
      %2797 = vrot.lane.b32.xlu0 %v2720, 12
      %v2798 = vpop.permute.xlu0 %2797
      %2799 = vrot.lane.b32.xlu0 %v2721, 12
      %v2800 = vpop.permute.xlu0 %2799
      %2801 = vrot.lane.b32.xlu0 %v2722, 12
      %v2802 = vpop.permute.xlu0 %2801
      %2803 = vrot.lane.b32.xlu0 %v2723, 12
      %v2804 = vpop.permute.xlu0 %2803
      %2805 = vrot.lane.b32.xlu0 %v2724, 12
      %v2806 = vpop.permute.xlu0 %2805
      %2807 = vrot.lane.b32.xlu0 %v2725, 12
      %v2808 = vpop.permute.xlu0 %2807
      %2809 = vrot.lane.b32.xlu0 %v2726, 12
      %v2810 = vpop.permute.xlu0 %2809
      %2811 = vrot.lane.b32.xlu0 %v2727, 12
      %v2812 = vpop.permute.xlu0 %2811
      %2813 = vrot.lane.b32.xlu0 %v2728, 12
      %v2814 = vpop.permute.xlu0 %2813
      %2815 = vrot.lane.b32.xlu0 %v2729, 12
      %v2816 = vpop.permute.xlu0 %2815
      %2817 = vrot.lane.b32.xlu0 %v2730, 12
      %v2818 = vpop.permute.xlu0 %2817
      %2819 = vrot.lane.b32.xlu0 %v2731, 12
      %v2820 = vpop.permute.xlu0 %2819
      %2821 = vrot.lane.b32.xlu0 %v2732, 12
      %v2822 = vpop.permute.xlu0 %2821
      %2823 = vrot.lane.b32.xlu0 %v2733, 12
      %v2824 = vpop.permute.xlu0 %2823
      %2825 = vrot.lane.b32.xlu0 %v2734, 12
      %v2826 = vpop.permute.xlu0 %2825
      %2827 = vrot.lane.b32.xlu0 %v2735, 12
      %v2828 = vpop.permute.xlu0 %2827
      %2829 = vrot.lane.b32.xlu0 %v2736, 12
      %v2830 = vpop.permute.xlu0 %2829
      %2831 = vrot.lane.b32.xlu0 %v2737, 12
      %v2832 = vpop.permute.xlu0 %2831
      %2833 = vrot.lane.b32.xlu0 %v2738, 12
      %v2834 = vpop.permute.xlu0 %2833
      %2867 = vst.msk [vmem:[#allocation2] sm:$0xff] %vm866, %v2772
      %2868 = vst.msk [vmem:[#allocation2 + $0x8] sm:$0xff] %vm866, %v2774
      %2869 = vst.msk [vmem:[#allocation2 + $0x10] sm:$0xff] %vm866, %v2776
      %2870 = vst.msk [vmem:[#allocation2 + $0x18] sm:$0xff] %vm866, %v2778
      %2871 = vst.msk [vmem:[#allocation2 + $0x20] sm:$0xff] %vm866, %v2780
      %2872 = vst.msk [vmem:[#allocation2 + $0x28] sm:$0xff] %vm866, %v2782
      %2873 = vst.msk [vmem:[#allocation2 + $0x30] sm:$0xff] %vm866, %v2784
      %2874 = vst.msk [vmem:[#allocation2 + $0x38] sm:$0xff] %vm866, %v2786
      %2875 = vst.msk [vmem:[#allocation2 + $0x40] sm:$0xff] %vm866, %v2788
      %2876 = vst.msk [vmem:[#allocation2 + $0x48] sm:$0xff] %vm866, %v2790
      %2877 = vst.msk [vmem:[#allocation2 + $0x50] sm:$0xff] %vm866, %v2792
      %2878 = vst.msk [vmem:[#allocation2 + $0x58] sm:$0xff] %vm866, %v2794
      %2879 = vst.msk [vmem:[#allocation2 + $0x60] sm:$0xff] %vm866, %v2796
      %2880 = vst.msk [vmem:[#allocation2 + $0x68] sm:$0xff] %vm866, %v2798
      %2881 = vst.msk [vmem:[#allocation2 + $0x70] sm:$0xff] %vm866, %v2800
      %2882 = vst.msk [vmem:[#allocation2 + $0x78] sm:$0xff] %vm866, %v2802
      %2883 = vst.msk [vmem:[#allocation2 + $0x80] sm:$0xff] %vm866, %v2804
      %2884 = vst.msk [vmem:[#allocation2 + $0x88] sm:$0xff] %vm866, %v2806
      %2885 = vst.msk [vmem:[#allocation2 + $0x90] sm:$0xff] %vm866, %v2808
      %2886 = vst.msk [vmem:[#allocation2 + $0x98] sm:$0xff] %vm866, %v2810
      %2887 = vst.msk [vmem:[#allocation2 + $0xa0] sm:$0xff] %vm866, %v2812
      %2888 = vst.msk [vmem:[#allocation2 + $0xa8] sm:$0xff] %vm866, %v2814
      %2889 = vst.msk [vmem:[#allocation2 + $0xb0] sm:$0xff] %vm866, %v2816
      %2890 = vst.msk [vmem:[#allocation2 + $0xb8] sm:$0xff] %vm866, %v2818
      %2891 = vst.msk [vmem:[#allocation2 + $0xc0] sm:$0xff] %vm866, %v2820
      %2892 = vst.msk [vmem:[#allocation2 + $0xc8] sm:$0xff] %vm866, %v2822
      %2893 = vst.msk [vmem:[#allocation2 + $0xd0] sm:$0xff] %vm866, %v2824
      %2894 = vst.msk [vmem:[#allocation2 + $0xd8] sm:$0xff] %vm866, %v2826
      %2895 = vst.msk [vmem:[#allocation2 + $0xe0] sm:$0xff] %vm866, %v2828
      %2896 = vst.msk [vmem:[#allocation2 + $0xe8] sm:$0xff] %vm866, %v2830
      %2897 = vst.msk [vmem:[#allocation2 + $0xf0] sm:$0xff] %vm866, %v2832
      %2898 = vst.msk [vmem:[#allocation2 + $0xf8] sm:$0xff] %vm866, %v2834
      %v2899 = vld [vmem:[#allocation2] sm:$0xff]
      %v2900 = vld [vmem:[#allocation2 + $0x8] sm:$0xff]
      %v2901 = vld [vmem:[#allocation2 + $0x10] sm:$0xff]
      %v2902 = vld [vmem:[#allocation2 + $0x18] sm:$0xff]
      %v2903 = vld [vmem:[#allocation2 + $0x20] sm:$0xff]
      %v2904 = vld [vmem:[#allocation2 + $0x28] sm:$0xff]
      %v2905 = vld [vmem:[#allocation2 + $0x30] sm:$0xff]
      %v2906 = vld [vmem:[#allocation2 + $0x38] sm:$0xff]
      %v2907 = vld [vmem:[#allocation2 + $0x40] sm:$0xff]
      %v2908 = vld [vmem:[#allocation2 + $0x48] sm:$0xff]
      %v2909 = vld [vmem:[#allocation2 + $0x50] sm:$0xff]
      %v2910 = vld [vmem:[#allocation2 + $0x58] sm:$0xff]
      %v2911 = vld [vmem:[#allocation2 + $0x60] sm:$0xff]
      %v2912 = vld [vmem:[#allocation2 + $0x68] sm:$0xff]
      %v2913 = vld [vmem:[#allocation2 + $0x70] sm:$0xff]
      %v2914 = vld [vmem:[#allocation2 + $0x78] sm:$0xff]
      %v2915 = vld [vmem:[#allocation2 + $0x80] sm:$0xff]
      %v2916 = vld [vmem:[#allocation2 + $0x88] sm:$0xff]
      %v2917 = vld [vmem:[#allocation2 + $0x90] sm:$0xff]
      %v2918 = vld [vmem:[#allocation2 + $0x98] sm:$0xff]
      %v2919 = vld [vmem:[#allocation2 + $0xa0] sm:$0xff]
      %v2920 = vld [vmem:[#allocation2 + $0xa8] sm:$0xff]
      %v2921 = vld [vmem:[#allocation2 + $0xb0] sm:$0xff]
      %v2922 = vld [vmem:[#allocation2 + $0xb8] sm:$0xff]
      %v2923 = vld [vmem:[#allocation2 + $0xc0] sm:$0xff]
      %v2924 = vld [vmem:[#allocation2 + $0xc8] sm:$0xff]
      %v2925 = vld [vmem:[#allocation2 + $0xd0] sm:$0xff]
      %v2926 = vld [vmem:[#allocation2 + $0xd8] sm:$0xff]
      %v2927 = vld [vmem:[#allocation2 + $0xe0] sm:$0xff]
      %v2928 = vld [vmem:[#allocation2 + $0xe8] sm:$0xff]
      %v2929 = vld [vmem:[#allocation2 + $0xf0] sm:$0xff]
      %v2930 = vld [vmem:[#allocation2 + $0xf8] sm:$0xff]
      %s2931 = scalar_lea.vmem %s228, 32
      %v2932 = vld [vmem:[%s2931] sm:$0xff]
      %v2933 = vld [vmem:[%s2931 + $0x8] sm:$0xff]
      %v2935 = vsel %vm939, %v2899, 0
      %v2938 = vsel %vm939, %v2900, 0
      %v2941 = vsel %vm939, %v2901, 0
      %v2944 = vsel %vm939, %v2902, 0
      %v2947 = vsel %vm939, %v2903, 0
      %v2950 = vsel %vm939, %v2904, 0
      %v2953 = vsel %vm939, %v2905, 0
      %v2956 = vsel %vm939, %v2906, 0
      %v2959 = vsel %vm939, %v2907, 0
      %v2962 = vsel %vm939, %v2908, 0
      %v2965 = vsel %vm939, %v2909, 0
      %v2968 = vsel %vm939, %v2910, 0
      %v2971 = vsel %vm939, %v2911, 0
      %v2974 = vsel %vm939, %v2912, 0
      %v2977 = vsel %vm939, %v2913, 0
      %v2980 = vsel %vm939, %v2914, 0
      %v2983 = vsel %vm939, %v2915, 0
      %v2986 = vsel %vm939, %v2916, 0
      %v2989 = vsel %vm939, %v2917, 0
      %v2992 = vsel %vm939, %v2918, 0
      %v2995 = vsel %vm939, %v2919, 0
      %v2998 = vsel %vm939, %v2920, 0
      %v3001 = vsel %vm939, %v2921, 0
      %v3004 = vsel %vm939, %v2922, 0
      %v3007 = vsel %vm939, %v2923, 0
      %v3010 = vsel %vm939, %v2924, 0
      %v3013 = vsel %vm939, %v2925, 0
      %v3016 = vsel %vm939, %v2926, 0
      %v3019 = vsel %vm939, %v2927, 0
      %v3022 = vsel %vm939, %v2928, 0
      %v3025 = vsel %vm939, %v2929, 0
      %v3028 = vsel %vm939, %v2930, 0
      %3030 = vmatprep.subr.mxu0 0.0
      %3031 = vmatpush1.msra.mxu0 %v2932
      %3032 = vmatprep.subr.mxu0 0.0
      %3033 = vmatpush1.msra.mxu0 %v2933
      %3034 = vmatprep.subr.mxu0 0.0
      %3035 = vmatpush1.msra.mxu0 0.0
      %3036 = vmatprep.subr.mxu0 0.0
      %3037 = vmatpush1.msra.mxu0 0.0
      %3038 = vmatprep.subr.mxu0 0.0
      %3039 = vmatpush1.msra.mxu0 0.0
      %3040 = vmatprep.subr.mxu0 0.0
      %3041 = vmatpush1.msra.mxu0 0.0
      %3042 = vmatprep.subr.mxu0 0.0
      %3043 = vmatpush1.msra.mxu0 0.0
      %3044 = vmatprep.subr.mxu0 0.0
      %3045 = vmatpush1.msra.mxu0 0.0
      %3046 = vmatprep.subr.mxu0 0.0
      %3047 = vmatpush1.msra.mxu0 0.0
      %3048 = vmatprep.subr.mxu0 0.0
      %3049 = vmatpush1.msra.mxu0 0.0
      %3050 = vmatprep.subr.mxu0 0.0
      %3051 = vmatpush1.msra.mxu0 0.0
      %3052 = vmatprep.subr.mxu0 0.0
      %3053 = vmatpush1.msra.mxu0 0.0
      %3054 = vmatprep.subr.mxu0 0.0
      %3055 = vmatpush1.msra.mxu0 0.0
      %3056 = vmatprep.subr.mxu0 0.0
      %3057 = vmatpush1.msra.mxu0 0.0
      %3058 = vmatprep.subr.mxu0 0.0
      %3059 = vmatpush1.msra.mxu0 0.0
      %3060 = vmatprep.subr.mxu0 0.0
      %3061 = vmatpush1.msra.mxu0 0.0
      %3062 = vmatprep.subr.mxu0 0.0
      %3063 = vmatpush1.msra.mxu0 0.0
      %3064 = vmatprep.subr.mxu0 0.0
      %3065 = vmatpush1.msra.mxu0 0.0
      %3066 = vmatprep.subr.mxu0 0.0
      %3067 = vmatpush1.msra.mxu0 0.0
      %3068 = vmatprep.subr.mxu0 0.0
      %3069 = vmatpush1.msra.mxu0 0.0
      %3070 = vmatprep.subr.mxu0 0.0
      %3071 = vmatpush1.msra.mxu0 0.0
      %3072 = vmatprep.subr.mxu0 0.0
      %3073 = vmatpush1.msra.mxu0 0.0
      %3074 = vmatprep.subr.mxu0 0.0
      %3075 = vmatpush1.msra.mxu0 0.0
      %3076 = vmatprep.subr.mxu0 0.0
      %3077 = vmatpush1.msra.mxu0 0.0
      %3078 = vmatprep.subr.mxu0 0.0
      %3079 = vmatpush1.msra.mxu0 0.0
      %3080 = vmatprep.subr.mxu0 0.0
      %3081 = vmatpush1.msra.mxu0 0.0
      %3082 = vmatprep.subr.mxu0 0.0
      %3083 = vmatpush1.msra.mxu0 0.0
      %3084 = vmatprep.subr.mxu0 0.0
      %3085 = vmatpush1.msra.mxu0 0.0
      %3086 = vmatprep.subr.mxu0 0.0
      %3087 = vmatpush1.msra.mxu0 0.0
      %3088 = vmatprep.subr.mxu0 0.0
      %3089 = vmatpush1.msra.mxu0 0.0
      %3090 = vmatprep.subr.mxu0 0.0
      %3091 = vmatpush1.msra.mxu0 0.0
      %3092 = vmatprep.subr.mxu0 0.0
      %3093 = vmatpush1.msra.mxu0 0.0
      %3094 = vmatprep.mubr.f32.mxu0 0.0
      %3095 = vmatmul.mubr.f32.gmra.mrb[0].mxu0 %v2935
      %v3096 = vpop.f32.mrb[0].mxu0
      %v3097 = vadd.f32 %v937, %v3096
      %v3098 = vpop.f32.mrb[0].mxu0
      %3099 = vmatprep.mubr.f32.mxu0 0.0
      %3100 = vmatmul.mubr.f32.gmra.mrb[0].mxu0 %v2938
      %v3101 = vpop.f32.mrb[0].mxu0
      %v3102 = vadd.f32 %v937, %v3101
      %v3103 = vpop.f32.mrb[0].mxu0
      %3104 = vmatprep.mubr.f32.mxu0 0.0
      %3105 = vmatmul.mubr.f32.gmra.mrb[0].mxu0 %v2941
      %v3106 = vpop.f32.mrb[0].mxu0
      %v3107 = vadd.f32 %v937, %v3106
      %v3108 = vpop.f32.mrb[0].mxu0
      %3109 = vmatprep.mubr.f32.mxu0 0.0
      %3110 = vmatmul.mubr.f32.gmra.mrb[0].mxu0 %v2944
      %v3111 = vpop.f32.mrb[0].mxu0
      %v3112 = vadd.f32 %v937, %v3111
      %v3113 = vpop.f32.mrb[0].mxu0
      %3114 = vmatprep.mubr.f32.mxu0 0.0
      %3115 = vmatmul.mubr.f32.gmra.mrb[0].mxu0 %v2947
      %v3116 = vpop.f32.mrb[0].mxu0
      %v3117 = vadd.f32 %v937, %v3116
      %v3118 = vpop.f32.mrb[0].mxu0
      %3119 = vmatprep.mubr.f32.mxu0 0.0
      %3120 = vmatmul.mubr.f32.gmra.mrb[0].mxu0 %v2950
      %v3121 = vpop.f32.mrb[0].mxu0
      %v3122 = vadd.f32 %v937, %v3121
      %v3123 = vpop.f32.mrb[0].mxu0
      %3124 = vmatprep.mubr.f32.mxu0 0.0
      %3125 = vmatmul.mubr.f32.gmra.mrb[0].mxu0 %v2953
      %v3126 = vpop.f32.mrb[0].mxu0
      %v3127 = vadd.f32 %v937, %v3126
      %v3128 = vpop.f32.mrb[0].mxu0
      %3129 = vmatprep.mubr.f32.mxu0 0.0
      %3130 = vmatmul.mubr.f32.gmra.mrb[0].mxu0 %v2956
      %v3131 = vpop.f32.mrb[0].mxu0
      %v3132 = vadd.f32 %v937, %v3131
      %v3133 = vpop.f32.mrb[0].mxu0
      %3134 = vmatprep.mubr.f32.mxu0 0.0
      %3135 = vmatmul.mubr.f32.gmra.mrb[0].mxu0 %v2959
      %v3136 = vpop.f32.mrb[0].mxu0
      %v3137 = vadd.f32 %v937, %v3136
      %v3138 = vpop.f32.mrb[0].mxu0
      %3139 = vmatprep.mubr.f32.mxu0 0.0
      %3140 = vmatmul.mubr.f32.gmra.mrb[0].mxu0 %v2962
      %v3141 = vpop.f32.mrb[0].mxu0
      %v3142 = vadd.f32 %v937, %v3141
      %v3143 = vpop.f32.mrb[0].mxu0
      %3144 = vmatprep.mubr.f32.mxu0 0.0
      %3145 = vmatmul.mubr.f32.gmra.mrb[0].mxu0 %v2965
      %v3146 = vpop.f32.mrb[0].mxu0
      %v3147 = vadd.f32 %v937, %v3146
      %v3148 = vpop.f32.mrb[0].mxu0
      %3149 = vmatprep.mubr.f32.mxu0 0.0
      %3150 = vmatmul.mubr.f32.gmra.mrb[0].mxu0 %v2968
      %v3151 = vpop.f32.mrb[0].mxu0
      %v3152 = vadd.f32 %v937, %v3151
      %v3153 = vpop.f32.mrb[0].mxu0
      %3154 = vmatprep.mubr.f32.mxu0 0.0
      %3155 = vmatmul.mubr.f32.gmra.mrb[0].mxu0 %v2971
      %v3156 = vpop.f32.mrb[0].mxu0
      %v3157 = vadd.f32 %v937, %v3156
      %v3158 = vpop.f32.mrb[0].mxu0
      %3159 = vmatprep.mubr.f32.mxu0 0.0
      %3160 = vmatmul.mubr.f32.gmra.mrb[0].mxu0 %v2974
      %v3161 = vpop.f32.mrb[0].mxu0
      %v3162 = vadd.f32 %v937, %v3161
      %v3163 = vpop.f32.mrb[0].mxu0
      %3164 = vmatprep.mubr.f32.mxu0 0.0
      %3165 = vmatmul.mubr.f32.gmra.mrb[0].mxu0 %v2977
      %v3166 = vpop.f32.mrb[0].mxu0
      %v3167 = vadd.f32 %v937, %v3166
      %v3168 = vpop.f32.mrb[0].mxu0
      %3169 = vmatprep.mubr.f32.mxu0 0.0
      %3170 = vmatmul.mubr.f32.gmra.mrb[0].mxu0 %v2980
      %v3171 = vpop.f32.mrb[0].mxu0
      %v3172 = vadd.f32 %v937, %v3171
      %v3173 = vpop.f32.mrb[0].mxu0
      %3174 = vmatprep.mubr.f32.mxu0 0.0
      %3175 = vmatmul.mubr.f32.gmra.mrb[0].mxu0 %v2983
      %v3176 = vpop.f32.mrb[0].mxu0
      %v3177 = vadd.f32 %v937, %v3176
      %v3178 = vpop.f32.mrb[0].mxu0
      %3179 = vmatprep.mubr.f32.mxu0 0.0
      %3180 = vmatmul.mubr.f32.gmra.mrb[0].mxu0 %v2986
      %v3181 = vpop.f32.mrb[0].mxu0
      %v3182 = vadd.f32 %v937, %v3181
      %v3183 = vpop.f32.mrb[0].mxu0
      %3184 = vmatprep.mubr.f32.mxu0 0.0
      %3185 = vmatmul.mubr.f32.gmra.mrb[0].mxu0 %v2989
      %v3186 = vpop.f32.mrb[0].mxu0
      %v3187 = vadd.f32 %v937, %v3186
      %v3188 = vpop.f32.mrb[0].mxu0
      %3189 = vmatprep.mubr.f32.mxu0 0.0
      %3190 = vmatmul.mubr.f32.gmra.mrb[0].mxu0 %v2992
      %v3191 = vpop.f32.mrb[0].mxu0
      %v3192 = vadd.f32 %v937, %v3191
      %v3193 = vpop.f32.mrb[0].mxu0
      %3194 = vmatprep.mubr.f32.mxu0 0.0
      %3195 = vmatmul.mubr.f32.gmra.mrb[0].mxu0 %v2995
      %v3196 = vpop.f32.mrb[0].mxu0
      %v3197 = vadd.f32 %v937, %v3196
      %v3198 = vpop.f32.mrb[0].mxu0
      %3199 = vmatprep.mubr.f32.mxu0 0.0
      %3200 = vmatmul.mubr.f32.gmra.mrb[0].mxu0 %v2998
      %v3201 = vpop.f32.mrb[0].mxu0
      %v3202 = vadd.f32 %v937, %v3201
      %v3203 = vpop.f32.mrb[0].mxu0
      %3204 = vmatprep.mubr.f32.mxu0 0.0
      %3205 = vmatmul.mubr.f32.gmra.mrb[0].mxu0 %v3001
      %v3206 = vpop.f32.mrb[0].mxu0
      %v3207 = vadd.f32 %v937, %v3206
      %v3208 = vpop.f32.mrb[0].mxu0
      %3209 = vmatprep.mubr.f32.mxu0 0.0
      %3210 = vmatmul.mubr.f32.gmra.mrb[0].mxu0 %v3004
      %v3211 = vpop.f32.mrb[0].mxu0
      %v3212 = vadd.f32 %v937, %v3211
      %v3213 = vpop.f32.mrb[0].mxu0
      %3214 = vmatprep.mubr.f32.mxu0 0.0
      %3215 = vmatmul.mubr.f32.gmra.mrb[0].mxu0 %v3007
      %v3216 = vpop.f32.mrb[0].mxu0
      %v3217 = vadd.f32 %v937, %v3216
      %v3218 = vpop.f32.mrb[0].mxu0
      %3219 = vmatprep.mubr.f32.mxu0 0.0
      %3220 = vmatmul.mubr.f32.gmra.mrb[0].mxu0 %v3010
      %v3221 = vpop.f32.mrb[0].mxu0
      %v3222 = vadd.f32 %v937, %v3221
      %v3223 = vpop.f32.mrb[0].mxu0
      %3224 = vmatprep.mubr.f32.mxu0 0.0
      %3225 = vmatmul.mubr.f32.gmra.mrb[0].mxu0 %v3013
      %v3226 = vpop.f32.mrb[0].mxu0
      %v3227 = vadd.f32 %v937, %v3226
      %v3228 = vpop.f32.mrb[0].mxu0
      %3229 = vmatprep.mubr.f32.mxu0 0.0
      %3230 = vmatmul.mubr.f32.gmra.mrb[0].mxu0 %v3016
      %v3231 = vpop.f32.mrb[0].mxu0
      %v3232 = vadd.f32 %v937, %v3231
      %v3233 = vpop.f32.mrb[0].mxu0
      %3234 = vmatprep.mubr.f32.mxu0 0.0
      %3235 = vmatmul.mubr.f32.gmra.mrb[0].mxu0 %v3019
      %v3236 = vpop.f32.mrb[0].mxu0
      %v3237 = vadd.f32 %v937, %v3236
      %v3238 = vpop.f32.mrb[0].mxu0
      %3239 = vmatprep.mubr.f32.mxu0 0.0
      %3240 = vmatmul.mubr.f32.gmra.mrb[0].mxu0 %v3022
      %v3241 = vpop.f32.mrb[0].mxu0
      %v3242 = vadd.f32 %v937, %v3241
      %v3243 = vpop.f32.mrb[0].mxu0
      %3244 = vmatprep.mubr.f32.mxu0 0.0
      %3245 = vmatmul.mubr.f32.gmra.mrb[0].mxu0 %v3025
      %v3246 = vpop.f32.mrb[0].mxu0
      %v3247 = vadd.f32 %v937, %v3246
      %v3248 = vpop.f32.mrb[0].mxu0
      %3249 = vmatprep.mubr.f32.mxu0 0.0
      %3250 = vmatmul.mubr.f32.gmra.mrb[0].mxu0 %v3028
      %v3251 = vpop.f32.mrb[0].mxu0
      %v3252 = vadd.f32 %v937, %v3251
      %v3253 = vpop.f32.mrb[0].mxu0
      %3254 = vdwg.mxu0
      %v3255 = vld [vmem:[%s512 + $0x1] sm:$0xff]
      %v3256 = vld [vmem:[%s512 + $0x9] sm:$0xff]
      %v3257 = vld [vmem:[%s512 + $0x19] sm:$0xff]
      %v3258 = vld [vmem:[%s512 + $0x21] sm:$0xff]
      %v3259 = vld [vmem:[%s512 + $0x31] sm:$0xff]
      %v3260 = vld [vmem:[%s512 + $0x39] sm:$0xff]
      %v3261 = vld [vmem:[%s512 + $0x49] sm:$0xff]
      %v3262 = vld [vmem:[%s512 + $0x51] sm:$0xff]
      %v3263 = vld [vmem:[%s512 + $0x61] sm:$0xff]
      %v3264 = vld [vmem:[%s512 + $0x69] sm:$0xff]
      %v3265 = vld [vmem:[%s512 + $0x79] sm:$0xff]
      %v3266 = vld [vmem:[%s512 + $0x81] sm:$0xff]
      %v3267 = vld [vmem:[%s512 + $0x91] sm:$0xff]
      %v3268 = vld [vmem:[%s512 + $0x99] sm:$0xff]
      %v3269 = vld [vmem:[%s512 + $0xa9] sm:$0xff]
      %v3270 = vld [vmem:[%s512 + $0xb1] sm:$0xff]
      %v3271 = vld [vmem:[%s512 + $0xc1] sm:$0xff]
      %v3272 = vld [vmem:[%s512 + $0xc9] sm:$0xff]
      %v3273 = vld [vmem:[%s512 + $0xd9] sm:$0xff]
      %v3274 = vld [vmem:[%s512 + $0xe1] sm:$0xff]
      %v3275 = vld [vmem:[%s512 + $0xf1] sm:$0xff]
      %v3276 = vld [vmem:[%s512 + $0xf9] sm:$0xff]
      %v3277 = vld [vmem:[%s512 + $0x109] sm:$0xff]
      %v3278 = vld [vmem:[%s512 + $0x111] sm:$0xff]
      %v3279 = vld [vmem:[%s512 + $0x121] sm:$0xff]
      %v3280 = vld [vmem:[%s512 + $0x129] sm:$0xff]
      %v3281 = vld [vmem:[%s512 + $0x139] sm:$0xff]
      %v3282 = vld [vmem:[%s512 + $0x141] sm:$0xff]
      %v3283 = vld [vmem:[%s512 + $0x151] sm:$0xff]
      %v3284 = vld [vmem:[%s512 + $0x159] sm:$0xff]
      %v3285 = vld [vmem:[%s512 + $0x169] sm:$0xff]
      %v3286 = vld [vmem:[%s512 + $0x171] sm:$0xff]
      %3287 = vst.msk [vmem:[%s1293] sm:$0xff] %vm286, %v3255
      %3288 = vst.msk [vmem:[%s1293 + $0x8] sm:$0xff] %vm286, %v3256
      %3289 = vst.msk [vmem:[%s1293 + $0x10] sm:$0xff] %vm286, %v3257
      %3290 = vst.msk [vmem:[%s1293 + $0x18] sm:$0xff] %vm286, %v3258
      %3291 = vst.msk [vmem:[%s1293 + $0x20] sm:$0xff] %vm286, %v3259
      %3292 = vst.msk [vmem:[%s1293 + $0x28] sm:$0xff] %vm286, %v3260
      %3293 = vst.msk [vmem:[%s1293 + $0x30] sm:$0xff] %vm286, %v3261
      %3294 = vst.msk [vmem:[%s1293 + $0x38] sm:$0xff] %vm286, %v3262
      %3295 = vst.msk [vmem:[%s1293 + $0x40] sm:$0xff] %vm286, %v3263
      %3296 = vst.msk [vmem:[%s1293 + $0x48] sm:$0xff] %vm286, %v3264
      %3297 = vst.msk [vmem:[%s1293 + $0x50] sm:$0xff] %vm286, %v3265
      %3298 = vst.msk [vmem:[%s1293 + $0x58] sm:$0xff] %vm286, %v3266
      %3299 = vst.msk [vmem:[%s1293 + $0x60] sm:$0xff] %vm286, %v3267
      %3300 = vst.msk [vmem:[%s1293 + $0x68] sm:$0xff] %vm286, %v3268
      %3301 = vst.msk [vmem:[%s1293 + $0x70] sm:$0xff] %vm286, %v3269
      %3302 = vst.msk [vmem:[%s1293 + $0x78] sm:$0xff] %vm286, %v3270
      %3303 = vst.msk [vmem:[%s1293 + $0x80] sm:$0xff] %vm286, %v3271
      %3304 = vst.msk [vmem:[%s1293 + $0x88] sm:$0xff] %vm286, %v3272
      %3305 = vst.msk [vmem:[%s1293 + $0x90] sm:$0xff] %vm286, %v3273
      %3306 = vst.msk [vmem:[%s1293 + $0x98] sm:$0xff] %vm286, %v3274
      %3307 = vst.msk [vmem:[%s1293 + $0xa0] sm:$0xff] %vm286, %v3275
      %3308 = vst.msk [vmem:[%s1293 + $0xa8] sm:$0xff] %vm286, %v3276
      %3309 = vst.msk [vmem:[%s1293 + $0xb0] sm:$0xff] %vm286, %v3277
      %3310 = vst.msk [vmem:[%s1293 + $0xb8] sm:$0xff] %vm286, %v3278
      %3311 = vst.msk [vmem:[%s1293 + $0xc0] sm:$0xff] %vm286, %v3279
      %3312 = vst.msk [vmem:[%s1293 + $0xc8] sm:$0xff] %vm286, %v3280
      %3313 = vst.msk [vmem:[%s1293 + $0xd0] sm:$0xff] %vm286, %v3281
      %3314 = vst.msk [vmem:[%s1293 + $0xd8] sm:$0xff] %vm286, %v3282
      %3315 = vst.msk [vmem:[%s1293 + $0xe0] sm:$0xff] %vm286, %v3283
      %3316 = vst.msk [vmem:[%s1293 + $0xe8] sm:$0xff] %vm286, %v3284
      %3317 = vst.msk [vmem:[%s1293 + $0xf0] sm:$0xff] %vm286, %v3285
      %3318 = vst.msk [vmem:[%s1293 + $0xf8] sm:$0xff] %vm286, %v3286
      %v3319 = vld [vmem:[%s512 + $0x2] sm:$0xff]
      %v3320 = vld [vmem:[%s512 + $0xa] sm:$0xff]
      %v3321 = vld [vmem:[%s512 + $0x1a] sm:$0xff]
      %v3322 = vld [vmem:[%s512 + $0x22] sm:$0xff]
      %v3323 = vld [vmem:[%s512 + $0x32] sm:$0xff]
      %v3324 = vld [vmem:[%s512 + $0x3a] sm:$0xff]
      %v3325 = vld [vmem:[%s512 + $0x4a] sm:$0xff]
      %v3326 = vld [vmem:[%s512 + $0x52] sm:$0xff]
      %v3327 = vld [vmem:[%s512 + $0x62] sm:$0xff]
      %v3328 = vld [vmem:[%s512 + $0x6a] sm:$0xff]
      %v3329 = vld [vmem:[%s512 + $0x7a] sm:$0xff]
      %v3330 = vld [vmem:[%s512 + $0x82] sm:$0xff]
      %v3331 = vld [vmem:[%s512 + $0x92] sm:$0xff]
      %v3332 = vld [vmem:[%s512 + $0x9a] sm:$0xff]
      %v3333 = vld [vmem:[%s512 + $0xaa] sm:$0xff]
      %v3334 = vld [vmem:[%s512 + $0xb2] sm:$0xff]
      %v3335 = vld [vmem:[%s512 + $0xc2] sm:$0xff]
      %v3336 = vld [vmem:[%s512 + $0xca] sm:$0xff]
      %v3337 = vld [vmem:[%s512 + $0xda] sm:$0xff]
      %v3338 = vld [vmem:[%s512 + $0xe2] sm:$0xff]
      %v3339 = vld [vmem:[%s512 + $0xf2] sm:$0xff]
      %v3340 = vld [vmem:[%s512 + $0xfa] sm:$0xff]
      %v3341 = vld [vmem:[%s512 + $0x10a] sm:$0xff]
      %v3342 = vld [vmem:[%s512 + $0x112] sm:$0xff]
      %v3343 = vld [vmem:[%s512 + $0x122] sm:$0xff]
      %v3344 = vld [vmem:[%s512 + $0x12a] sm:$0xff]
      %v3345 = vld [vmem:[%s512 + $0x13a] sm:$0xff]
      %v3346 = vld [vmem:[%s512 + $0x142] sm:$0xff]
      %v3347 = vld [vmem:[%s512 + $0x152] sm:$0xff]
      %v3348 = vld [vmem:[%s512 + $0x15a] sm:$0xff]
      %v3349 = vld [vmem:[%s512 + $0x16a] sm:$0xff]
      %v3350 = vld [vmem:[%s512 + $0x172] sm:$0xff]
      %3383 = vrot.lane.b32.xlu0 %v3319, 4
      %v3384 = vpop.permute.xlu0 %3383
      %3385 = vrot.lane.b32.xlu0 %v3320, 4
      %v3386 = vpop.permute.xlu0 %3385
      %3387 = vrot.lane.b32.xlu0 %v3321, 4
      %v3388 = vpop.permute.xlu0 %3387
      %3389 = vrot.lane.b32.xlu0 %v3322, 4
      %v3390 = vpop.permute.xlu0 %3389
      %3391 = vrot.lane.b32.xlu0 %v3323, 4
      %v3392 = vpop.permute.xlu0 %3391
      %3393 = vrot.lane.b32.xlu0 %v3324, 4
      %v3394 = vpop.permute.xlu0 %3393
      %3395 = vrot.lane.b32.xlu0 %v3325, 4
      %v3396 = vpop.permute.xlu0 %3395
      %3397 = vrot.lane.b32.xlu0 %v3326, 4
      %v3398 = vpop.permute.xlu0 %3397
      %3399 = vrot.lane.b32.xlu0 %v3327, 4
      %v3400 = vpop.permute.xlu0 %3399
      %3401 = vrot.lane.b32.xlu0 %v3328, 4
      %v3402 = vpop.permute.xlu0 %3401
      %3403 = vrot.lane.b32.xlu0 %v3329, 4
      %v3404 = vpop.permute.xlu0 %3403
      %3405 = vrot.lane.b32.xlu0 %v3330, 4
      %v3406 = vpop.permute.xlu0 %3405
      %3407 = vrot.lane.b32.xlu0 %v3331, 4
      %v3408 = vpop.permute.xlu0 %3407
      %3409 = vrot.lane.b32.xlu0 %v3332, 4
      %v3410 = vpop.permute.xlu0 %3409
      %3411 = vrot.lane.b32.xlu0 %v3333, 4
      %v3412 = vpop.permute.xlu0 %3411
      %3413 = vrot.lane.b32.xlu0 %v3334, 4
      %v3414 = vpop.permute.xlu0 %3413
      %3415 = vrot.lane.b32.xlu0 %v3335, 4
      %v3416 = vpop.permute.xlu0 %3415
      %3417 = vrot.lane.b32.xlu0 %v3336, 4
      %v3418 = vpop.permute.xlu0 %3417
      %3419 = vrot.lane.b32.xlu0 %v3337, 4
      %v3420 = vpop.permute.xlu0 %3419
      %3421 = vrot.lane.b32.xlu0 %v3338, 4
      %v3422 = vpop.permute.xlu0 %3421
      %3423 = vrot.lane.b32.xlu0 %v3339, 4
      %v3424 = vpop.permute.xlu0 %3423
      %3425 = vrot.lane.b32.xlu0 %v3340, 4
      %v3426 = vpop.permute.xlu0 %3425
      %3427 = vrot.lane.b32.xlu0 %v3341, 4
      %v3428 = vpop.permute.xlu0 %3427
      %3429 = vrot.lane.b32.xlu0 %v3342, 4
      %v3430 = vpop.permute.xlu0 %3429
      %3431 = vrot.lane.b32.xlu0 %v3343, 4
      %v3432 = vpop.permute.xlu0 %3431
      %3433 = vrot.lane.b32.xlu0 %v3344, 4
      %v3434 = vpop.permute.xlu0 %3433
      %3435 = vrot.lane.b32.xlu0 %v3345, 4
      %v3436 = vpop.permute.xlu0 %3435
      %3437 = vrot.lane.b32.xlu0 %v3346, 4
      %v3438 = vpop.permute.xlu0 %3437
      %3439 = vrot.lane.b32.xlu0 %v3347, 4
      %v3440 = vpop.permute.xlu0 %3439
      %3441 = vrot.lane.b32.xlu0 %v3348, 4
      %v3442 = vpop.permute.xlu0 %3441
      %3443 = vrot.lane.b32.xlu0 %v3349, 4
      %v3444 = vpop.permute.xlu0 %3443
      %3445 = vrot.lane.b32.xlu0 %v3350, 4
      %v3446 = vpop.permute.xlu0 %3445
      %3479 = vst.msk [vmem:[%s1293] sm:$0xff] %vm479, %v3384
      %3480 = vst.msk [vmem:[%s1293 + $0x8] sm:$0xff] %vm479, %v3386
      %3481 = vst.msk [vmem:[%s1293 + $0x10] sm:$0xff] %vm479, %v3388
      %3482 = vst.msk [vmem:[%s1293 + $0x18] sm:$0xff] %vm479, %v3390
      %3483 = vst.msk [vmem:[%s1293 + $0x20] sm:$0xff] %vm479, %v3392
      %3484 = vst.msk [vmem:[%s1293 + $0x28] sm:$0xff] %vm479, %v3394
      %3485 = vst.msk [vmem:[%s1293 + $0x30] sm:$0xff] %vm479, %v3396
      %3486 = vst.msk [vmem:[%s1293 + $0x38] sm:$0xff] %vm479, %v3398
      %3487 = vst.msk [vmem:[%s1293 + $0x40] sm:$0xff] %vm479, %v3400
      %3488 = vst.msk [vmem:[%s1293 + $0x48] sm:$0xff] %vm479, %v3402
      %3489 = vst.msk [vmem:[%s1293 + $0x50] sm:$0xff] %vm479, %v3404
      %3490 = vst.msk [vmem:[%s1293 + $0x58] sm:$0xff] %vm479, %v3406
      %3491 = vst.msk [vmem:[%s1293 + $0x60] sm:$0xff] %vm479, %v3408
      %3492 = vst.msk [vmem:[%s1293 + $0x68] sm:$0xff] %vm479, %v3410
      %3493 = vst.msk [vmem:[%s1293 + $0x70] sm:$0xff] %vm479, %v3412
      %3494 = vst.msk [vmem:[%s1293 + $0x78] sm:$0xff] %vm479, %v3414
      %3495 = vst.msk [vmem:[%s1293 + $0x80] sm:$0xff] %vm479, %v3416
      %3496 = vst.msk [vmem:[%s1293 + $0x88] sm:$0xff] %vm479, %v3418
      %3497 = vst.msk [vmem:[%s1293 + $0x90] sm:$0xff] %vm479, %v3420
      %3498 = vst.msk [vmem:[%s1293 + $0x98] sm:$0xff] %vm479, %v3422
      %3499 = vst.msk [vmem:[%s1293 + $0xa0] sm:$0xff] %vm479, %v3424
      %3500 = vst.msk [vmem:[%s1293 + $0xa8] sm:$0xff] %vm479, %v3426
      %3501 = vst.msk [vmem:[%s1293 + $0xb0] sm:$0xff] %vm479, %v3428
      %3502 = vst.msk [vmem:[%s1293 + $0xb8] sm:$0xff] %vm479, %v3430
      %3503 = vst.msk [vmem:[%s1293 + $0xc0] sm:$0xff] %vm479, %v3432
      %3504 = vst.msk [vmem:[%s1293 + $0xc8] sm:$0xff] %vm479, %v3434
      %3505 = vst.msk [vmem:[%s1293 + $0xd0] sm:$0xff] %vm479, %v3436
      %3506 = vst.msk [vmem:[%s1293 + $0xd8] sm:$0xff] %vm479, %v3438
      %3507 = vst.msk [vmem:[%s1293 + $0xe0] sm:$0xff] %vm479, %v3440
      %3508 = vst.msk [vmem:[%s1293 + $0xe8] sm:$0xff] %vm479, %v3442
      %3509 = vst.msk [vmem:[%s1293 + $0xf0] sm:$0xff] %vm479, %v3444
      %3510 = vst.msk [vmem:[%s1293 + $0xf8] sm:$0xff] %vm479, %v3446
      %v3511 = vld [vmem:[%s2514 + $0x1] sm:$0xff]
      %v3512 = vld [vmem:[%s2514 + $0x9] sm:$0xff]
      %v3513 = vld [vmem:[%s2514 + $0x19] sm:$0xff]
      %v3514 = vld [vmem:[%s2514 + $0x21] sm:$0xff]
      %v3515 = vld [vmem:[%s2514 + $0x31] sm:$0xff]
      %v3516 = vld [vmem:[%s2514 + $0x39] sm:$0xff]
      %v3517 = vld [vmem:[%s2514 + $0x49] sm:$0xff]
      %v3518 = vld [vmem:[%s2514 + $0x51] sm:$0xff]
      %v3519 = vld [vmem:[%s2514 + $0x61] sm:$0xff]
      %v3520 = vld [vmem:[%s2514 + $0x69] sm:$0xff]
      %v3521 = vld [vmem:[%s2514 + $0x79] sm:$0xff]
      %v3522 = vld [vmem:[%s2514 + $0x81] sm:$0xff]
      %v3523 = vld [vmem:[%s2514 + $0x91] sm:$0xff]
      %v3524 = vld [vmem:[%s2514 + $0x99] sm:$0xff]
      %v3525 = vld [vmem:[%s2514 + $0xa9] sm:$0xff]
      %v3526 = vld [vmem:[%s2514 + $0xb1] sm:$0xff]
      %v3527 = vld [vmem:[%s2514 + $0xc1] sm:$0xff]
      %v3528 = vld [vmem:[%s2514 + $0xc9] sm:$0xff]
      %v3529 = vld [vmem:[%s2514 + $0xd9] sm:$0xff]
      %v3530 = vld [vmem:[%s2514 + $0xe1] sm:$0xff]
      %v3531 = vld [vmem:[%s2514 + $0xf1] sm:$0xff]
      %v3532 = vld [vmem:[%s2514 + $0xf9] sm:$0xff]
      %v3533 = vld [vmem:[%s2514 + $0x109] sm:$0xff]
      %v3534 = vld [vmem:[%s2514 + $0x111] sm:$0xff]
      %v3535 = vld [vmem:[%s2514 + $0x121] sm:$0xff]
      %v3536 = vld [vmem:[%s2514 + $0x129] sm:$0xff]
      %v3537 = vld [vmem:[%s2514 + $0x139] sm:$0xff]
      %v3538 = vld [vmem:[%s2514 + $0x141] sm:$0xff]
      %v3539 = vld [vmem:[%s2514 + $0x151] sm:$0xff]
      %v3540 = vld [vmem:[%s2514 + $0x159] sm:$0xff]
      %v3541 = vld [vmem:[%s2514 + $0x169] sm:$0xff]
      %v3542 = vld [vmem:[%s2514 + $0x171] sm:$0xff]
      %3575 = vrot.lane.b32.xlu0 %v3511, 8
      %v3576 = vpop.permute.xlu0 %3575
      %3577 = vrot.lane.b32.xlu0 %v3512, 8
      %v3578 = vpop.permute.xlu0 %3577
      %3579 = vrot.lane.b32.xlu0 %v3513, 8
      %v3580 = vpop.permute.xlu0 %3579
      %3581 = vrot.lane.b32.xlu0 %v3514, 8
      %v3582 = vpop.permute.xlu0 %3581
      %3583 = vrot.lane.b32.xlu0 %v3515, 8
      %v3584 = vpop.permute.xlu0 %3583
      %3585 = vrot.lane.b32.xlu0 %v3516, 8
      %v3586 = vpop.permute.xlu0 %3585
      %3587 = vrot.lane.b32.xlu0 %v3517, 8
      %v3588 = vpop.permute.xlu0 %3587
      %3589 = vrot.lane.b32.xlu0 %v3518, 8
      %v3590 = vpop.permute.xlu0 %3589
      %3591 = vrot.lane.b32.xlu0 %v3519, 8
      %v3592 = vpop.permute.xlu0 %3591
      %3593 = vrot.lane.b32.xlu0 %v3520, 8
      %v3594 = vpop.permute.xlu0 %3593
      %3595 = vrot.lane.b32.xlu0 %v3521, 8
      %v3596 = vpop.permute.xlu0 %3595
      %3597 = vrot.lane.b32.xlu0 %v3522, 8
      %v3598 = vpop.permute.xlu0 %3597
      %3599 = vrot.lane.b32.xlu0 %v3523, 8
      %v3600 = vpop.permute.xlu0 %3599
      %3601 = vrot.lane.b32.xlu0 %v3524, 8
      %v3602 = vpop.permute.xlu0 %3601
      %3603 = vrot.lane.b32.xlu0 %v3525, 8
      %v3604 = vpop.permute.xlu0 %3603
      %3605 = vrot.lane.b32.xlu0 %v3526, 8
      %v3606 = vpop.permute.xlu0 %3605
      %3607 = vrot.lane.b32.xlu0 %v3527, 8
      %v3608 = vpop.permute.xlu0 %3607
      %3609 = vrot.lane.b32.xlu0 %v3528, 8
      %v3610 = vpop.permute.xlu0 %3609
      %3611 = vrot.lane.b32.xlu0 %v3529, 8
      %v3612 = vpop.permute.xlu0 %3611
      %3613 = vrot.lane.b32.xlu0 %v3530, 8
      %v3614 = vpop.permute.xlu0 %3613
      %3615 = vrot.lane.b32.xlu0 %v3531, 8
      %v3616 = vpop.permute.xlu0 %3615
      %3617 = vrot.lane.b32.xlu0 %v3532, 8
      %v3618 = vpop.permute.xlu0 %3617
      %3619 = vrot.lane.b32.xlu0 %v3533, 8
      %v3620 = vpop.permute.xlu0 %3619
      %3621 = vrot.lane.b32.xlu0 %v3534, 8
      %v3622 = vpop.permute.xlu0 %3621
      %3623 = vrot.lane.b32.xlu0 %v3535, 8
      %v3624 = vpop.permute.xlu0 %3623
      %3625 = vrot.lane.b32.xlu0 %v3536, 8
      %v3626 = vpop.permute.xlu0 %3625
      %3627 = vrot.lane.b32.xlu0 %v3537, 8
      %v3628 = vpop.permute.xlu0 %3627
      %3629 = vrot.lane.b32.xlu0 %v3538, 8
      %v3630 = vpop.permute.xlu0 %3629
      %3631 = vrot.lane.b32.xlu0 %v3539, 8
      %v3632 = vpop.permute.xlu0 %3631
      %3633 = vrot.lane.b32.xlu0 %v3540, 8
      %v3634 = vpop.permute.xlu0 %3633
      %3635 = vrot.lane.b32.xlu0 %v3541, 8
      %v3636 = vpop.permute.xlu0 %3635
      %3637 = vrot.lane.b32.xlu0 %v3542, 8
      %v3638 = vpop.permute.xlu0 %3637
      %3671 = vst.msk [vmem:[%s1293] sm:$0xff] %vm673, %v3576
      %3672 = vst.msk [vmem:[%s1293 + $0x8] sm:$0xff] %vm673, %v3578
      %3673 = vst.msk [vmem:[%s1293 + $0x10] sm:$0xff] %vm673, %v3580
      %3674 = vst.msk [vmem:[%s1293 + $0x18] sm:$0xff] %vm673, %v3582
      %3675 = vst.msk [vmem:[%s1293 + $0x20] sm:$0xff] %vm673, %v3584
      %3676 = vst.msk [vmem:[%s1293 + $0x28] sm:$0xff] %vm673, %v3586
      %3677 = vst.msk [vmem:[%s1293 + $0x30] sm:$0xff] %vm673, %v3588
      %3678 = vst.msk [vmem:[%s1293 + $0x38] sm:$0xff] %vm673, %v3590
      %3679 = vst.msk [vmem:[%s1293 + $0x40] sm:$0xff] %vm673, %v3592
      %3680 = vst.msk [vmem:[%s1293 + $0x48] sm:$0xff] %vm673, %v3594
      %3681 = vst.msk [vmem:[%s1293 + $0x50] sm:$0xff] %vm673, %v3596
      %3682 = vst.msk [vmem:[%s1293 + $0x58] sm:$0xff] %vm673, %v3598
      %3683 = vst.msk [vmem:[%s1293 + $0x60] sm:$0xff] %vm673, %v3600
      %3684 = vst.msk [vmem:[%s1293 + $0x68] sm:$0xff] %vm673, %v3602
      %3685 = vst.msk [vmem:[%s1293 + $0x70] sm:$0xff] %vm673, %v3604
      %3686 = vst.msk [vmem:[%s1293 + $0x78] sm:$0xff] %vm673, %v3606
      %3687 = vst.msk [vmem:[%s1293 + $0x80] sm:$0xff] %vm673, %v3608
      %3688 = vst.msk [vmem:[%s1293 + $0x88] sm:$0xff] %vm673, %v3610
      %3689 = vst.msk [vmem:[%s1293 + $0x90] sm:$0xff] %vm673, %v3612
      %3690 = vst.msk [vmem:[%s1293 + $0x98] sm:$0xff] %vm673, %v3614
      %3691 = vst.msk [vmem:[%s1293 + $0xa0] sm:$0xff] %vm673, %v3616
      %3692 = vst.msk [vmem:[%s1293 + $0xa8] sm:$0xff] %vm673, %v3618
      %3693 = vst.msk [vmem:[%s1293 + $0xb0] sm:$0xff] %vm673, %v3620
      %3694 = vst.msk [vmem:[%s1293 + $0xb8] sm:$0xff] %vm673, %v3622
      %3695 = vst.msk [vmem:[%s1293 + $0xc0] sm:$0xff] %vm673, %v3624
      %3696 = vst.msk [vmem:[%s1293 + $0xc8] sm:$0xff] %vm673, %v3626
      %3697 = vst.msk [vmem:[%s1293 + $0xd0] sm:$0xff] %vm673, %v3628
      %3698 = vst.msk [vmem:[%s1293 + $0xd8] sm:$0xff] %vm673, %v3630
      %3699 = vst.msk [vmem:[%s1293 + $0xe0] sm:$0xff] %vm673, %v3632
      %3700 = vst.msk [vmem:[%s1293 + $0xe8] sm:$0xff] %vm673, %v3634
      %3701 = vst.msk [vmem:[%s1293 + $0xf0] sm:$0xff] %vm673, %v3636
      %3702 = vst.msk [vmem:[%s1293 + $0xf8] sm:$0xff] %vm673, %v3638
      %v3703 = vld [vmem:[%s2514 + $0x2] sm:$0xff]
      %v3704 = vld [vmem:[%s2514 + $0xa] sm:$0xff]
      %v3705 = vld [vmem:[%s2514 + $0x1a] sm:$0xff]
      %v3706 = vld [vmem:[%s2514 + $0x22] sm:$0xff]
      %v3707 = vld [vmem:[%s2514 + $0x32] sm:$0xff]
      %v3708 = vld [vmem:[%s2514 + $0x3a] sm:$0xff]
      %v3709 = vld [vmem:[%s2514 + $0x4a] sm:$0xff]
      %v3710 = vld [vmem:[%s2514 + $0x52] sm:$0xff]
      %v3711 = vld [vmem:[%s2514 + $0x62] sm:$0xff]
      %v3712 = vld [vmem:[%s2514 + $0x6a] sm:$0xff]
      %v3713 = vld [vmem:[%s2514 + $0x7a] sm:$0xff]
      %v3714 = vld [vmem:[%s2514 + $0x82] sm:$0xff]
      %v3715 = vld [vmem:[%s2514 + $0x92] sm:$0xff]
      %v3716 = vld [vmem:[%s2514 + $0x9a] sm:$0xff]
      %v3717 = vld [vmem:[%s2514 + $0xaa] sm:$0xff]
      %v3718 = vld [vmem:[%s2514 + $0xb2] sm:$0xff]
      %v3719 = vld [vmem:[%s2514 + $0xc2] sm:$0xff]
      %v3720 = vld [vmem:[%s2514 + $0xca] sm:$0xff]
      %v3721 = vld [vmem:[%s2514 + $0xda] sm:$0xff]
      %v3722 = vld [vmem:[%s2514 + $0xe2] sm:$0xff]
      %v3723 = vld [vmem:[%s2514 + $0xf2] sm:$0xff]
      %v3724 = vld [vmem:[%s2514 + $0xfa] sm:$0xff]
      %v3725 = vld [vmem:[%s2514 + $0x10a] sm:$0xff]
      %v3726 = vld [vmem:[%s2514 + $0x112] sm:$0xff]
      %v3727 = vld [vmem:[%s2514 + $0x122] sm:$0xff]
      %v3728 = vld [vmem:[%s2514 + $0x12a] sm:$0xff]
      %v3729 = vld [vmem:[%s2514 + $0x13a] sm:$0xff]
      %v3730 = vld [vmem:[%s2514 + $0x142] sm:$0xff]
      %v3731 = vld [vmem:[%s2514 + $0x152] sm:$0xff]
      %v3732 = vld [vmem:[%s2514 + $0x15a] sm:$0xff]
      %v3733 = vld [vmem:[%s2514 + $0x16a] sm:$0xff]
      %v3734 = vld [vmem:[%s2514 + $0x172] sm:$0xff]
      %3767 = vrot.lane.b32.xlu0 %v3703, 12
      %v3768 = vpop.permute.xlu0 %3767
      %3769 = vrot.lane.b32.xlu0 %v3704, 12
      %v3770 = vpop.permute.xlu0 %3769
      %3771 = vrot.lane.b32.xlu0 %v3705, 12
      %v3772 = vpop.permute.xlu0 %3771
      %3773 = vrot.lane.b32.xlu0 %v3706, 12
      %v3774 = vpop.permute.xlu0 %3773
      %3775 = vrot.lane.b32.xlu0 %v3707, 12
      %v3776 = vpop.permute.xlu0 %3775
      %3777 = vrot.lane.b32.xlu0 %v3708, 12
      %v3778 = vpop.permute.xlu0 %3777
      %3779 = vrot.lane.b32.xlu0 %v3709, 12
      %v3780 = vpop.permute.xlu0 %3779
      %3781 = vrot.lane.b32.xlu0 %v3710, 12
      %v3782 = vpop.permute.xlu0 %3781
      %3783 = vrot.lane.b32.xlu0 %v3711, 12
      %v3784 = vpop.permute.xlu0 %3783
      %3785 = vrot.lane.b32.xlu0 %v3712, 12
      %v3786 = vpop.permute.xlu0 %3785
      %3787 = vrot.lane.b32.xlu0 %v3713, 12
      %v3788 = vpop.permute.xlu0 %3787
      %3789 = vrot.lane.b32.xlu0 %v3714, 12
      %v3790 = vpop.permute.xlu0 %3789
      %3791 = vrot.lane.b32.xlu0 %v3715, 12
      %v3792 = vpop.permute.xlu0 %3791
      %3793 = vrot.lane.b32.xlu0 %v3716, 12
      %v3794 = vpop.permute.xlu0 %3793
      %3795 = vrot.lane.b32.xlu0 %v3717, 12
      %v3796 = vpop.permute.xlu0 %3795
      %3797 = vrot.lane.b32.xlu0 %v3718, 12
      %v3798 = vpop.permute.xlu0 %3797
      %3799 = vrot.lane.b32.xlu0 %v3719, 12
      %v3800 = vpop.permute.xlu0 %3799
      %3801 = vrot.lane.b32.xlu0 %v3720, 12
      %v3802 = vpop.permute.xlu0 %3801
      %3803 = vrot.lane.b32.xlu0 %v3721, 12
      %v3804 = vpop.permute.xlu0 %3803
      %3805 = vrot.lane.b32.xlu0 %v3722, 12
      %v3806 = vpop.permute.xlu0 %3805
      %3807 = vrot.lane.b32.xlu0 %v3723, 12
      %v3808 = vpop.permute.xlu0 %3807
      %3809 = vrot.lane.b32.xlu0 %v3724, 12
      %v3810 = vpop.permute.xlu0 %3809
      %3811 = vrot.lane.b32.xlu0 %v3725, 12
      %v3812 = vpop.permute.xlu0 %3811
      %3813 = vrot.lane.b32.xlu0 %v3726, 12
      %v3814 = vpop.permute.xlu0 %3813
      %3815 = vrot.lane.b32.xlu0 %v3727, 12
      %v3816 = vpop.permute.xlu0 %3815
      %3817 = vrot.lane.b32.xlu0 %v3728, 12
      %v3818 = vpop.permute.xlu0 %3817
      %3819 = vrot.lane.b32.xlu0 %v3729, 12
      %v3820 = vpop.permute.xlu0 %3819
      %3821 = vrot.lane.b32.xlu0 %v3730, 12
      %v3822 = vpop.permute.xlu0 %3821
      %3823 = vrot.lane.b32.xlu0 %v3731, 12
      %v3824 = vpop.permute.xlu0 %3823
      %3825 = vrot.lane.b32.xlu0 %v3732, 12
      %v3826 = vpop.permute.xlu0 %3825
      %3827 = vrot.lane.b32.xlu0 %v3733, 12
      %v3828 = vpop.permute.xlu0 %3827
      %3829 = vrot.lane.b32.xlu0 %v3734, 12
      %v3830 = vpop.permute.xlu0 %3829
      %3863 = vst.msk [vmem:[%s1293] sm:$0xff] %vm866, %v3768
      %3864 = vst.msk [vmem:[%s1293 + $0x8] sm:$0xff] %vm866, %v3770
      %3865 = vst.msk [vmem:[%s1293 + $0x10] sm:$0xff] %vm866, %v3772
      %3866 = vst.msk [vmem:[%s1293 + $0x18] sm:$0xff] %vm866, %v3774
      %3867 = vst.msk [vmem:[%s1293 + $0x20] sm:$0xff] %vm866, %v3776
      %3868 = vst.msk [vmem:[%s1293 + $0x28] sm:$0xff] %vm866, %v3778
      %3869 = vst.msk [vmem:[%s1293 + $0x30] sm:$0xff] %vm866, %v3780
      %3870 = vst.msk [vmem:[%s1293 + $0x38] sm:$0xff] %vm866, %v3782
      %3871 = vst.msk [vmem:[%s1293 + $0x40] sm:$0xff] %vm866, %v3784
      %3872 = vst.msk [vmem:[%s1293 + $0x48] sm:$0xff] %vm866, %v3786
      %3873 = vst.msk [vmem:[%s1293 + $0x50] sm:$0xff] %vm866, %v3788
      %3874 = vst.msk [vmem:[%s1293 + $0x58] sm:$0xff] %vm866, %v3790
      %3875 = vst.msk [vmem:[%s1293 + $0x60] sm:$0xff] %vm866, %v3792
      %3876 = vst.msk [vmem:[%s1293 + $0x68] sm:$0xff] %vm866, %v3794
      %3877 = vst.msk [vmem:[%s1293 + $0x70] sm:$0xff] %vm866, %v3796
      %3878 = vst.msk [vmem:[%s1293 + $0x78] sm:$0xff] %vm866, %v3798
      %3879 = vst.msk [vmem:[%s1293 + $0x80] sm:$0xff] %vm866, %v3800
      %3880 = vst.msk [vmem:[%s1293 + $0x88] sm:$0xff] %vm866, %v3802
      %3881 = vst.msk [vmem:[%s1293 + $0x90] sm:$0xff] %vm866, %v3804
      %3882 = vst.msk [vmem:[%s1293 + $0x98] sm:$0xff] %vm866, %v3806
      %3883 = vst.msk [vmem:[%s1293 + $0xa0] sm:$0xff] %vm866, %v3808
      %3884 = vst.msk [vmem:[%s1293 + $0xa8] sm:$0xff] %vm866, %v3810
      %3885 = vst.msk [vmem:[%s1293 + $0xb0] sm:$0xff] %vm866, %v3812
      %3886 = vst.msk [vmem:[%s1293 + $0xb8] sm:$0xff] %vm866, %v3814
      %3887 = vst.msk [vmem:[%s1293 + $0xc0] sm:$0xff] %vm866, %v3816
      %3888 = vst.msk [vmem:[%s1293 + $0xc8] sm:$0xff] %vm866, %v3818
      %3889 = vst.msk [vmem:[%s1293 + $0xd0] sm:$0xff] %vm866, %v3820
      %3890 = vst.msk [vmem:[%s1293 + $0xd8] sm:$0xff] %vm866, %v3822
      %3891 = vst.msk [vmem:[%s1293 + $0xe0] sm:$0xff] %vm866, %v3824
      %3892 = vst.msk [vmem:[%s1293 + $0xe8] sm:$0xff] %vm866, %v3826
      %3893 = vst.msk [vmem:[%s1293 + $0xf0] sm:$0xff] %vm866, %v3828
      %3894 = vst.msk [vmem:[%s1293 + $0xf8] sm:$0xff] %vm866, %v3830
      %v3895 = vld [vmem:[%s1293] sm:$0xff]
      %v3896 = vld [vmem:[%s1293 + $0x8] sm:$0xff]
      %v3897 = vld [vmem:[%s1293 + $0x10] sm:$0xff]
      %v3898 = vld [vmem:[%s1293 + $0x18] sm:$0xff]
      %v3899 = vld [vmem:[%s1293 + $0x20] sm:$0xff]
      %v3900 = vld [vmem:[%s1293 + $0x28] sm:$0xff]
      %v3901 = vld [vmem:[%s1293 + $0x30] sm:$0xff]
      %v3902 = vld [vmem:[%s1293 + $0x38] sm:$0xff]
      %v3903 = vld [vmem:[%s1293 + $0x40] sm:$0xff]
      %v3904 = vld [vmem:[%s1293 + $0x48] sm:$0xff]
      %v3905 = vld [vmem:[%s1293 + $0x50] sm:$0xff]
      %v3906 = vld [vmem:[%s1293 + $0x58] sm:$0xff]
      %v3907 = vld [vmem:[%s1293 + $0x60] sm:$0xff]
      %v3908 = vld [vmem:[%s1293 + $0x68] sm:$0xff]
      %v3909 = vld [vmem:[%s1293 + $0x70] sm:$0xff]
      %v3910 = vld [vmem:[%s1293 + $0x78] sm:$0xff]
      %v3911 = vld [vmem:[%s1293 + $0x80] sm:$0xff]
      %v3912 = vld [vmem:[%s1293 + $0x88] sm:$0xff]
      %v3913 = vld [vmem:[%s1293 + $0x90] sm:$0xff]
      %v3914 = vld [vmem:[%s1293 + $0x98] sm:$0xff]
      %v3915 = vld [vmem:[%s1293 + $0xa0] sm:$0xff]
      %v3916 = vld [vmem:[%s1293 + $0xa8] sm:$0xff]
      %v3917 = vld [vmem:[%s1293 + $0xb0] sm:$0xff]
      %v3918 = vld [vmem:[%s1293 + $0xb8] sm:$0xff]
      %v3919 = vld [vmem:[%s1293 + $0xc0] sm:$0xff]
      %v3920 = vld [vmem:[%s1293 + $0xc8] sm:$0xff]
      %v3921 = vld [vmem:[%s1293 + $0xd0] sm:$0xff]
      %v3922 = vld [vmem:[%s1293 + $0xd8] sm:$0xff]
      %v3923 = vld [vmem:[%s1293 + $0xe0] sm:$0xff]
      %v3924 = vld [vmem:[%s1293 + $0xe8] sm:$0xff]
      %v3925 = vld [vmem:[%s1293 + $0xf0] sm:$0xff]
      %v3926 = vld [vmem:[%s1293 + $0xf8] sm:$0xff]
      %s3927 = scalar_lea.vmem %s228, 48
      %v3928 = vld [vmem:[%s3927] sm:$0xff]
      %v3929 = vld [vmem:[%s3927 + $0x8] sm:$0xff]
      %v3931 = vsel %vm939, %v3895, 0
      %v3934 = vsel %vm939, %v3896, 0
      %v3937 = vsel %vm939, %v3897, 0
      %v3940 = vsel %vm939, %v3898, 0
      %v3943 = vsel %vm939, %v3899, 0
      %v3946 = vsel %vm939, %v3900, 0
      %v3949 = vsel %vm939, %v3901, 0
      %v3952 = vsel %vm939, %v3902, 0
      %v3955 = vsel %vm939, %v3903, 0
      %v3958 = vsel %vm939, %v3904, 0
      %v3961 = vsel %vm939, %v3905, 0
      %v3964 = vsel %vm939, %v3906, 0
      %v3967 = vsel %vm939, %v3907, 0
      %v3970 = vsel %vm939, %v3908, 0
      %v3973 = vsel %vm939, %v3909, 0
      %v3976 = vsel %vm939, %v3910, 0
      %v3979 = vsel %vm939, %v3911, 0
      %v3982 = vsel %vm939, %v3912, 0
      %v3985 = vsel %vm939, %v3913, 0
      %v3988 = vsel %vm939, %v3914, 0
      %v3991 = vsel %vm939, %v3915, 0
      %v3994 = vsel %vm939, %v3916, 0
      %v3997 = vsel %vm939, %v3917, 0
      %v4000 = vsel %vm939, %v3918, 0
      %v4003 = vsel %vm939, %v3919, 0
      %v4006 = vsel %vm939, %v3920, 0
      %v4009 = vsel %vm939, %v3921, 0
      %v4012 = vsel %vm939, %v3922, 0
      %v4015 = vsel %vm939, %v3923, 0
      %v4018 = vsel %vm939, %v3924, 0
      %v4021 = vsel %vm939, %v3925, 0
      %v4024 = vsel %vm939, %v3926, 0
      %4026 = vmatprep.subr.mxu0 0.0
      %4027 = vmatpush1.msra.mxu0 %v3928
      %4028 = vmatprep.subr.mxu0 0.0
      %4029 = vmatpush1.msra.mxu0 %v3929
      %4030 = vmatprep.subr.mxu0 0.0
      %4031 = vmatpush1.msra.mxu0 0.0
      %4032 = vmatprep.subr.mxu0 0.0
      %4033 = vmatpush1.msra.mxu0 0.0
      %4034 = vmatprep.subr.mxu0 0.0
      %4035 = vmatpush1.msra.mxu0 0.0
      %4036 = vmatprep.subr.mxu0 0.0
      %4037 = vmatpush1.msra.mxu0 0.0
      %4038 = vmatprep.subr.mxu0 0.0
      %4039 = vmatpush1.msra.mxu0 0.0
      %4040 = vmatprep.subr.mxu0 0.0
      %4041 = vmatpush1.msra.mxu0 0.0
      %4042 = vmatprep.subr.mxu0 0.0
      %4043 = vmatpush1.msra.mxu0 0.0
      %4044 = vmatprep.subr.mxu0 0.0
      %4045 = vmatpush1.msra.mxu0 0.0
      %4046 = vmatprep.subr.mxu0 0.0
      %4047 = vmatpush1.msra.mxu0 0.0
      %4048 = vmatprep.subr.mxu0 0.0
      %4049 = vmatpush1.msra.mxu0 0.0
      %4050 = vmatprep.subr.mxu0 0.0
      %4051 = vmatpush1.msra.mxu0 0.0
      %4052 = vmatprep.subr.mxu0 0.0
      %4053 = vmatpush1.msra.mxu0 0.0
      %4054 = vmatprep.subr.mxu0 0.0
      %4055 = vmatpush1.msra.mxu0 0.0
      %4056 = vmatprep.subr.mxu0 0.0
      %4057 = vmatpush1.msra.mxu0 0.0
      %4058 = vmatprep.subr.mxu0 0.0
      %4059 = vmatpush1.msra.mxu0 0.0
      %4060 = vmatprep.subr.mxu0 0.0
      %4061 = vmatpush1.msra.mxu0 0.0
      %4062 = vmatprep.subr.mxu0 0.0
      %4063 = vmatpush1.msra.mxu0 0.0
      %4064 = vmatprep.subr.mxu0 0.0
      %4065 = vmatpush1.msra.mxu0 0.0
      %4066 = vmatprep.subr.mxu0 0.0
      %4067 = vmatpush1.msra.mxu0 0.0
      %4068 = vmatprep.subr.mxu0 0.0
      %4069 = vmatpush1.msra.mxu0 0.0
      %4070 = vmatprep.subr.mxu0 0.0
      %4071 = vmatpush1.msra.mxu0 0.0
      %4072 = vmatprep.subr.mxu0 0.0
      %4073 = vmatpush1.msra.mxu0 0.0
      %4074 = vmatprep.subr.mxu0 0.0
      %4075 = vmatpush1.msra.mxu0 0.0
      %4076 = vmatprep.subr.mxu0 0.0
      %4077 = vmatpush1.msra.mxu0 0.0
      %4078 = vmatprep.subr.mxu0 0.0
      %4079 = vmatpush1.msra.mxu0 0.0
      %4080 = vmatprep.subr.mxu0 0.0
      %4081 = vmatpush1.msra.mxu0 0.0
      %4082 = vmatprep.subr.mxu0 0.0
      %4083 = vmatpush1.msra.mxu0 0.0
      %4084 = vmatprep.subr.mxu0 0.0
      %4085 = vmatpush1.msra.mxu0 0.0
      %4086 = vmatprep.subr.mxu0 0.0
      %4087 = vmatpush1.msra.mxu0 0.0
      %4088 = vmatprep.subr.mxu0 0.0
      %4089 = vmatpush1.msra.mxu0 0.0
      %4090 = vmatprep.mubr.f32.mxu0 0.0
      %4091 = vmatmul.mubr.f32.gmra.mrb[0].mxu0 %v3931
      %v4092 = vpop.f32.mrb[0].mxu0
      %v4093 = vadd.f32 %v937, %v4092
      %v4094 = vpop.f32.mrb[0].mxu0
      %4095 = vmatprep.mubr.f32.mxu0 0.0
      %4096 = vmatmul.mubr.f32.gmra.mrb[0].mxu0 %v3934
      %v4097 = vpop.f32.mrb[0].mxu0
      %v4098 = vadd.f32 %v937, %v4097
      %v4099 = vpop.f32.mrb[0].mxu0
      %4100 = vmatprep.mubr.f32.mxu0 0.0
      %4101 = vmatmul.mubr.f32.gmra.mrb[0].mxu0 %v3937
      %v4102 = vpop.f32.mrb[0].mxu0
      %v4103 = vadd.f32 %v937, %v4102
      %v4104 = vpop.f32.mrb[0].mxu0
      %4105 = vmatprep.mubr.f32.mxu0 0.0
      %4106 = vmatmul.mubr.f32.gmra.mrb[0].mxu0 %v3940
      %v4107 = vpop.f32.mrb[0].mxu0
      %v4108 = vadd.f32 %v937, %v4107
      %v4109 = vpop.f32.mrb[0].mxu0
      %4110 = vmatprep.mubr.f32.mxu0 0.0
      %4111 = vmatmul.mubr.f32.gmra.mrb[0].mxu0 %v3943
      %v4112 = vpop.f32.mrb[0].mxu0
      %v4113 = vadd.f32 %v937, %v4112
      %v4114 = vpop.f32.mrb[0].mxu0
      %4115 = vmatprep.mubr.f32.mxu0 0.0
      %4116 = vmatmul.mubr.f32.gmra.mrb[0].mxu0 %v3946
      %v4117 = vpop.f32.mrb[0].mxu0
      %v4118 = vadd.f32 %v937, %v4117
      %v4119 = vpop.f32.mrb[0].mxu0
      %4120 = vmatprep.mubr.f32.mxu0 0.0
      %4121 = vmatmul.mubr.f32.gmra.mrb[0].mxu0 %v3949
      %v4122 = vpop.f32.mrb[0].mxu0
      %v4123 = vadd.f32 %v937, %v4122
      %v4124 = vpop.f32.mrb[0].mxu0
      %4125 = vmatprep.mubr.f32.mxu0 0.0
      %4126 = vmatmul.mubr.f32.gmra.mrb[0].mxu0 %v3952
      %v4127 = vpop.f32.mrb[0].mxu0
      %v4128 = vadd.f32 %v937, %v4127
      %v4129 = vpop.f32.mrb[0].mxu0
      %4130 = vmatprep.mubr.f32.mxu0 0.0
      %4131 = vmatmul.mubr.f32.gmra.mrb[0].mxu0 %v3955
      %v4132 = vpop.f32.mrb[0].mxu0
      %v4133 = vadd.f32 %v937, %v4132
      %v4134 = vpop.f32.mrb[0].mxu0
      %4135 = vmatprep.mubr.f32.mxu0 0.0
      %4136 = vmatmul.mubr.f32.gmra.mrb[0].mxu0 %v3958
      %v4137 = vpop.f32.mrb[0].mxu0
      %v4138 = vadd.f32 %v937, %v4137
      %v4139 = vpop.f32.mrb[0].mxu0
      %4140 = vmatprep.mubr.f32.mxu0 0.0
      %4141 = vmatmul.mubr.f32.gmra.mrb[0].mxu0 %v3961
      %v4142 = vpop.f32.mrb[0].mxu0
      %v4143 = vadd.f32 %v937, %v4142
      %v4144 = vpop.f32.mrb[0].mxu0
      %4145 = vmatprep.mubr.f32.mxu0 0.0
      %4146 = vmatmul.mubr.f32.gmra.mrb[0].mxu0 %v3964
      %v4147 = vpop.f32.mrb[0].mxu0
      %v4148 = vadd.f32 %v937, %v4147
      %v4149 = vpop.f32.mrb[0].mxu0
      %4150 = vmatprep.mubr.f32.mxu0 0.0
      %4151 = vmatmul.mubr.f32.gmra.mrb[0].mxu0 %v3967
      %v4152 = vpop.f32.mrb[0].mxu0
      %v4153 = vadd.f32 %v937, %v4152
      %v4154 = vpop.f32.mrb[0].mxu0
      %4155 = vmatprep.mubr.f32.mxu0 0.0
      %4156 = vmatmul.mubr.f32.gmra.mrb[0].mxu0 %v3970
      %v4157 = vpop.f32.mrb[0].mxu0
      %v4158 = vadd.f32 %v937, %v4157
      %v4159 = vpop.f32.mrb[0].mxu0
      %4160 = vmatprep.mubr.f32.mxu0 0.0
      %4161 = vmatmul.mubr.f32.gmra.mrb[0].mxu0 %v3973
      %v4162 = vpop.f32.mrb[0].mxu0
      %v4163 = vadd.f32 %v937, %v4162
      %v4164 = vpop.f32.mrb[0].mxu0
      %4165 = vmatprep.mubr.f32.mxu0 0.0
      %4166 = vmatmul.mubr.f32.gmra.mrb[0].mxu0 %v3976
      %v4167 = vpop.f32.mrb[0].mxu0
      %v4168 = vadd.f32 %v937, %v4167
      %v4169 = vpop.f32.mrb[0].mxu0
      %4170 = vmatprep.mubr.f32.mxu0 0.0
      %4171 = vmatmul.mubr.f32.gmra.mrb[0].mxu0 %v3979
      %v4172 = vpop.f32.mrb[0].mxu0
      %v4173 = vadd.f32 %v937, %v4172
      %v4174 = vpop.f32.mrb[0].mxu0
      %4175 = vmatprep.mubr.f32.mxu0 0.0
      %4176 = vmatmul.mubr.f32.gmra.mrb[0].mxu0 %v3982
      %v4177 = vpop.f32.mrb[0].mxu0
      %v4178 = vadd.f32 %v937, %v4177
      %v4179 = vpop.f32.mrb[0].mxu0
      %4180 = vmatprep.mubr.f32.mxu0 0.0
      %4181 = vmatmul.mubr.f32.gmra.mrb[0].mxu0 %v3985
      %v4182 = vpop.f32.mrb[0].mxu0
      %v4183 = vadd.f32 %v937, %v4182
      %v4184 = vpop.f32.mrb[0].mxu0
      %4185 = vmatprep.mubr.f32.mxu0 0.0
      %4186 = vmatmul.mubr.f32.gmra.mrb[0].mxu0 %v3988
      %v4187 = vpop.f32.mrb[0].mxu0
      %v4188 = vadd.f32 %v937, %v4187
      %v4189 = vpop.f32.mrb[0].mxu0
      %4190 = vmatprep.mubr.f32.mxu0 0.0
      %4191 = vmatmul.mubr.f32.gmra.mrb[0].mxu0 %v3991
      %v4192 = vpop.f32.mrb[0].mxu0
      %v4193 = vadd.f32 %v937, %v4192
      %v4194 = vpop.f32.mrb[0].mxu0
      %4195 = vmatprep.mubr.f32.mxu0 0.0
      %4196 = vmatmul.mubr.f32.gmra.mrb[0].mxu0 %v3994
      %v4197 = vpop.f32.mrb[0].mxu0
      %v4198 = vadd.f32 %v937, %v4197
      %v4199 = vpop.f32.mrb[0].mxu0
      %4200 = vmatprep.mubr.f32.mxu0 0.0
      %4201 = vmatmul.mubr.f32.gmra.mrb[0].mxu0 %v3997
      %v4202 = vpop.f32.mrb[0].mxu0
      %v4203 = vadd.f32 %v937, %v4202
      %v4204 = vpop.f32.mrb[0].mxu0
      %4205 = vmatprep.mubr.f32.mxu0 0.0
      %4206 = vmatmul.mubr.f32.gmra.mrb[0].mxu0 %v4000
      %v4207 = vpop.f32.mrb[0].mxu0
      %v4208 = vadd.f32 %v937, %v4207
      %v4209 = vpop.f32.mrb[0].mxu0
      %4210 = vmatprep.mubr.f32.mxu0 0.0
      %4211 = vmatmul.mubr.f32.gmra.mrb[0].mxu0 %v4003
      %v4212 = vpop.f32.mrb[0].mxu0
      %v4213 = vadd.f32 %v937, %v4212
      %v4214 = vpop.f32.mrb[0].mxu0
      %4215 = vmatprep.mubr.f32.mxu0 0.0
      %4216 = vmatmul.mubr.f32.gmra.mrb[0].mxu0 %v4006
      %v4217 = vpop.f32.mrb[0].mxu0
      %v4218 = vadd.f32 %v937, %v4217
      %v4219 = vpop.f32.mrb[0].mxu0
      %4220 = vmatprep.mubr.f32.mxu0 0.0
      %4221 = vmatmul.mubr.f32.gmra.mrb[0].mxu0 %v4009
      %v4222 = vpop.f32.mrb[0].mxu0
      %v4223 = vadd.f32 %v937, %v4222
      %v4224 = vpop.f32.mrb[0].mxu0
      %4225 = vmatprep.mubr.f32.mxu0 0.0
      %4226 = vmatmul.mubr.f32.gmra.mrb[0].mxu0 %v4012
      %v4227 = vpop.f32.mrb[0].mxu0
      %v4228 = vadd.f32 %v937, %v4227
      %v4229 = vpop.f32.mrb[0].mxu0
      %4230 = vmatprep.mubr.f32.mxu0 0.0
      %4231 = vmatmul.mubr.f32.gmra.mrb[0].mxu0 %v4015
      %v4232 = vpop.f32.mrb[0].mxu0
      %v4233 = vadd.f32 %v937, %v4232
      %v4234 = vpop.f32.mrb[0].mxu0
      %4235 = vmatprep.mubr.f32.mxu0 0.0
      %4236 = vmatmul.mubr.f32.gmra.mrb[0].mxu0 %v4018
      %v4237 = vpop.f32.mrb[0].mxu0
      %v4238 = vadd.f32 %v937, %v4237
      %v4239 = vpop.f32.mrb[0].mxu0
      %4240 = vmatprep.mubr.f32.mxu0 0.0
      %4241 = vmatmul.mubr.f32.gmra.mrb[0].mxu0 %v4021
      %v4242 = vpop.f32.mrb[0].mxu0
      %v4243 = vadd.f32 %v937, %v4242
      %v4244 = vpop.f32.mrb[0].mxu0
      %4245 = vmatprep.mubr.f32.mxu0 0.0
      %4246 = vmatmul.mubr.f32.gmra.mrb[0].mxu0 %v4024
      %v4247 = vpop.f32.mrb[0].mxu0
      %v4248 = vadd.f32 %v937, %v4247
      %v4249 = vpop.f32.mrb[0].mxu0
      %4250 = vdwg.mxu0
      %4283 = vrot.lane.b32.xlu0 %v2100, 4
      %v4284 = vpop.permute.xlu0 %4283
      %4285 = vrot.lane.b32.xlu0 %v2105, 4
      %v4286 = vpop.permute.xlu0 %4285
      %4287 = vrot.lane.b32.xlu0 %v2110, 4
      %v4288 = vpop.permute.xlu0 %4287
      %4289 = vrot.lane.b32.xlu0 %v2115, 4
      %v4290 = vpop.permute.xlu0 %4289
      %4291 = vrot.lane.b32.xlu0 %v2120, 4
      %v4292 = vpop.permute.xlu0 %4291
      %4293 = vrot.lane.b32.xlu0 %v2125, 4
      %v4294 = vpop.permute.xlu0 %4293
      %4295 = vrot.lane.b32.xlu0 %v2130, 4
      %v4296 = vpop.permute.xlu0 %4295
      %4297 = vrot.lane.b32.xlu0 %v2135, 4
      %v4298 = vpop.permute.xlu0 %4297
      %4299 = vrot.lane.b32.xlu0 %v2140, 4
      %v4300 = vpop.permute.xlu0 %4299
      %4301 = vrot.lane.b32.xlu0 %v2145, 4
      %v4302 = vpop.permute.xlu0 %4301
      %4303 = vrot.lane.b32.xlu0 %v2150, 4
      %v4304 = vpop.permute.xlu0 %4303
      %4305 = vrot.lane.b32.xlu0 %v2155, 4
      %v4306 = vpop.permute.xlu0 %4305
      %4307 = vrot.lane.b32.xlu0 %v2160, 4
      %v4308 = vpop.permute.xlu0 %4307
      %4309 = vrot.lane.b32.xlu0 %v2165, 4
      %v4310 = vpop.permute.xlu0 %4309
      %4311 = vrot.lane.b32.xlu0 %v2170, 4
      %v4312 = vpop.permute.xlu0 %4311
      %4313 = vrot.lane.b32.xlu0 %v2175, 4
      %v4314 = vpop.permute.xlu0 %4313
      %4315 = vrot.lane.b32.xlu0 %v2180, 4
      %v4316 = vpop.permute.xlu0 %4315
      %4317 = vrot.lane.b32.xlu0 %v2185, 4
      %v4318 = vpop.permute.xlu0 %4317
      %4319 = vrot.lane.b32.xlu0 %v2190, 4
      %v4320 = vpop.permute.xlu0 %4319
      %4321 = vrot.lane.b32.xlu0 %v2195, 4
      %v4322 = vpop.permute.xlu0 %4321
      %4323 = vrot.lane.b32.xlu0 %v2200, 4
      %v4324 = vpop.permute.xlu0 %4323
      %4325 = vrot.lane.b32.xlu0 %v2205, 4
      %v4326 = vpop.permute.xlu0 %4325
      %4327 = vrot.lane.b32.xlu0 %v2210, 4
      %v4328 = vpop.permute.xlu0 %4327
      %4329 = vrot.lane.b32.xlu0 %v2215, 4
      %v4330 = vpop.permute.xlu0 %4329
      %4331 = vrot.lane.b32.xlu0 %v2220, 4
      %v4332 = vpop.permute.xlu0 %4331
      %4333 = vrot.lane.b32.xlu0 %v2225, 4
      %v4334 = vpop.permute.xlu0 %4333
      %4335 = vrot.lane.b32.xlu0 %v2230, 4
      %v4336 = vpop.permute.xlu0 %4335
      %4337 = vrot.lane.b32.xlu0 %v2235, 4
      %v4338 = vpop.permute.xlu0 %4337
      %4339 = vrot.lane.b32.xlu0 %v2240, 4
      %v4340 = vpop.permute.xlu0 %4339
      %4341 = vrot.lane.b32.xlu0 %v2245, 4
      %v4342 = vpop.permute.xlu0 %4341
      %4343 = vrot.lane.b32.xlu0 %v2250, 4
      %v4344 = vpop.permute.xlu0 %4343
      %4345 = vrot.lane.b32.xlu0 %v2255, 4
      %v4346 = vpop.permute.xlu0 %4345
      %4411 = vrot.lane.b32.xlu0 %v3097, 8
      %v4412 = vpop.permute.xlu0 %4411
      %4413 = vrot.lane.b32.xlu0 %v3102, 8
      %v4414 = vpop.permute.xlu0 %4413
      %4415 = vrot.lane.b32.xlu0 %v3107, 8
      %v4416 = vpop.permute.xlu0 %4415
      %4417 = vrot.lane.b32.xlu0 %v3112, 8
      %v4418 = vpop.permute.xlu0 %4417
      %4419 = vrot.lane.b32.xlu0 %v3117, 8
      %v4420 = vpop.permute.xlu0 %4419
      %4421 = vrot.lane.b32.xlu0 %v3122, 8
      %v4422 = vpop.permute.xlu0 %4421
      %4423 = vrot.lane.b32.xlu0 %v3127, 8
      %v4424 = vpop.permute.xlu0 %4423
      %4425 = vrot.lane.b32.xlu0 %v3132, 8
      %v4426 = vpop.permute.xlu0 %4425
      %4427 = vrot.lane.b32.xlu0 %v3137, 8
      %v4428 = vpop.permute.xlu0 %4427
      %4429 = vrot.lane.b32.xlu0 %v3142, 8
      %v4430 = vpop.permute.xlu0 %4429
      %4431 = vrot.lane.b32.xlu0 %v3147, 8
      %v4432 = vpop.permute.xlu0 %4431
      %4433 = vrot.lane.b32.xlu0 %v3152, 8
      %v4434 = vpop.permute.xlu0 %4433
      %4435 = vrot.lane.b32.xlu0 %v3157, 8
      %v4436 = vpop.permute.xlu0 %4435
      %4437 = vrot.lane.b32.xlu0 %v3162, 8
      %v4438 = vpop.permute.xlu0 %4437
      %4439 = vrot.lane.b32.xlu0 %v3167, 8
      %v4440 = vpop.permute.xlu0 %4439
      %4441 = vrot.lane.b32.xlu0 %v3172, 8
      %v4442 = vpop.permute.xlu0 %4441
      %4443 = vrot.lane.b32.xlu0 %v3177, 8
      %v4444 = vpop.permute.xlu0 %4443
      %4445 = vrot.lane.b32.xlu0 %v3182, 8
      %v4446 = vpop.permute.xlu0 %4445
      %4447 = vrot.lane.b32.xlu0 %v3187, 8
      %v4448 = vpop.permute.xlu0 %4447
      %4449 = vrot.lane.b32.xlu0 %v3192, 8
      %v4450 = vpop.permute.xlu0 %4449
      %4451 = vrot.lane.b32.xlu0 %v3197, 8
      %v4452 = vpop.permute.xlu0 %4451
      %4453 = vrot.lane.b32.xlu0 %v3202, 8
      %v4454 = vpop.permute.xlu0 %4453
      %4455 = vrot.lane.b32.xlu0 %v3207, 8
      %v4456 = vpop.permute.xlu0 %4455
      %4457 = vrot.lane.b32.xlu0 %v3212, 8
      %v4458 = vpop.permute.xlu0 %4457
      %4459 = vrot.lane.b32.xlu0 %v3217, 8
      %v4460 = vpop.permute.xlu0 %4459
      %4461 = vrot.lane.b32.xlu0 %v3222, 8
      %v4462 = vpop.permute.xlu0 %4461
      %4463 = vrot.lane.b32.xlu0 %v3227, 8
      %v4464 = vpop.permute.xlu0 %4463
      %4465 = vrot.lane.b32.xlu0 %v3232, 8
      %v4466 = vpop.permute.xlu0 %4465
      %4467 = vrot.lane.b32.xlu0 %v3237, 8
      %v4468 = vpop.permute.xlu0 %4467
      %4469 = vrot.lane.b32.xlu0 %v3242, 8
      %v4470 = vpop.permute.xlu0 %4469
      %4471 = vrot.lane.b32.xlu0 %v3247, 8
      %v4472 = vpop.permute.xlu0 %4471
      %4473 = vrot.lane.b32.xlu0 %v3252, 8
      %v4474 = vpop.permute.xlu0 %4473
      %4539 = vrot.lane.b32.xlu0 %v4093, 12
      %v4540 = vpop.permute.xlu0 %4539
      %4541 = vrot.lane.b32.xlu0 %v4098, 12
      %v4542 = vpop.permute.xlu0 %4541
      %4543 = vrot.lane.b32.xlu0 %v4103, 12
      %v4544 = vpop.permute.xlu0 %4543
      %4545 = vrot.lane.b32.xlu0 %v4108, 12
      %v4546 = vpop.permute.xlu0 %4545
      %4547 = vrot.lane.b32.xlu0 %v4113, 12
      %v4548 = vpop.permute.xlu0 %4547
      %4549 = vrot.lane.b32.xlu0 %v4118, 12
      %v4550 = vpop.permute.xlu0 %4549
      %4551 = vrot.lane.b32.xlu0 %v4123, 12
      %v4552 = vpop.permute.xlu0 %4551
      %4553 = vrot.lane.b32.xlu0 %v4128, 12
      %v4554 = vpop.permute.xlu0 %4553
      %4555 = vrot.lane.b32.xlu0 %v4133, 12
      %v4556 = vpop.permute.xlu0 %4555
      %4557 = vrot.lane.b32.xlu0 %v4138, 12
      %v4558 = vpop.permute.xlu0 %4557
      %4559 = vrot.lane.b32.xlu0 %v4143, 12
      %v4560 = vpop.permute.xlu0 %4559
      %4561 = vrot.lane.b32.xlu0 %v4148, 12
      %v4562 = vpop.permute.xlu0 %4561
      %4563 = vrot.lane.b32.xlu0 %v4153, 12
      %v4564 = vpop.permute.xlu0 %4563
      %4565 = vrot.lane.b32.xlu0 %v4158, 12
      %v4566 = vpop.permute.xlu0 %4565
      %4567 = vrot.lane.b32.xlu0 %v4163, 12
      %v4568 = vpop.permute.xlu0 %4567
      %4569 = vrot.lane.b32.xlu0 %v4168, 12
      %v4570 = vpop.permute.xlu0 %4569
      %4571 = vrot.lane.b32.xlu0 %v4173, 12
      %v4572 = vpop.permute.xlu0 %4571
      %4573 = vrot.lane.b32.xlu0 %v4178, 12
      %v4574 = vpop.permute.xlu0 %4573
      %4575 = vrot.lane.b32.xlu0 %v4183, 12
      %v4576 = vpop.permute.xlu0 %4575
      %4577 = vrot.lane.b32.xlu0 %v4188, 12
      %v4578 = vpop.permute.xlu0 %4577
      %4579 = vrot.lane.b32.xlu0 %v4193, 12
      %v4580 = vpop.permute.xlu0 %4579
      %4581 = vrot.lane.b32.xlu0 %v4198, 12
      %v4582 = vpop.permute.xlu0 %4581
      %4583 = vrot.lane.b32.xlu0 %v4203, 12
      %v4584 = vpop.permute.xlu0 %4583
      %4585 = vrot.lane.b32.xlu0 %v4208, 12
      %v4586 = vpop.permute.xlu0 %4585
      %4587 = vrot.lane.b32.xlu0 %v4213, 12
      %v4588 = vpop.permute.xlu0 %4587
      %4589 = vrot.lane.b32.xlu0 %v4218, 12
      %v4590 = vpop.permute.xlu0 %4589
      %4591 = vrot.lane.b32.xlu0 %v4223, 12
      %v4592 = vpop.permute.xlu0 %4591
      %4593 = vrot.lane.b32.xlu0 %v4228, 12
      %v4594 = vpop.permute.xlu0 %4593
      %4595 = vrot.lane.b32.xlu0 %v4233, 12
      %v4596 = vpop.permute.xlu0 %4595
      %4597 = vrot.lane.b32.xlu0 %v4238, 12
      %v4598 = vpop.permute.xlu0 %4597
      %4599 = vrot.lane.b32.xlu0 %v4243, 12
      %v4600 = vpop.permute.xlu0 %4599
      %4601 = vrot.lane.b32.xlu0 %v4248, 12
      %v4602 = vpop.permute.xlu0 %4601
      %v4635 = vsel %vm286, %v1103, %v4284
      %v4636 = vsel %vm286, %v1108, %v4286
      %v4637 = vsel %vm286, %v1113, %v4288
      %v4638 = vsel %vm286, %v1118, %v4290
      %v4639 = vsel %vm286, %v1123, %v4292
      %v4640 = vsel %vm286, %v1128, %v4294
      %v4641 = vsel %vm286, %v1133, %v4296
      %v4642 = vsel %vm286, %v1138, %v4298
      %v4643 = vsel %vm286, %v1143, %v4300
      %v4644 = vsel %vm286, %v1148, %v4302
      %v4645 = vsel %vm286, %v1153, %v4304
      %v4646 = vsel %vm286, %v1158, %v4306
      %v4647 = vsel %vm286, %v1163, %v4308
      %v4648 = vsel %vm286, %v1168, %v4310
      %v4649 = vsel %vm286, %v1173, %v4312
      %v4650 = vsel %vm286, %v1178, %v4314
      %v4651 = vsel %vm286, %v1183, %v4316
      %v4652 = vsel %vm286, %v1188, %v4318
      %v4653 = vsel %vm286, %v1193, %v4320
      %v4654 = vsel %vm286, %v1198, %v4322
      %v4655 = vsel %vm286, %v1203, %v4324
      %v4656 = vsel %vm286, %v1208, %v4326
      %v4657 = vsel %vm286, %v1213, %v4328
      %v4658 = vsel %vm286, %v1218, %v4330
      %v4659 = vsel %vm286, %v1223, %v4332
      %v4660 = vsel %vm286, %v1228, %v4334
      %v4661 = vsel %vm286, %v1233, %v4336
      %v4662 = vsel %vm286, %v1238, %v4338
      %v4663 = vsel %vm286, %v1243, %v4340
      %v4664 = vsel %vm286, %v1248, %v4342
      %v4665 = vsel %vm286, %v1253, %v4344
      %v4666 = vsel %vm286, %v1258, %v4346
      %vm4667 = vcmask 64512
      %v4668 = vsel %vm4667, %v4635, %v4412
      %v4669 = vsel %vm4667, %v4636, %v4414
      %v4670 = vsel %vm4667, %v4637, %v4416
      %v4671 = vsel %vm4667, %v4638, %v4418
      %v4672 = vsel %vm4667, %v4639, %v4420
      %v4673 = vsel %vm4667, %v4640, %v4422
      %v4674 = vsel %vm4667, %v4641, %v4424
      %v4675 = vsel %vm4667, %v4642, %v4426
      %v4676 = vsel %vm4667, %v4643, %v4428
      %v4677 = vsel %vm4667, %v4644, %v4430
      %v4678 = vsel %vm4667, %v4645, %v4432
      %v4679 = vsel %vm4667, %v4646, %v4434
      %v4680 = vsel %vm4667, %v4647, %v4436
      %v4681 = vsel %vm4667, %v4648, %v4438
      %v4682 = vsel %vm4667, %v4649, %v4440
      %v4683 = vsel %vm4667, %v4650, %v4442
      %v4684 = vsel %vm4667, %v4651, %v4444
      %v4685 = vsel %vm4667, %v4652, %v4446
      %v4686 = vsel %vm4667, %v4653, %v4448
      %v4687 = vsel %vm4667, %v4654, %v4450
      %v4688 = vsel %vm4667, %v4655, %v4452
      %v4689 = vsel %vm4667, %v4656, %v4454
      %v4690 = vsel %vm4667, %v4657, %v4456
      %v4691 = vsel %vm4667, %v4658, %v4458
      %v4692 = vsel %vm4667, %v4659, %v4460
      %v4693 = vsel %vm4667, %v4660, %v4462
      %v4694 = vsel %vm4667, %v4661, %v4464
      %v4695 = vsel %vm4667, %v4662, %v4466
      %v4696 = vsel %vm4667, %v4663, %v4468
      %v4697 = vsel %vm4667, %v4664, %v4470
      %v4698 = vsel %vm4667, %v4665, %v4472
      %v4699 = vsel %vm4667, %v4666, %v4474
      %vm4700 = vcmask 97280
      %v4701 = vsel %vm4700, %v4668, %v4540
      %v4702 = vsel %vm4700, %v4669, %v4542
      %v4703 = vsel %vm4700, %v4670, %v4544
      %v4704 = vsel %vm4700, %v4671, %v4546
      %v4705 = vsel %vm4700, %v4672, %v4548
      %v4706 = vsel %vm4700, %v4673, %v4550
      %v4707 = vsel %vm4700, %v4674, %v4552
      %v4708 = vsel %vm4700, %v4675, %v4554
      %v4709 = vsel %vm4700, %v4676, %v4556
      %v4710 = vsel %vm4700, %v4677, %v4558
      %v4711 = vsel %vm4700, %v4678, %v4560
      %v4712 = vsel %vm4700, %v4679, %v4562
      %v4713 = vsel %vm4700, %v4680, %v4564
      %v4714 = vsel %vm4700, %v4681, %v4566
      %v4715 = vsel %vm4700, %v4682, %v4568
      %v4716 = vsel %vm4700, %v4683, %v4570
      %v4717 = vsel %vm4700, %v4684, %v4572
      %v4718 = vsel %vm4700, %v4685, %v4574
      %v4719 = vsel %vm4700, %v4686, %v4576
      %v4720 = vsel %vm4700, %v4687, %v4578
      %v4721 = vsel %vm4700, %v4688, %v4580
      %v4722 = vsel %vm4700, %v4689, %v4582
      %v4723 = vsel %vm4700, %v4690, %v4584
      %v4724 = vsel %vm4700, %v4691, %v4586
      %v4725 = vsel %vm4700, %v4692, %v4588
      %v4726 = vsel %vm4700, %v4693, %v4590
      %v4727 = vsel %vm4700, %v4694, %v4592
      %v4728 = vsel %vm4700, %v4695, %v4594
      %v4729 = vsel %vm4700, %v4696, %v4596
      %v4730 = vsel %vm4700, %v4697, %v4598
      %v4731 = vsel %vm4700, %v4698, %v4600
      %v4732 = vsel %vm4700, %v4699, %v4602
      %4733 = vst.msk [vmem:[%s252] sm:$0xff] %vm939, %v4701
      %4734 = vst.msk [vmem:[%s252 + $0x8] sm:$0xff] %vm939, %v4702
      %4735 = vst.msk [vmem:[%s252 + $0x10] sm:$0xff] %vm939, %v4703
      %4736 = vst.msk [vmem:[%s252 + $0x18] sm:$0xff] %vm939, %v4704
      %4737 = vst.msk [vmem:[%s252 + $0x20] sm:$0xff] %vm939, %v4705
      %4738 = vst.msk [vmem:[%s252 + $0x28] sm:$0xff] %vm939, %v4706
      %4739 = vst.msk [vmem:[%s252 + $0x30] sm:$0xff] %vm939, %v4707
      %4740 = vst.msk [vmem:[%s252 + $0x38] sm:$0xff] %vm939, %v4708
      %4741 = vst.msk [vmem:[%s252 + $0x40] sm:$0xff] %vm939, %v4709
      %4742 = vst.msk [vmem:[%s252 + $0x48] sm:$0xff] %vm939, %v4710
      %4743 = vst.msk [vmem:[%s252 + $0x50] sm:$0xff] %vm939, %v4711
      %4744 = vst.msk [vmem:[%s252 + $0x58] sm:$0xff] %vm939, %v4712
      %4745 = vst.msk [vmem:[%s252 + $0x60] sm:$0xff] %vm939, %v4713
      %4746 = vst.msk [vmem:[%s252 + $0x68] sm:$0xff] %vm939, %v4714
      %4747 = vst.msk [vmem:[%s252 + $0x70] sm:$0xff] %vm939, %v4715
      %4748 = vst.msk [vmem:[%s252 + $0x78] sm:$0xff] %vm939, %v4716
      %4749 = vst.msk [vmem:[%s252 + $0x80] sm:$0xff] %vm939, %v4717
      %4750 = vst.msk [vmem:[%s252 + $0x88] sm:$0xff] %vm939, %v4718
      %4751 = vst.msk [vmem:[%s252 + $0x90] sm:$0xff] %vm939, %v4719
      %4752 = vst.msk [vmem:[%s252 + $0x98] sm:$0xff] %vm939, %v4720
      %4753 = vst.msk [vmem:[%s252 + $0xa0] sm:$0xff] %vm939, %v4721
      %4754 = vst.msk [vmem:[%s252 + $0xa8] sm:$0xff] %vm939, %v4722
      %4755 = vst.msk [vmem:[%s252 + $0xb0] sm:$0xff] %vm939, %v4723
      %4756 = vst.msk [vmem:[%s252 + $0xb8] sm:$0xff] %vm939, %v4724
      %4757 = vst.msk [vmem:[%s252 + $0xc0] sm:$0xff] %vm939, %v4725
      %4758 = vst.msk [vmem:[%s252 + $0xc8] sm:$0xff] %vm939, %v4726
      %4759 = vst.msk [vmem:[%s252 + $0xd0] sm:$0xff] %vm939, %v4727
      %4760 = vst.msk [vmem:[%s252 + $0xd8] sm:$0xff] %vm939, %v4728
      %4761 = vst.msk [vmem:[%s252 + $0xe0] sm:$0xff] %vm939, %v4729
      %4762 = vst.msk [vmem:[%s252 + $0xe8] sm:$0xff] %vm939, %v4730
      %4763 = vst.msk [vmem:[%s252 + $0xf0] sm:$0xff] %vm939, %v4731
      %4764 = vst.msk [vmem:[%s252 + $0xf8] sm:$0xff] %vm939, %v4732
      %p4765 = scmp.lt.s32.totalorder %s19, 1
      %s4766 = scalar_select %p4765, %s19, 1
      %p4767 = scmp.lt.s32.totalorder %s20, 0
      %s4768 = scalar_select %p4767, %s20, 0
      %p4769 = scmp.lt.s32.totalorder %s21, 0
      %s4770 = scalar_select %p4769, %s21, 0
      %s4771 = smul.addr %s4768, 32
      %s4772 = sadd.s32 %s4770, %s4771
      %s4773 = smul.addr %s4766, 32
      %s4774 = sadd.s32 %s4772, %s4773
      %s4775 = smul.addr %s4774, 8
      %s4776 = scalar_lea.vmem %s3, %s4775
      // Predicated region
      $region33: #{tpu_custom_call.1} parent=31 // pred_check
        %p4777 = pneg %p135
      $region34: #{tpu_custom_call.1} parent=31 // pred_check_branch
        %4779 = sbr.rel (%p4777) target = $region36
      $region35: #{tpu_custom_call.1} parent=31 // pred_region
        _
      $region36: #{tpu_custom_call.1} parent=31 // pred_fallthru
        _
    $region32: #{tpu_custom_call.1} parent=5 // pred_fallthru
      _
    %p4780 = scmp.le.s32.totalorder 2, %s9
    // Predicated region
    $region37: #{tpu_custom_call.1} parent=5 // pred_check
      %p4781 = pneg %p4780
    $region38: #{tpu_custom_call.1} parent=5 // pred_check_branch
      %4783 = sbr.rel (%p4781) target = $region40
    $region39: #{tpu_custom_call.1} parent=5 // pred_region
      %s4784 = ssub.s32 %s9, 2
      // Predicated region
      $region41: #{tpu_custom_call.1} parent=39 // pred_check
        %p4785 = pneg %p141
      $region42: #{tpu_custom_call.1} parent=39 // pred_check_branch
        %4787 = sbr.rel (%p4785) target = $region44
      $region43: #{tpu_custom_call.1} parent=39 // pred_region
        %p4788 = scmp.lt.s32.totalorder %s22, 1
        %s4789 = scalar_select %p4788, %s22, 1
        %p4790 = scmp.lt.s32.totalorder %s23, 0
        %s4791 = scalar_select %p4790, %s23, 0
        %p4792 = scmp.lt.s32.totalorder %s24, 0
        %s4793 = scalar_select %p4792, %s24, 0
        %s4794 = smul.addr %s4791, 32
        %s4795 = sadd.s32 %s4793, %s4794
        %s4796 = smul.addr %s4789, 32
        %s4797 = sadd.s32 %s4795, %s4796
        %s4798 = smul.addr %s4797, 8
        %s4799 = scalar_lea.vmem %s3, %s4798
      $region44: #{tpu_custom_call.1} parent=39 // pred_fallthru
        _
    $region40: #{tpu_custom_call.1} parent=5 // pred_fallthru
      _
  $region6: #{tpu_custom_call.1} parent=0 // loop_footer
    %s13 = sadd.s32 1, %s9
  $region7: #{tpu_custom_call.1} parent=0 // loop_footer_branch
    %8 = sbr.rel target = $region3
  $region8: #{tpu_custom_call.1} parent=0 // loop_exit
    _

</llo_original>
